<compile_context>
chip_gen: v5e
topology: v5e:2x2
jax: 0.10.0
libtpu: 0.0.40
codegen_flags: <defaults>
</compile_context>

<pallas_src>
import math
import numpy as np
import jax
import jax.numpy as jnp
from jax.experimental import pallas as pl
from jax.experimental.pallas import tpu as pltpu

# ----- Environment-like constants (small, self-contained, deterministic) -----
ACTION_SPACE = 8
MAP_H = 8
MAP_W = 8
MAX_REPS = 4          # max_reps_per_square (conv1 depth kernel)
REP_SIZE = 4          # rep_size            (conv1 in-channels)
PHYS = 4              # physical_rep_size
MENTAL = 4            # mental_rep_size
MAX_OTHER = 12        # max_other_agents (module default)
C1, C2, C3 = 16, 16, 8
HSZ = C3 * MAP_H * MAP_W                                       # 512
AG = PHYS + MENTAL                                             # 8
LSTM_IN = HSZ + AG + MAX_OTHER * PHYS + MAX_OTHER * MENTAL     # 616
BN_EPS = 1e-5

GATES = 3 * HSZ        # 1536: [i | g | o]  (forget gate dropped: c0 == 0)
IN_PAD = 624           # LSTM_IN (616) padded to a multiple of 8
ACTH_COL = GATES       # act_hidden weight columns inside the packed W slab
INF_COL = GATES + 128  # infer_mental weight columns
WSLAB_COLS = 1792      # 1712 used, padded to 14*128
WSLAB_ROWS = IN_PAD

# W-slab row offsets (== column offsets of the packed LSTM input slab)
ROW_X = 0              # conv features, (h, w, c) order, 512 rows
ROW_AGP = HSZ          # agent phys embedding, 4 rows
ROW_AGM = HSZ + 4      # agent ment embedding, 4 rows
ROW_OTHP = HSZ + 8     # blowup(vis, other_p), 48 rows
ROW_OTHM = HSZ + 56    # other-agent mental, 48 rows

# conv bf16 slab row offsets
CS_W1, CS_W2, CS_W3, CS_ROWS = 0, 128, 512, 1152

# small f32 slab row offsets
(PS_B1, PS_B2, PS_B3, PS_ACTHB, PS_PHYSB, PS_MENTB,
 PS_PHYSBT, PS_MENTBT, PS_ACTB, PS_INFB) = range(10)
PS_PHYSW, PS_MENTW = 16, 20
PS_PHYSBD, PS_MENTBD = 24, 72
PS_ACTW = 120
PS_PAVG16, PS_PAVG8 = 248, 376
PS_ROWS = 440

_VMEM = pl.BlockSpec(memory_space=pltpu.MemorySpace.VMEM)


# ----------------------------- fused Pallas kernel ----------------------------
def fused_forward_kernel(x0_ref, sh_ref, ag_ref, conv_ref, ps_ref, lstmb_ref, whbm_ref,
                         out_ref, w_vmem, inp_ref, sem):
    kh = x0_ref.shape[0]
    k = kh // MAP_H
    f32 = jnp.float32
    bf16 = jnp.bfloat16

    # Kick off the big LSTM/head weight DMA immediately; it overlaps the whole
    # conv stack and is only waited on right before the gate matmul.
    wcopy = pltpu.make_async_copy(whbm_ref, w_vmem, sem)
    wcopy.start()

    def dot32(a, b):
        return jnp.dot(a, b, preferred_element_type=f32)

    def bn_relu(y, p_avg):
        # Train-mode BatchNorm batch stats (gamma=1, beta=0) + ReLU on the
        # (k*H, W*C) conv layout; per-channel stats via a precomputed
        # channel-averaging projection.  Stats / elementwise math stay f32.
        col_mean = jnp.mean(y, axis=0, keepdims=True)
        mean_full = dot32(col_mean, p_avg)
        yc = y - mean_full
        col_var = jnp.mean(yc * yc, axis=0, keepdims=True)
        var_full = dot32(col_var, p_avg)
        return jnp.maximum(yc * jax.lax.rsqrt(var_full + BN_EPS), 0.0)

    pavg16 = ps_ref[PS_PAVG16:PS_PAVG16 + 128, :]
    pavg8 = ps_ref[PS_PAVG8:PS_PAVG8 + 64, 0:MAP_W * C3]

    # ---- conv1 (depth x 1 x 1 pointwise) + bn1 + relu ----
    y1 = bn_relu(dot32(x0_ref[...].astype(bf16), conv_ref[CS_W1:CS_W1 + 128, :])
                 + ps_ref[PS_B1:PS_B1 + 1, :], pavg16)

    # ---- conv2 3x3 'same' + bn2 + relu (h-shift matmul x banded w/channel weight) ----
    wc1 = MAP_W * C1
    y1b = y1.astype(bf16)
    acc = None
    for dy in range(3):
        shifted = dot32(sh_ref[dy * kh:(dy + 1) * kh, :], y1b)
        term = dot32(shifted.astype(bf16),
                     conv_ref[CS_W2 + dy * wc1:CS_W2 + (dy + 1) * wc1, :])
        acc = term if acc is None else acc + term
    y2 = bn_relu(acc + ps_ref[PS_B2:PS_B2 + 1, :], pavg16)

    # ---- conv3 5x5 'same' + bn3 + relu ----
    wc2 = MAP_W * C2
    y2b = y2.astype(bf16)
    acc = None
    for dy in range(5):
        shifted = dot32(sh_ref[(3 + dy) * kh:(4 + dy) * kh, :], y2b)
        term = dot32(shifted.astype(bf16),
                     conv_ref[CS_W3 + dy * wc2:CS_W3 + (dy + 1) * wc2, 0:MAP_W * C3])
        acc = term if acc is None else acc + term
    y3 = bn_relu(acc + ps_ref[PS_B3:PS_B3 + 1, 0:MAP_W * C3], pavg8)      # (k*H, W*C3)

    # ---- agent embedding / other agents ----
    p = ag_ref[0:k, 0:PHYS]
    m = ag_ref[k:2 * k, 0:MENTAL]
    p_flat = ag_ref[2 * k:2 * k + 1, :]
    m_mix = ag_ref[2 * k + 1:2 * k + 2, :]
    vis_exp = ag_ref[2 * k + 2:3 * k + 2, :]

    ag_p = jnp.maximum(dot32(p, ps_ref[PS_PHYSW:PS_PHYSW + PHYS, 0:PHYS])
                       + ps_ref[PS_PHYSB:PS_PHYSB + 1, 0:PHYS], 0.0)
    ag_m = jnp.maximum(dot32(m, ps_ref[PS_MENTW:PS_MENTW + MENTAL, 0:MENTAL])
                       + ps_ref[PS_MENTB:PS_MENTB + 1, 0:MENTAL], 0.0)
    other_p = jnp.maximum(dot32(p_flat, ps_ref[PS_PHYSBD:PS_PHYSBD + 48, 0:48])
                          + ps_ref[PS_PHYSBT:PS_PHYSBT + 1, 0:48], 0.0)
    phys_inp = vis_exp * other_p                       # blowup(vis, other_p), flat
    ment_inp = jnp.maximum(dot32(m_mix, ps_ref[PS_MENTBD:PS_MENTBD + 48, 0:48])
                           + ps_ref[PS_MENTBT:PS_MENTBT + 1, 0:48], 0.0)

    # ---- pack the full LSTM input into one (k, 624) slab (cols == W-slab rows) ----
    inp_ref[...] = jnp.zeros_like(inp_ref)             # zero the 616:624 padding too
    wc3 = MAP_W * C3
    y3b = y3.astype(bf16)
    sel_off = 8 * kh
    for h in range(MAP_H):
        rows = dot32(sh_ref[sel_off + h * k:sel_off + (h + 1) * k, :], y3b)   # (k, W*C3)
        inp_ref[:, h * wc3:(h + 1) * wc3] = rows
    inp_ref[:, ROW_AGP:ROW_AGP + PHYS] = ag_p
    inp_ref[:, ROW_AGM:ROW_AGM + MENTAL] = ag_m
    inp_ref[:, ROW_OTHP:ROW_OTHP + MAX_OTHER * PHYS] = phys_inp
    inp_ref[:, ROW_OTHM:ROW_OTHM + MAX_OTHER * MENTAL] = \
        jnp.broadcast_to(ment_inp, (k, MAX_OTHER * MENTAL))

    # ---- LSTM cell (seq_len=1, zero initial state, forget gate dropped) ----
    wcopy.wait()
    gates = dot32(inp_ref[...].astype(bf16), w_vmem[:, 0:GATES]) + lstmb_ref[...]
    gi = jax.nn.sigmoid(gates[:, 0:HSZ])
    gg = jnp.tanh(gates[:, HSZ:2 * HSZ])
    go = jax.nn.sigmoid(gates[:, 2 * HSZ:3 * HSZ])
    hr = jnp.maximum(go * jnp.tanh(gi * gg), 0.0)      # relu(lstm out); c0 == 0
    hr_b = hr.astype(bf16)

    # ---- heads ----
    old_ment = (dot32(hr_b, w_vmem[0:HSZ, INF_COL:INF_COL + MAX_OTHER * MENTAL])
                + ps_ref[PS_INFB:PS_INFB + 1, 0:MAX_OTHER * MENTAL])
    hid = jnp.maximum(dot32(hr_b, w_vmem[0:HSZ, ACTH_COL:ACTH_COL + 128])
                      + ps_ref[PS_ACTHB:PS_ACTHB + 1, :], 0.0)
    act = (dot32(hid, ps_ref[PS_ACTW:PS_ACTW + 128, 0:ACTION_SPACE])
           + ps_ref[PS_ACTB:PS_ACTB + 1, 0:ACTION_SPACE])

    # ---- lane-dense merged output: act in lanes 0:8, old_ment in lanes 8:56 ----
    out_ref[...] = jnp.zeros_like(out_ref)
    out_ref[:, 0:ACTION_SPACE] = act
    out_ref[:, ACTION_SPACE:ACTION_SPACE + MAX_OTHER * MENTAL] = old_ment


# ------------------------------ parameter prep --------------------------------
def init_params(key):
    ks = list(jax.random.split(key, 24))

    def u(shape, fan_in):
        bound = 1.0 / math.sqrt(fan_in)
        return jax.random.uniform(ks.pop(), shape, jnp.float32, -bound, bound)

    p = {}
    p["conv1_w"] = u((C1, REP_SIZE, MAX_REPS, 1, 1), REP_SIZE * MAX_REPS)
    p["conv1_b"] = u((C1,), REP_SIZE * MAX_REPS)
    p["conv2_w"] = u((C2, C1, 3, 3), C1 * 9)
    p["conv2_b"] = u((C2,), C1 * 9)
    p["conv3_w"] = u((C3, C2, 5, 5), C2 * 25)
    p["conv3_b"] = u((C3,), C2 * 25)
    p["phys_w"] = u((PHYS, PHYS), PHYS)
    p["phys_b"] = u((PHYS,), PHYS)
    p["ment_w"] = u((MENTAL, MENTAL), MENTAL)
    p["ment_b"] = u((MENTAL,), MENTAL)
    p["lstm_wih"] = u((4 * HSZ, LSTM_IN), HSZ)
    p["lstm_whh"] = u((4 * HSZ, HSZ), HSZ)
    p["lstm_bih"] = u((4 * HSZ,), HSZ)
    p["lstm_bhh"] = u((4 * HSZ,), HSZ)
    p["acth_w"] = u((128, HSZ), HSZ)
    p["acth_b"] = u((128,), HSZ)
    p["act_w"] = u((ACTION_SPACE, 128), 128)
    p["act_b"] = u((ACTION_SPACE,), 128)
    p["inf_w"] = u((MAX_OTHER * MENTAL, HSZ), HSZ)
    p["inf_b"] = u((MAX_OTHER * MENTAL,), HSZ)
    return p


def _band_weight(w, ksz, cin, cout):
    # Fold the w-axis shift + channel contraction of a 'same' conv into a banded
    # weight (ksz * W*cin, W*cout); out-of-range taps are zero blocks (padding).
    pad = ksz // 2
    band = np.zeros((ksz, MAP_W * cin, MAP_W * cout), np.float32)
    for dy in range(ksz):
        for wi in range(MAP_W):
            for wo in range(MAP_W):
                dx = wi - wo + pad
                if 0 <= dx < ksz:
                    band[dy, wi * cin:(wi + 1) * cin, wo * cout:(wo + 1) * cout] = w[:, :, dy, dx].T
    return band.reshape(ksz * MAP_W * cin, MAP_W * cout)


def _chan_avg(c):
    # Projection (W*c, W*c) that replaces each column stat by its per-channel
    # average over w (broadcast back to every w position).
    p_ = np.zeros((MAP_W * c, MAP_W * c), np.float32)
    for ch in range(c):
        cols = np.arange(MAP_W) * c + ch
        p_[np.ix_(cols, cols)] = 1.0 / MAP_W
    return p_


def _block_diag(w_t, n):
    d = w_t.shape[0]
    out = np.zeros((n * d, n * d), np.float32)
    for j in range(n):
        out[j * d:(j + 1) * d, j * d:(j + 1) * d] = w_t
    return out


def prepare_params(params):
    # One-time (outside the jitted hot path) weight preparation: transposes,
    # banded/block-diagonal conv layouts, forget-gate removal, LSTM input-row
    # permutation, bf16 casting, and packing everything into 4 arrays.
    f32 = np.float32
    pr = {name: np.asarray(v, f32) for name, v in params.items()}
    cin1 = REP_SIZE * MAX_REPS

    # conv1 (depth,1,1) kernel == pointwise over (rep, depth); block-diag over w
    core1 = pr["conv1_w"].reshape(C1, cin1).T
    w1 = np.zeros((MAP_W * cin1, MAP_W * C1), f32)
    for w_ in range(MAP_W):
        w1[w_ * cin1:(w_ + 1) * cin1, w_ * C1:(w_ + 1) * C1] = core1
    w2 = _band_weight(pr["conv2_w"], 3, C1, C2)      # (384, 128)
    w3 = _band_weight(pr["conv3_w"], 5, C2, C3)      # (640, 64)

    conv_slab = np.zeros((CS_ROWS, 128), f32)
    conv_slab[CS_W1:CS_W1 + 128, :] = w1
    conv_slab[CS_W2:CS_W2 + 384, :] = w2
    conv_slab[CS_W3:CS_W3 + 640, 0:MAP_W * C3] = w3

    ps = np.zeros((PS_ROWS, 128), f32)
    ps[PS_B1, :] = np.tile(pr["conv1_b"], MAP_W)
    ps[PS_B2, :] = np.tile(pr["conv2_b"], MAP_W)
    ps[PS_B3, 0:MAP_W * C3] = np.tile(pr["conv3_b"], MAP_W)
    ps[PS_ACTHB, :] = pr["acth_b"]
    ps[PS_PHYSB, 0:PHYS] = pr["phys_b"]
    ps[PS_MENTB, 0:MENTAL] = pr["ment_b"]
    ps[PS_PHYSBT, 0:MAX_OTHER * PHYS] = np.tile(pr["phys_b"], MAX_OTHER)
    ps[PS_MENTBT, 0:MAX_OTHER * MENTAL] = np.tile(pr["ment_b"], MAX_OTHER)
    ps[PS_ACTB, 0:ACTION_SPACE] = pr["act_b"]
    ps[PS_INFB, 0:MAX_OTHER * MENTAL] = pr["inf_b"]
    ps[PS_PHYSW:PS_PHYSW + PHYS, 0:PHYS] = pr["phys_w"].T
    ps[PS_MENTW:PS_MENTW + MENTAL, 0:MENTAL] = pr["ment_w"].T
    ps[PS_PHYSBD:PS_PHYSBD + 48, 0:48] = _block_diag(pr["phys_w"].T, MAX_OTHER)
    ps[PS_MENTBD:PS_MENTBD + 48, 0:48] = _block_diag(pr["ment_w"].T, MAX_OTHER)
    ps[PS_ACTW:PS_ACTW + 128, 0:ACTION_SPACE] = pr["act_w"].T
    ps[PS_PAVG16:PS_PAVG16 + 128, :] = _chan_avg(C1)
    ps[PS_PAVG8:PS_PAVG8 + 64, 0:MAP_W * C3] = _chan_avg(C3)

    # LSTM W_ih: drop the forget-gate block (c0 == 0 -> never read), transpose,
    # permute the conv-feature rows from PyTorch's (c, h, w) flattening to the
    # kernel's (h, w, c) layout, and pack together with both head weights so one
    # overlapped DMA covers everything needed after the conv stack.
    keep = np.concatenate([np.arange(0, HSZ), np.arange(2 * HSZ, 4 * HSZ)])
    wih_t = pr["lstm_wih"][keep].T                   # (LSTM_IN, 3*HSZ)
    perm = np.array([c * (MAP_H * MAP_W) + h * MAP_W + w_
                     for h in range(MAP_H) for w_ in range(MAP_W) for c in range(C3)],
                    np.int64)
    off = HSZ
    wslab = np.zeros((WSLAB_ROWS, WSLAB_COLS), f32)
    wslab[ROW_X:ROW_X + HSZ, 0:GATES] = wih_t[:HSZ][perm]
    wslab[ROW_AGP:ROW_AGP + PHYS, 0:GATES] = wih_t[off:off + PHYS]
    wslab[ROW_AGM:ROW_AGM + MENTAL, 0:GATES] = wih_t[off + PHYS:off + AG]
    wslab[ROW_OTHP:ROW_OTHP + MAX_OTHER * PHYS, 0:GATES] = \
        wih_t[off + AG:off + AG + MAX_OTHER * PHYS]
    wslab[ROW_OTHM:ROW_OTHM + MAX_OTHER * MENTAL, 0:GATES] = \
        wih_t[off + AG + MAX_OTHER * PHYS:]
    wslab[0:HSZ, ACTH_COL:ACTH_COL + 128] = pr["acth_w"].T
    wslab[0:HSZ, INF_COL:INF_COL + MAX_OTHER * MENTAL] = pr["inf_w"].T

    lstm_b = (pr["lstm_bih"] + pr["lstm_bhh"])[keep][None, :]   # (1, 3*HSZ)

    # TODO(synk): params["lstm_whh"] is intentionally unused: this kernel models
    # the first forward() after reset_state() (zero LSTM state), so h0 @ W_hh is
    # identically zero; re-add it when persistent recurrent state is carried.
    # TODO(synk): wslab could be quantized to int8 (v5e/v6e) or fp8 (v7x) with
    # per-column scales for another ~2x cut of the dominant HBM stream; kept in
    # bf16 here for generation portability.
    return {
        "conv_slab": jnp.asarray(conv_slab, jnp.bfloat16),
        "ps": jnp.asarray(ps, jnp.float32),
        "lstm_b": jnp.asarray(lstm_b, jnp.float32),
        "wslab": jnp.asarray(wslab, jnp.bfloat16),
    }


# ------------------------------ glue / wrapper --------------------------------
def _shift_matrices(k, ksz):
    # 0/1 matrix: per-image h-shift with zero padding, (ksz*k*H, k*H).
    pad = ksz // 2
    s = np.zeros((ksz, k * MAP_H, k * MAP_H), np.float32)
    for dy in range(ksz):
        for n in range(k):
            for h in range(MAP_H):
                h_in = h + dy - pad
                if 0 <= h_in < MAP_H:
                    s[dy, n * MAP_H + h, n * MAP_H + h_in] = 1.0
    return s.reshape(ksz * k * MAP_H, k * MAP_H)


def _sel_matrix(k):
    # Row-selection matrix: block h picks conv rows {n*H+h} for n = 0..k-1.
    s = np.zeros((MAP_H * k, k * MAP_H), np.float32)
    for h in range(MAP_H):
        for n in range(k):
            s[h * k + n, n * MAP_H + h] = 1.0
    return s


def action_values_forward(prepared, x, p, m, vis, mix_ratio=0.9):
    # x: (k, REP_SIZE, MAX_REPS, H, W)  p: (k, PHYS)  m: (k, MENTAL)  vis: (k, k)
    # Models the first forward() after reset_state(): zero LSTM state and
    # old_ment is None (no (1 - mix_ratio) * old_ment term).
    # TODO(synk): persistent recurrent state (self.state / self.old_ment) across
    # calls is module-level Python state and is not carried here.
    k = x.shape[0]
    kh = k * MAP_H

    # conv input layout: rows = n*H + h, cols = w*(rep*depth) + ci*depth + d
    x0 = jnp.transpose(x, (0, 3, 4, 1, 2)).reshape(kh, MAP_W * REP_SIZE * MAX_REPS)

    # runtime agent slab: rows [p (k) | m (k) | p_flat (1) | m_mix (1) | vis_exp (k)]
    p_flat = jnp.zeros((MAX_OTHER, PHYS), jnp.float32).at[:k].set(p).reshape(1, MAX_OTHER * PHYS)
    m_mix = (mix_ratio * jnp.zeros((MAX_OTHER, MENTAL), jnp.float32).at[:k].set(m)
             ).reshape(1, MAX_OTHER * MENTAL)
    vis_pad = jnp.zeros((k, MAX_OTHER), jnp.float32).at[:, :vis.shape[1]].set(vis)
    vis_exp = jnp.repeat(vis_pad, PHYS, axis=1)               # (k, MAX_OTHER*PHYS)
    width = MAX_OTHER * PHYS
    pad_w = lambda a: jnp.pad(a, ((0, 0), (0, width - a.shape[1])))
    ag_slab = jnp.concatenate([pad_w(p), pad_w(m), p_flat, m_mix, vis_exp], axis=0)

    # 0/1 shift / row-selection matrices (trace-time constants for this k)
    shifts = jnp.asarray(
        np.concatenate([_shift_matrices(k, 3), _shift_matrices(k, 5), _sel_matrix(k)], axis=0),
        jnp.bfloat16)

    pd = prepared
    out = pl.pallas_call(
        fused_forward_kernel,
        out_shape=jax.ShapeDtypeStruct((k, 128), jnp.float32),
        in_specs=[_VMEM, _VMEM, _VMEM, _VMEM, _VMEM, _VMEM,
                  pl.BlockSpec(memory_space=pl.ANY)],          # W slab stays in HBM
        out_specs=_VMEM,
        scratch_shapes=[
            pltpu.VMEM((WSLAB_ROWS, WSLAB_COLS), jnp.bfloat16),  # W slab landing buffer
            pltpu.VMEM((k, IN_PAD), jnp.float32),                # packed LSTM input
            pltpu.SemaphoreType.DMA,
        ],
    )(x0, shifts, ag_slab, pd["conv_slab"], pd["ps"], pd["lstm_b"], pd["wslab"])

    act = out[:, 0:ACTION_SPACE]
    old_ment = out[:, ACTION_SPACE:ACTION_SPACE + MAX_OTHER * MENTAL].reshape(k, MAX_OTHER, MENTAL)
    return act, old_ment


if __name__ == "__main__":
    key = jax.random.PRNGKey(0)
    pkey, k1, k2, k3, k4 = jax.random.split(key, 5)
    params = init_params(pkey)
    prepared = prepare_params(params)

    # TODO(synk): batching more agents / env steps per call (larger k) is the
    # biggest remaining lever; it is a caller-side change.
    k = 2
    x = jax.random.normal(k1, (k, REP_SIZE, MAX_REPS, MAP_H, MAP_W), jnp.float32)
    p = jax.random.normal(k2, (k, PHYS), jnp.float32)
    m = jax.random.normal(k3, (k, MENTAL), jnp.float32)
    vis = (jax.random.uniform(k4, (k, k)) > 0.5).astype(jnp.float32)

    fwd = jax.jit(action_values_forward)
    act, old_ment = fwd(prepared, x, p, m, vis)
    jax.block_until_ready((act, old_ment))
    assert act.shape == (k, ACTION_SPACE)
    assert old_ment.shape == (k, MAX_OTHER, MENTAL)
    assert bool(jnp.all(jnp.isfinite(act))) and bool(jnp.all(jnp.isfinite(old_ment)))
    print("KERNEL_OK")
</pallas_src>

<mosaic_0001>
module attributes {stable_mosaic.version = 11 : i64} {
  func.func @fused_forward_kernel(%arg0: memref<16x128xf32, #tpu.memory_space<vmem>>, %arg1: memref<144x16xbf16, #tpu.memory_space<vmem>>, %arg2: memref<8x48xf32, #tpu.memory_space<vmem>>, %arg3: memref<1152x128xbf16, #tpu.memory_space<vmem>>, %arg4: memref<440x128xf32, #tpu.memory_space<vmem>>, %arg5: memref<1x1536xf32, #tpu.memory_space<vmem>>, %arg6: memref<624x1792xbf16, #tpu.memory_space<any>>, %arg7: memref<2x128xf32, #tpu.memory_space<vmem>>, %arg8: memref<624x1792xbf16, #tpu.memory_space<vmem>>, %arg9: memref<2x624xf32, #tpu.memory_space<vmem>>, %arg10: memref<!tpu.dma_semaphore, #tpu.memory_space<semaphore_mem>>) attributes {dimension_semantics = [], scalar_prefetch = 0 : i64, scratch_operands = 3 : i64, tpu.core_type = #tpu.core_type<tc>} {
    tpu.enqueue_dma source(%arg6 : memref<624x1792xbf16, #tpu.memory_space<any>>) target(%arg8 : memref<624x1792xbf16, #tpu.memory_space<vmem>>) target_semaphore(%arg10 : memref<!tpu.dma_semaphore, #tpu.memory_space<semaphore_mem>>)
    %c248 = arith.constant 248 : index
    %c0 = arith.constant 0 : index
    %0 = vector.load %arg4[%c248, %c0] : memref<440x128xf32, #tpu.memory_space<vmem>>, vector<128x128xf32>
    %c376 = arith.constant 376 : index
    %c0_0 = arith.constant 0 : index
    %1 = vector.load %arg4[%c376, %c0_0] : memref<440x128xf32, #tpu.memory_space<vmem>>, vector<64x64xf32>
    %c0_1 = arith.constant 0 : index
    %c0_2 = arith.constant 0 : index
    %2 = vector.load %arg0[%c0_1, %c0_2] : memref<16x128xf32, #tpu.memory_space<vmem>>, vector<16x128xf32>
    %3 = arith.truncf %2 : vector<16x128xf32> to vector<16x128xbf16>
    %c0_3 = arith.constant 0 : index
    %c0_4 = arith.constant 0 : index
    %4 = vector.load %arg3[%c0_3, %c0_4] : memref<1152x128xbf16, #tpu.memory_space<vmem>>, vector<128x128xbf16>
    %cst = arith.constant dense<0.000000e+00> : vector<16x128xf32>
    %5 = tpu.matmul %3, %4, %cst {dimension_numbers = #tpu.dot_dimension_numbers<[1], [0], [0], [1], [0, 0, 1, 1], [], []>} : vector<16x128xbf16>, vector<128x128xbf16>, vector<16x128xf32> -> vector<16x128xf32>
    %c0_5 = arith.constant 0 : index
    %c0_6 = arith.constant 0 : index
    %6 = vector.load %arg4[%c0_5, %c0_6] : memref<440x128xf32, #tpu.memory_space<vmem>>, vector<1x128xf32>
    %7 = vector.broadcast %6 : vector<1x128xf32> to vector<16x128xf32>
    %8 = arith.addf %5, %7 : vector<16x128xf32>
    %cst_7 = arith.constant dense<0.000000e+00> : vector<128xf32>
    %9 = vector.multi_reduction <add>, %8, %cst_7 [0] : vector<16x128xf32> to vector<128xf32>
    %10 = vector.shape_cast %9 : vector<128xf32> to vector<1x128xf32>
    %cst_8 = arith.constant 1.600000e+01 : f32
    %11 = vector.broadcast %cst_8 : f32 to vector<1x128xf32>
    %12 = arith.divf %10, %11 : vector<1x128xf32>
    %cst_9 = arith.constant dense<0.000000e+00> : vector<1x128xf32>
    %13 = tpu.matmul %12, %0, %cst_9 {dimension_numbers = #tpu.dot_dimension_numbers<[1], [0], [0], [1], [0, 0, 1, 1], [], []>} : vector<1x128xf32>, vector<128x128xf32>, vector<1x128xf32> -> vector<1x128xf32>
    %14 = vector.broadcast %13 : vector<1x128xf32> to vector<16x128xf32>
    %15 = arith.subf %8, %14 : vector<16x128xf32>
    %16 = arith.mulf %15, %15 : vector<16x128xf32>
    %cst_10 = arith.constant dense<0.000000e+00> : vector<128xf32>
    %17 = vector.multi_reduction <add>, %16, %cst_10 [0] : vector<16x128xf32> to vector<128xf32>
    %18 = vector.shape_cast %17 : vector<128xf32> to vector<1x128xf32>
    %cst_11 = arith.constant 1.600000e+01 : f32
    %19 = vector.broadcast %cst_11 : f32 to vector<1x128xf32>
    %20 = arith.divf %18, %19 : vector<1x128xf32>
    %cst_12 = arith.constant dense<0.000000e+00> : vector<1x128xf32>
    %21 = tpu.matmul %20, %0, %cst_12 {dimension_numbers = #tpu.dot_dimension_numbers<[1], [0], [0], [1], [0, 0, 1, 1], [], []>} : vector<1x128xf32>, vector<128x128xf32>, vector<1x128xf32> -> vector<1x128xf32>
    %cst_13 = arith.constant 9.99999974E-6 : f32
    %22 = vector.broadcast %cst_13 : f32 to vector<1x128xf32>
    %23 = arith.addf %21, %22 : vector<1x128xf32>
    %24 = math.rsqrt %23 : vector<1x128xf32>
    %25 = vector.broadcast %24 : vector<1x128xf32> to vector<16x128xf32>
    %26 = arith.mulf %15, %25 : vector<16x128xf32>
    %cst_14 = arith.constant 0.000000e+00 : f32
    %27 = vector.broadcast %cst_14 : f32 to vector<16x128xf32>
    %28 = arith.maximumf %26, %27 : vector<16x128xf32>
    %29 = arith.truncf %28 : vector<16x128xf32> to vector<16x128xbf16>
    %c0_15 = arith.constant 0 : index
    %c0_16 = arith.constant 0 : index
    %30 = vector.load %arg1[%c0_15, %c0_16] : memref<144x16xbf16, #tpu.memory_space<vmem>>, vector<16x16xbf16>
    %cst_17 = arith.constant dense<0.000000e+00> : vector<16x128xf32>
    %31 = tpu.matmul %30, %29, %cst_17 {dimension_numbers = #tpu.dot_dimension_numbers<[1], [0], [0], [1], [0, 0, 1, 1], [], []>} : vector<16x16xbf16>, vector<16x128xbf16>, vector<16x128xf32> -> vector<16x128xf32>
    %32 = arith.truncf %31 : vector<16x128xf32> to vector<16x128xbf16>
    %c128 = arith.constant 128 : index
    %c0_18 = arith.constant 0 : index
    %33 = vector.load %arg3[%c128, %c0_18] : memref<1152x128xbf16, #tpu.memory_space<vmem>>, vector<128x128xbf16>
    %cst_19 = arith.constant dense<0.000000e+00> : vector<16x128xf32>
    %34 = tpu.matmul %32, %33, %cst_19 {dimension_numbers = #tpu.dot_dimension_numbers<[1], [0], [0], [1], [0, 0, 1, 1], [], []>} : vector<16x128xbf16>, vector<128x128xbf16>, vector<16x128xf32> -> vector<16x128xf32>
    %c16 = arith.constant 16 : index
    %c0_20 = arith.constant 0 : index
    %35 = vector.load %arg1[%c16, %c0_20] : memref<144x16xbf16, #tpu.memory_space<vmem>>, vector<16x16xbf16>
    %cst_21 = arith.constant dense<0.000000e+00> : vector<16x128xf32>
    %36 = tpu.matmul %35, %29, %cst_21 {dimension_numbers = #tpu.dot_dimension_numbers<[1], [0], [0], [1], [0, 0, 1, 1], [], []>} : vector<16x16xbf16>, vector<16x128xbf16>, vector<16x128xf32> -> vector<16x128xf32>
    %37 = arith.truncf %36 : vector<16x128xf32> to vector<16x128xbf16>
    %c256 = arith.constant 256 : index
    %c0_22 = arith.constant 0 : index
    %38 = vector.load %arg3[%c256, %c0_22] : memref<1152x128xbf16, #tpu.memory_space<vmem>>, vector<128x128xbf16>
    %cst_23 = arith.constant dense<0.000000e+00> : vector<16x128xf32>
    %39 = tpu.matmul %37, %38, %cst_23 {dimension_numbers = #tpu.dot_dimension_numbers<[1], [0], [0], [1], [0, 0, 1, 1], [], []>} : vector<16x128xbf16>, vector<128x128xbf16>, vector<16x128xf32> -> vector<16x128xf32>
    %40 = arith.addf %34, %39 : vector<16x128xf32>
    %c32 = arith.constant 32 : index
    %c0_24 = arith.constant 0 : index
    %41 = vector.load %arg1[%c32, %c0_24] : memref<144x16xbf16, #tpu.memory_space<vmem>>, vector<16x16xbf16>
    %cst_25 = arith.constant dense<0.000000e+00> : vector<16x128xf32>
    %42 = tpu.matmul %41, %29, %cst_25 {dimension_numbers = #tpu.dot_dimension_numbers<[1], [0], [0], [1], [0, 0, 1, 1], [], []>} : vector<16x16xbf16>, vector<16x128xbf16>, vector<16x128xf32> -> vector<16x128xf32>
    %43 = arith.truncf %42 : vector<16x128xf32> to vector<16x128xbf16>
    %c384 = arith.constant 384 : index
    %c0_26 = arith.constant 0 : index
    %44 = vector.load %arg3[%c384, %c0_26] : memref<1152x128xbf16, #tpu.memory_space<vmem>>, vector<128x128xbf16>
    %cst_27 = arith.constant dense<0.000000e+00> : vector<16x128xf32>
    %45 = tpu.matmul %43, %44, %cst_27 {dimension_numbers = #tpu.dot_dimension_numbers<[1], [0], [0], [1], [0, 0, 1, 1], [], []>} : vector<16x128xbf16>, vector<128x128xbf16>, vector<16x128xf32> -> vector<16x128xf32>
    %46 = arith.addf %40, %45 : vector<16x128xf32>
    %c1 = arith.constant 1 : index
    %c0_28 = arith.constant 0 : index
    %47 = vector.load %arg4[%c1, %c0_28] : memref<440x128xf32, #tpu.memory_space<vmem>>, vector<1x128xf32>
    %48 = vector.broadcast %47 : vector<1x128xf32> to vector<16x128xf32>
    %49 = arith.addf %46, %48 : vector<16x128xf32>
    %cst_29 = arith.constant dense<0.000000e+00> : vector<128xf32>
    %50 = vector.multi_reduction <add>, %49, %cst_29 [0] : vector<16x128xf32> to vector<128xf32>
    %51 = vector.shape_cast %50 : vector<128xf32> to vector<1x128xf32>
    %cst_30 = arith.constant 1.600000e+01 : f32
    %52 = vector.broadcast %cst_30 : f32 to vector<1x128xf32>
    %53 = arith.divf %51, %52 : vector<1x128xf32>
    %cst_31 = arith.constant dense<0.000000e+00> : vector<1x128xf32>
    %54 = tpu.matmul %53, %0, %cst_31 {dimension_numbers = #tpu.dot_dimension_numbers<[1], [0], [0], [1], [0, 0, 1, 1], [], []>} : vector<1x128xf32>, vector<128x128xf32>, vector<1x128xf32> -> vector<1x128xf32>
    %55 = vector.broadcast %54 : vector<1x128xf32> to vector<16x128xf32>
    %56 = arith.subf %49, %55 : vector<16x128xf32>
    %57 = arith.mulf %56, %56 : vector<16x128xf32>
    %cst_32 = arith.constant dense<0.000000e+00> : vector<128xf32>
    %58 = vector.multi_reduction <add>, %57, %cst_32 [0] : vector<16x128xf32> to vector<128xf32>
    %59 = vector.shape_cast %58 : vector<128xf32> to vector<1x128xf32>
    %cst_33 = arith.constant 1.600000e+01 : f32
    %60 = vector.broadcast %cst_33 : f32 to vector<1x128xf32>
    %61 = arith.divf %59, %60 : vector<1x128xf32>
    %cst_34 = arith.constant dense<0.000000e+00> : vector<1x128xf32>
    %62 = tpu.matmul %61, %0, %cst_34 {dimension_numbers = #tpu.dot_dimension_numbers<[1], [0], [0], [1], [0, 0, 1, 1], [], []>} : vector<1x128xf32>, vector<128x128xf32>, vector<1x128xf32> -> vector<1x128xf32>
    %cst_35 = arith.constant 9.99999974E-6 : f32
    %63 = vector.broadcast %cst_35 : f32 to vector<1x128xf32>
    %64 = arith.addf %62, %63 : vector<1x128xf32>
    %65 = math.rsqrt %64 : vector<1x128xf32>
    %66 = vector.broadcast %65 : vector<1x128xf32> to vector<16x128xf32>
    %67 = arith.mulf %56, %66 : vector<16x128xf32>
    %cst_36 = arith.constant 0.000000e+00 : f32
    %68 = vector.broadcast %cst_36 : f32 to vector<16x128xf32>
    %69 = arith.maximumf %67, %68 : vector<16x128xf32>
    %70 = arith.truncf %69 : vector<16x128xf32> to vector<16x128xbf16>
    %c48 = arith.constant 48 : index
    %c0_37 = arith.constant 0 : index
    %71 = vector.load %arg1[%c48, %c0_37] : memref<144x16xbf16, #tpu.memory_space<vmem>>, vector<16x16xbf16>
    %cst_38 = arith.constant dense<0.000000e+00> : vector<16x128xf32>
    %72 = tpu.matmul %71, %70, %cst_38 {dimension_numbers = #tpu.dot_dimension_numbers<[1], [0], [0], [1], [0, 0, 1, 1], [], []>} : vector<16x16xbf16>, vector<16x128xbf16>, vector<16x128xf32> -> vector<16x128xf32>
    %73 = arith.truncf %72 : vector<16x128xf32> to vector<16x128xbf16>
    %c512 = arith.constant 512 : index
    %c0_39 = arith.constant 0 : index
    %74 = vector.load %arg3[%c512, %c0_39] : memref<1152x128xbf16, #tpu.memory_space<vmem>>, vector<128x64xbf16>
    %cst_40 = arith.constant dense<0.000000e+00> : vector<16x64xf32>
    %75 = tpu.matmul %73, %74, %cst_40 {dimension_numbers = #tpu.dot_dimension_numbers<[1], [0], [0], [1], [0, 0, 1, 1], [], []>} : vector<16x128xbf16>, vector<128x64xbf16>, vector<16x64xf32> -> vector<16x64xf32>
    %c64 = arith.constant 64 : index
    %c0_41 = arith.constant 0 : index
    %76 = vector.load %arg1[%c64, %c0_41] : memref<144x16xbf16, #tpu.memory_space<vmem>>, vector<16x16xbf16>
    %cst_42 = arith.constant dense<0.000000e+00> : vector<16x128xf32>
    %77 = tpu.matmul %76, %70, %cst_42 {dimension_numbers = #tpu.dot_dimension_numbers<[1], [0], [0], [1], [0, 0, 1, 1], [], []>} : vector<16x16xbf16>, vector<16x128xbf16>, vector<16x128xf32> -> vector<16x128xf32>
    %78 = arith.truncf %77 : vector<16x128xf32> to vector<16x128xbf16>
    %c640 = arith.constant 640 : index
    %c0_43 = arith.constant 0 : index
    %79 = vector.load %arg3[%c640, %c0_43] : memref<1152x128xbf16, #tpu.memory_space<vmem>>, vector<128x64xbf16>
    %cst_44 = arith.constant dense<0.000000e+00> : vector<16x64xf32>
    %80 = tpu.matmul %78, %79, %cst_44 {dimension_numbers = #tpu.dot_dimension_numbers<[1], [0], [0], [1], [0, 0, 1, 1], [], []>} : vector<16x128xbf16>, vector<128x64xbf16>, vector<16x64xf32> -> vector<16x64xf32>
    %81 = arith.addf %75, %80 : vector<16x64xf32>
    %c80 = arith.constant 80 : index
    %c0_45 = arith.constant 0 : index
    %82 = vector.load %arg1[%c80, %c0_45] : memref<144x16xbf16, #tpu.memory_space<vmem>>, vector<16x16xbf16>
    %cst_46 = arith.constant dense<0.000000e+00> : vector<16x128xf32>
    %83 = tpu.matmul %82, %70, %cst_46 {dimension_numbers = #tpu.dot_dimension_numbers<[1], [0], [0], [1], [0, 0, 1, 1], [], []>} : vector<16x16xbf16>, vector<16x128xbf16>, vector<16x128xf32> -> vector<16x128xf32>
    %84 = arith.truncf %83 : vector<16x128xf32> to vector<16x128xbf16>
    %c768 = arith.constant 768 : index
    %c0_47 = arith.constant 0 : index
    %85 = vector.load %arg3[%c768, %c0_47] : memref<1152x128xbf16, #tpu.memory_space<vmem>>, vector<128x64xbf16>
    %cst_48 = arith.constant dense<0.000000e+00> : vector<16x64xf32>
    %86 = tpu.matmul %84, %85, %cst_48 {dimension_numbers = #tpu.dot_dimension_numbers<[1], [0], [0], [1], [0, 0, 1, 1], [], []>} : vector<16x128xbf16>, vector<128x64xbf16>, vector<16x64xf32> -> vector<16x64xf32>
    %87 = arith.addf %81, %86 : vector<16x64xf32>
    %c96 = arith.constant 96 : index
    %c0_49 = arith.constant 0 : index
    %88 = vector.load %arg1[%c96, %c0_49] : memref<144x16xbf16, #tpu.memory_space<vmem>>, vector<16x16xbf16>
    %cst_50 = arith.constant dense<0.000000e+00> : vector<16x128xf32>
    %89 = tpu.matmul %88, %70, %cst_50 {dimension_numbers = #tpu.dot_dimension_numbers<[1], [0], [0], [1], [0, 0, 1, 1], [], []>} : vector<16x16xbf16>, vector<16x128xbf16>, vector<16x128xf32> -> vector<16x128xf32>
    %90 = arith.truncf %89 : vector<16x128xf32> to vector<16x128xbf16>
    %c896 = arith.constant 896 : index
    %c0_51 = arith.constant 0 : index
    %91 = vector.load %arg3[%c896, %c0_51] : memref<1152x128xbf16, #tpu.memory_space<vmem>>, vector<128x64xbf16>
    %cst_52 = arith.constant dense<0.000000e+00> : vector<16x64xf32>
    %92 = tpu.matmul %90, %91, %cst_52 {dimension_numbers = #tpu.dot_dimension_numbers<[1], [0], [0], [1], [0, 0, 1, 1], [], []>} : vector<16x128xbf16>, vector<128x64xbf16>, vector<16x64xf32> -> vector<16x64xf32>
    %93 = arith.addf %87, %92 : vector<16x64xf32>
    %c112 = arith.constant 112 : index
    %c0_53 = arith.constant 0 : index
    %94 = vector.load %arg1[%c112, %c0_53] : memref<144x16xbf16, #tpu.memory_space<vmem>>, vector<16x16xbf16>
    %cst_54 = arith.constant dense<0.000000e+00> : vector<16x128xf32>
    %95 = tpu.matmul %94, %70, %cst_54 {dimension_numbers = #tpu.dot_dimension_numbers<[1], [0], [0], [1], [0, 0, 1, 1], [], []>} : vector<16x16xbf16>, vector<16x128xbf16>, vector<16x128xf32> -> vector<16x128xf32>
    %96 = arith.truncf %95 : vector<16x128xf32> to vector<16x128xbf16>
    %c1024 = arith.constant 1024 : index
    %c0_55 = arith.constant 0 : index
    %97 = vector.load %arg3[%c1024, %c0_55] : memref<1152x128xbf16, #tpu.memory_space<vmem>>, vector<128x64xbf16>
    %cst_56 = arith.constant dense<0.000000e+00> : vector<16x64xf32>
    %98 = tpu.matmul %96, %97, %cst_56 {dimension_numbers = #tpu.dot_dimension_numbers<[1], [0], [0], [1], [0, 0, 1, 1], [], []>} : vector<16x128xbf16>, vector<128x64xbf16>, vector<16x64xf32> -> vector<16x64xf32>
    %99 = arith.addf %93, %98 : vector<16x64xf32>
    %c2 = arith.constant 2 : index
    %c0_57 = arith.constant 0 : index
    %100 = vector.load %arg4[%c2, %c0_57] : memref<440x128xf32, #tpu.memory_space<vmem>>, vector<1x64xf32>
    %101 = vector.broadcast %100 : vector<1x64xf32> to vector<16x64xf32>
    %102 = arith.addf %99, %101 : vector<16x64xf32>
    %cst_58 = arith.constant dense<0.000000e+00> : vector<64xf32>
    %103 = vector.multi_reduction <add>, %102, %cst_58 [0] : vector<16x64xf32> to vector<64xf32>
    %104 = vector.shape_cast %103 : vector<64xf32> to vector<1x64xf32>
    %cst_59 = arith.constant 1.600000e+01 : f32
    %105 = vector.broadcast %cst_59 : f32 to vector<1x64xf32>
    %106 = arith.divf %104, %105 : vector<1x64xf32>
    %cst_60 = arith.constant dense<0.000000e+00> : vector<1x64xf32>
    %107 = tpu.matmul %106, %1, %cst_60 {dimension_numbers = #tpu.dot_dimension_numbers<[1], [0], [0], [1], [0, 0, 1, 1], [], []>} : vector<1x64xf32>, vector<64x64xf32>, vector<1x64xf32> -> vector<1x64xf32>
    %108 = vector.broadcast %107 : vector<1x64xf32> to vector<16x64xf32>
    %109 = arith.subf %102, %108 : vector<16x64xf32>
    %110 = arith.mulf %109, %109 : vector<16x64xf32>
    %cst_61 = arith.constant dense<0.000000e+00> : vector<64xf32>
    %111 = vector.multi_reduction <add>, %110, %cst_61 [0] : vector<16x64xf32> to vector<64xf32>
    %112 = vector.shape_cast %111 : vector<64xf32> to vector<1x64xf32>
    %cst_62 = arith.constant 1.600000e+01 : f32
    %113 = vector.broadcast %cst_62 : f32 to vector<1x64xf32>
    %114 = arith.divf %112, %113 : vector<1x64xf32>
    %cst_63 = arith.constant dense<0.000000e+00> : vector<1x64xf32>
    %115 = tpu.matmul %114, %1, %cst_63 {dimension_numbers = #tpu.dot_dimension_numbers<[1], [0], [0], [1], [0, 0, 1, 1], [], []>} : vector<1x64xf32>, vector<64x64xf32>, vector<1x64xf32> -> vector<1x64xf32>
    %cst_64 = arith.constant 9.99999974E-6 : f32
    %116 = vector.broadcast %cst_64 : f32 to vector<1x64xf32>
    %117 = arith.addf %115, %116 : vector<1x64xf32>
    %118 = math.rsqrt %117 : vector<1x64xf32>
    %119 = vector.broadcast %118 : vector<1x64xf32> to vector<16x64xf32>
    %120 = arith.mulf %109, %119 : vector<16x64xf32>
    %cst_65 = arith.constant 0.000000e+00 : f32
    %121 = vector.broadcast %cst_65 : f32 to vector<16x64xf32>
    %122 = arith.maximumf %120, %121 : vector<16x64xf32>
    %c0_66 = arith.constant 0 : index
    %c0_67 = arith.constant 0 : index
    %123 = vector.load %arg2[%c0_66, %c0_67] : memref<8x48xf32, #tpu.memory_space<vmem>>, vector<2x4xf32>
    %c2_68 = arith.constant 2 : index
    %c0_69 = arith.constant 0 : index
    %124 = vector.load %arg2[%c2_68, %c0_69] : memref<8x48xf32, #tpu.memory_space<vmem>>, vector<2x4xf32>
    %c4 = arith.constant 4 : index
    %c0_70 = arith.constant 0 : index
    %125 = vector.load %arg2[%c4, %c0_70] : memref<8x48xf32, #tpu.memory_space<vmem>>, vector<1x48xf32>
    %c5 = arith.constant 5 : index
    %c0_71 = arith.constant 0 : index
    %126 = vector.load %arg2[%c5, %c0_71] : memref<8x48xf32, #tpu.memory_space<vmem>>, vector<1x48xf32>
    %c6 = arith.constant 6 : index
    %c0_72 = arith.constant 0 : index
    %127 = vector.load %arg2[%c6, %c0_72] : memref<8x48xf32, #tpu.memory_space<vmem>>, vector<2x48xf32>
    %c16_73 = arith.constant 16 : index
    %c0_74 = arith.constant 0 : index
    %128 = vector.load %arg4[%c16_73, %c0_74] : memref<440x128xf32, #tpu.memory_space<vmem>>, vector<4x4xf32>
    %cst_75 = arith.constant dense<0.000000e+00> : vector<2x4xf32>
    %129 = tpu.matmul %123, %128, %cst_75 {dimension_numbers = #tpu.dot_dimension_numbers<[1], [0], [0], [1], [0, 0, 1, 1], [], []>} : vector<2x4xf32>, vector<4x4xf32>, vector<2x4xf32> -> vector<2x4xf32>
    %c4_76 = arith.constant 4 : index
    %c0_77 = arith.constant 0 : index
    %130 = vector.load %arg4[%c4_76, %c0_77] : memref<440x128xf32, #tpu.memory_space<vmem>>, vector<1x4xf32>
    %131 = vector.broadcast %130 : vector<1x4xf32> to vector<2x4xf32>
    %132 = arith.addf %129, %131 : vector<2x4xf32>
    %cst_78 = arith.constant 0.000000e+00 : f32
    %133 = vector.broadcast %cst_78 : f32 to vector<2x4xf32>
    %134 = arith.maximumf %132, %133 : vector<2x4xf32>
    %c20 = arith.constant 20 : index
    %c0_79 = arith.constant 0 : index
    %135 = vector.load %arg4[%c20, %c0_79] : memref<440x128xf32, #tpu.memory_space<vmem>>, vector<4x4xf32>
    %cst_80 = arith.constant dense<0.000000e+00> : vector<2x4xf32>
    %136 = tpu.matmul %124, %135, %cst_80 {dimension_numbers = #tpu.dot_dimension_numbers<[1], [0], [0], [1], [0, 0, 1, 1], [], []>} : vector<2x4xf32>, vector<4x4xf32>, vector<2x4xf32> -> vector<2x4xf32>
    %c5_81 = arith.constant 5 : index
    %c0_82 = arith.constant 0 : index
    %137 = vector.load %arg4[%c5_81, %c0_82] : memref<440x128xf32, #tpu.memory_space<vmem>>, vector<1x4xf32>
    %138 = vector.broadcast %137 : vector<1x4xf32> to vector<2x4xf32>
    %139 = arith.addf %136, %138 : vector<2x4xf32>
    %cst_83 = arith.constant 0.000000e+00 : f32
    %140 = vector.broadcast %cst_83 : f32 to vector<2x4xf32>
    %141 = arith.maximumf %139, %140 : vector<2x4xf32>
    %c24 = arith.constant 24 : index
    %c0_84 = arith.constant 0 : index
    %142 = vector.load %arg4[%c24, %c0_84] : memref<440x128xf32, #tpu.memory_space<vmem>>, vector<48x48xf32>
    %cst_85 = arith.constant dense<0.000000e+00> : vector<1x48xf32>
    %143 = tpu.matmul %125, %142, %cst_85 {dimension_numbers = #tpu.dot_dimension_numbers<[1], [0], [0], [1], [0, 0, 1, 1], [], []>} : vector<1x48xf32>, vector<48x48xf32>, vector<1x48xf32> -> vector<1x48xf32>
    %c6_86 = arith.constant 6 : index
    %c0_87 = arith.constant 0 : index
    %144 = vector.load %arg4[%c6_86, %c0_87] : memref<440x128xf32, #tpu.memory_space<vmem>>, vector<1x48xf32>
    %145 = arith.addf %143, %144 : vector<1x48xf32>
    %cst_88 = arith.constant 0.000000e+00 : f32
    %146 = vector.broadcast %cst_88 : f32 to vector<1x48xf32>
    %147 = arith.maximumf %145, %146 : vector<1x48xf32>
    %148 = vector.broadcast %147 : vector<1x48xf32> to vector<2x48xf32>
    %149 = arith.mulf %127, %148 : vector<2x48xf32>
    %c72 = arith.constant 72 : index
    %c0_89 = arith.constant 0 : index
    %150 = vector.load %arg4[%c72, %c0_89] : memref<440x128xf32, #tpu.memory_space<vmem>>, vector<48x48xf32>
    %cst_90 = arith.constant dense<0.000000e+00> : vector<1x48xf32>
    %151 = tpu.matmul %126, %150, %cst_90 {dimension_numbers = #tpu.dot_dimension_numbers<[1], [0], [0], [1], [0, 0, 1, 1], [], []>} : vector<1x48xf32>, vector<48x48xf32>, vector<1x48xf32> -> vector<1x48xf32>
    %c7 = arith.constant 7 : index
    %c0_91 = arith.constant 0 : index
    %152 = vector.load %arg4[%c7, %c0_91] : memref<440x128xf32, #tpu.memory_space<vmem>>, vector<1x48xf32>
    %153 = arith.addf %151, %152 : vector<1x48xf32>
    %cst_92 = arith.constant 0.000000e+00 : f32
    %154 = vector.broadcast %cst_92 : f32 to vector<1x48xf32>
    %155 = arith.maximumf %153, %154 : vector<1x48xf32>
    %cst_93 = arith.constant 0.000000e+00 : f32
    %156 = vector.broadcast %cst_93 : f32 to vector<2x624xf32>
    %c0_94 = arith.constant 0 : index
    %c0_95 = arith.constant 0 : index
    %157 = vector.load %arg9[%c0_94, %c0_95] : memref<2x624xf32, #tpu.memory_space<vmem>>, vector<2x624xf32>
    tpu.vector_store %arg9[%c0_94, %c0_95], %156 {strides = array<i32>} : memref<2x624xf32, #tpu.memory_space<vmem>>, vector<2x624xf32>,
    %158 = arith.truncf %122 : vector<16x64xf32> to vector<16x64xbf16>
    %c128_96 = arith.constant 128 : index
    %c0_97 = arith.constant 0 : index
    %159 = vector.load %arg1[%c128_96, %c0_97] : memref<144x16xbf16, #tpu.memory_space<vmem>>, vector<2x16xbf16>
    %cst_98 = arith.constant dense<0.000000e+00> : vector<2x64xf32>
    %160 = tpu.matmul %159, %158, %cst_98 {dimension_numbers = #tpu.dot_dimension_numbers<[1], [0], [0], [1], [0, 0, 1, 1], [], []>} : vector<2x16xbf16>, vector<16x64xbf16>, vector<2x64xf32> -> vector<2x64xf32>
    %c0_99 = arith.constant 0 : index
    %c0_100 = arith.constant 0 : index
    %161 = vector.load %arg9[%c0_99, %c0_100] : memref<2x624xf32, #tpu.memory_space<vmem>>, vector<2x64xf32>
    tpu.vector_store %arg9[%c0_99, %c0_100], %160 {strides = array<i32>} : memref<2x624xf32, #tpu.memory_space<vmem>>, vector<2x64xf32>,
    %c130 = arith.constant 130 : index
    %c0_101 = arith.constant 0 : index
    %162 = vector.load %arg1[%c130, %c0_101] : memref<144x16xbf16, #tpu.memory_space<vmem>>, vector<2x16xbf16>
    %cst_102 = arith.constant dense<0.000000e+00> : vector<2x64xf32>
    %163 = tpu.matmul %162, %158, %cst_102 {dimension_numbers = #tpu.dot_dimension_numbers<[1], [0], [0], [1], [0, 0, 1, 1], [], []>} : vector<2x16xbf16>, vector<16x64xbf16>, vector<2x64xf32> -> vector<2x64xf32>
    %c0_103 = arith.constant 0 : index
    %c64_104 = arith.constant 64 : index
    %164 = vector.load %arg9[%c0_103, %c64_104] : memref<2x624xf32, #tpu.memory_space<vmem>>, vector<2x64xf32>
    tpu.vector_store %arg9[%c0_103, %c64_104], %163 {strides = array<i32>} : memref<2x624xf32, #tpu.memory_space<vmem>>, vector<2x64xf32>,
    %c132 = arith.constant 132 : index
    %c0_105 = arith.constant 0 : index
    %165 = vector.load %arg1[%c132, %c0_105] : memref<144x16xbf16, #tpu.memory_space<vmem>>, vector<2x16xbf16>
    %cst_106 = arith.constant dense<0.000000e+00> : vector<2x64xf32>
    %166 = tpu.matmul %165, %158, %cst_106 {dimension_numbers = #tpu.dot_dimension_numbers<[1], [0], [0], [1], [0, 0, 1, 1], [], []>} : vector<2x16xbf16>, vector<16x64xbf16>, vector<2x64xf32> -> vector<2x64xf32>
    %c0_107 = arith.constant 0 : index
    %c128_108 = arith.constant 128 : index
    %167 = vector.load %arg9[%c0_107, %c128_108] : memref<2x624xf32, #tpu.memory_space<vmem>>, vector<2x64xf32>
    tpu.vector_store %arg9[%c0_107, %c128_108], %166 {strides = array<i32>} : memref<2x624xf32, #tpu.memory_space<vmem>>, vector<2x64xf32>,
    %c134 = arith.constant 134 : index
    %c0_109 = arith.constant 0 : index
    %168 = vector.load %arg1[%c134, %c0_109] : memref<144x16xbf16, #tpu.memory_space<vmem>>, vector<2x16xbf16>
    %cst_110 = arith.constant dense<0.000000e+00> : vector<2x64xf32>
    %169 = tpu.matmul %168, %158, %cst_110 {dimension_numbers = #tpu.dot_dimension_numbers<[1], [0], [0], [1], [0, 0, 1, 1], [], []>} : vector<2x16xbf16>, vector<16x64xbf16>, vector<2x64xf32> -> vector<2x64xf32>
    %c0_111 = arith.constant 0 : index
    %c192 = arith.constant 192 : index
    %170 = vector.load %arg9[%c0_111, %c192] : memref<2x624xf32, #tpu.memory_space<vmem>>, vector<2x64xf32>
    tpu.vector_store %arg9[%c0_111, %c192], %169 {strides = array<i32>} : memref<2x624xf32, #tpu.memory_space<vmem>>, vector<2x64xf32>,
    %c136 = arith.constant 136 : index
    %c0_112 = arith.constant 0 : index
    %171 = vector.load %arg1[%c136, %c0_112] : memref<144x16xbf16, #tpu.memory_space<vmem>>, vector<2x16xbf16>
    %cst_113 = arith.constant dense<0.000000e+00> : vector<2x64xf32>
    %172 = tpu.matmul %171, %158, %cst_113 {dimension_numbers = #tpu.dot_dimension_numbers<[1], [0], [0], [1], [0, 0, 1, 1], [], []>} : vector<2x16xbf16>, vector<16x64xbf16>, vector<2x64xf32> -> vector<2x64xf32>
    %c0_114 = arith.constant 0 : index
    %c256_115 = arith.constant 256 : index
    %173 = vector.load %arg9[%c0_114, %c256_115] : memref<2x624xf32, #tpu.memory_space<vmem>>, vector<2x64xf32>
    tpu.vector_store %arg9[%c0_114, %c256_115], %172 {strides = array<i32>} : memref<2x624xf32, #tpu.memory_space<vmem>>, vector<2x64xf32>,
    %c138 = arith.constant 138 : index
    %c0_116 = arith.constant 0 : index
    %174 = vector.load %arg1[%c138, %c0_116] : memref<144x16xbf16, #tpu.memory_space<vmem>>, vector<2x16xbf16>
    %cst_117 = arith.constant dense<0.000000e+00> : vector<2x64xf32>
    %175 = tpu.matmul %174, %158, %cst_117 {dimension_numbers = #tpu.dot_dimension_numbers<[1], [0], [0], [1], [0, 0, 1, 1], [], []>} : vector<2x16xbf16>, vector<16x64xbf16>, vector<2x64xf32> -> vector<2x64xf32>
    %c0_118 = arith.constant 0 : index
    %c320 = arith.constant 320 : index
    %176 = vector.load %arg9[%c0_118, %c320] : memref<2x624xf32, #tpu.memory_space<vmem>>, vector<2x64xf32>
    tpu.vector_store %arg9[%c0_118, %c320], %175 {strides = array<i32>} : memref<2x624xf32, #tpu.memory_space<vmem>>, vector<2x64xf32>,
    %c140 = arith.constant 140 : index
    %c0_119 = arith.constant 0 : index
    %177 = vector.load %arg1[%c140, %c0_119] : memref<144x16xbf16, #tpu.memory_space<vmem>>, vector<2x16xbf16>
    %cst_120 = arith.constant dense<0.000000e+00> : vector<2x64xf32>
    %178 = tpu.matmul %177, %158, %cst_120 {dimension_numbers = #tpu.dot_dimension_numbers<[1], [0], [0], [1], [0, 0, 1, 1], [], []>} : vector<2x16xbf16>, vector<16x64xbf16>, vector<2x64xf32> -> vector<2x64xf32>
    %c0_121 = arith.constant 0 : index
    %c384_122 = arith.constant 384 : index
    %179 = vector.load %arg9[%c0_121, %c384_122] : memref<2x624xf32, #tpu.memory_space<vmem>>, vector<2x64xf32>
    tpu.vector_store %arg9[%c0_121, %c384_122], %178 {strides = array<i32>} : memref<2x624xf32, #tpu.memory_space<vmem>>, vector<2x64xf32>,
    %c142 = arith.constant 142 : index
    %c0_123 = arith.constant 0 : index
    %180 = vector.load %arg1[%c142, %c0_123] : memref<144x16xbf16, #tpu.memory_space<vmem>>, vector<2x16xbf16>
    %cst_124 = arith.constant dense<0.000000e+00> : vector<2x64xf32>
    %181 = tpu.matmul %180, %158, %cst_124 {dimension_numbers = #tpu.dot_dimension_numbers<[1], [0], [0], [1], [0, 0, 1, 1], [], []>} : vector<2x16xbf16>, vector<16x64xbf16>, vector<2x64xf32> -> vector<2x64xf32>
    %c0_125 = arith.constant 0 : index
    %c448 = arith.constant 448 : index
    %182 = vector.load %arg9[%c0_125, %c448] : memref<2x624xf32, #tpu.memory_space<vmem>>, vector<2x64xf32>
    tpu.vector_store %arg9[%c0_125, %c448], %181 {strides = array<i32>} : memref<2x624xf32, #tpu.memory_space<vmem>>, vector<2x64xf32>,
    %c0_126 = arith.constant 0 : index
    %c512_127 = arith.constant 512 : index
    %183 = vector.load %arg9[%c0_126, %c512_127] : memref<2x624xf32, #tpu.memory_space<vmem>>, vector<2x4xf32>
    tpu.vector_store %arg9[%c0_126, %c512_127], %134 {strides = array<i32>} : memref<2x624xf32, #tpu.memory_space<vmem>>, vector<2x4xf32>,
    %c0_128 = arith.constant 0 : index
    %c516 = arith.constant 516 : index
    %184 = vector.load %arg9[%c0_128, %c516] : memref<2x624xf32, #tpu.memory_space<vmem>>, vector<2x4xf32>
    tpu.vector_store %arg9[%c0_128, %c516], %141 {strides = array<i32>} : memref<2x624xf32, #tpu.memory_space<vmem>>, vector<2x4xf32>,
    %c0_129 = arith.constant 0 : index
    %c520 = arith.constant 520 : index
    %185 = vector.load %arg9[%c0_129, %c520] : memref<2x624xf32, #tpu.memory_space<vmem>>, vector<2x48xf32>
    tpu.vector_store %arg9[%c0_129, %c520], %149 {strides = array<i32>} : memref<2x624xf32, #tpu.memory_space<vmem>>, vector<2x48xf32>,
    %186 = vector.shape_cast %155 : vector<1x48xf32> to vector<1x48xf32>
    %187 = vector.broadcast %186 : vector<1x48xf32> to vector<2x48xf32>
    %c0_130 = arith.constant 0 : index
    %c568 = arith.constant 568 : index
    %188 = vector.load %arg9[%c0_130, %c568] : memref<2x624xf32, #tpu.memory_space<vmem>>, vector<2x48xf32>
    tpu.vector_store %arg9[%c0_130, %c568], %187 {strides = array<i32>} : memref<2x624xf32, #tpu.memory_space<vmem>>, vector<2x48xf32>,
    tpu.wait_dma2 semaphore(%arg10 : memref<!tpu.dma_semaphore, #tpu.memory_space<semaphore_mem>>) src(%arg6 : memref<624x1792xbf16, #tpu.memory_space<any>>) dst(%arg8 : memref<624x1792xbf16, #tpu.memory_space<vmem>>)
    %c0_131 = arith.constant 0 : index
    %c0_132 = arith.constant 0 : index
    %189 = vector.load %arg9[%c0_131, %c0_132] : memref<2x624xf32, #tpu.memory_space<vmem>>, vector<2x624xf32>
    %190 = arith.truncf %189 : vector<2x624xf32> to vector<2x624xbf16>
    %c0_133 = arith.constant 0 : index
    %c0_134 = arith.constant 0 : index
    %191 = vector.load %arg8[%c0_133, %c0_134] : memref<624x1792xbf16, #tpu.memory_space<vmem>>, vector<624x1536xbf16>
    %cst_135 = arith.constant dense<0.000000e+00> : vector<2x1536xf32>
    %192 = tpu.matmul %190, %191, %cst_135 {dimension_numbers = #tpu.dot_dimension_numbers<[1], [0], [0], [1], [0, 0, 1, 1], [], []>} : vector<2x624xbf16>, vector<624x1536xbf16>, vector<2x1536xf32> -> vector<2x1536xf32>
    %c0_136 = arith.constant 0 : index
    %c0_137 = arith.constant 0 : index
    %193 = vector.load %arg5[%c0_136, %c0_137] : memref<1x1536xf32, #tpu.memory_space<vmem>>, vector<1x1536xf32>
    %194 = vector.broadcast %193 : vector<1x1536xf32> to vector<2x1536xf32>
    %195 = arith.addf %192, %194 : vector<2x1536xf32>
    %196 = vector.extract_strided_slice %195 {offsets = [0, 0], sizes = [2, 512], strides = [1, 1]} : vector<2x1536xf32> to vector<2x512xf32>
    %197 = arith.negf %196 : vector<2x512xf32>
    %198 = math.exp %197 : vector<2x512xf32>
    %cst_138 = arith.constant 1.000000e+00 : f32
    %199 = vector.broadcast %cst_138 : f32 to vector<2x512xf32>
    %200 = arith.addf %199, %198 : vector<2x512xf32>
    %201 = arith.divf %199, %200 : vector<2x512xf32>
    %202 = vector.extract_strided_slice %195 {offsets = [0, 512], sizes = [2, 512], strides = [1, 1]} : vector<2x1536xf32> to vector<2x512xf32>
    %203 = math.tanh %202 : vector<2x512xf32>
    %204 = vector.extract_strided_slice %195 {offsets = [0, 1024], sizes = [2, 512], strides = [1, 1]} : vector<2x1536xf32> to vector<2x512xf32>
    %205 = arith.negf %204 : vector<2x512xf32>
    %206 = math.exp %205 : vector<2x512xf32>
    %cst_139 = arith.constant 1.000000e+00 : f32
    %207 = vector.broadcast %cst_139 : f32 to vector<2x512xf32>
    %208 = arith.addf %207, %206 : vector<2x512xf32>
    %209 = arith.divf %207, %208 : vector<2x512xf32>
    %210 = arith.mulf %201, %203 : vector<2x512xf32>
    %211 = math.tanh %210 : vector<2x512xf32>
    %212 = arith.mulf %209, %211 : vector<2x512xf32>
    %cst_140 = arith.constant 0.000000e+00 : f32
    %213 = vector.broadcast %cst_140 : f32 to vector<2x512xf32>
    %214 = arith.maximumf %212, %213 : vector<2x512xf32>
    %215 = arith.truncf %214 : vector<2x512xf32> to vector<2x512xbf16>
    %c0_141 = arith.constant 0 : index
    %c1664 = arith.constant 1664 : index
    %216 = vector.load %arg8[%c0_141, %c1664] : memref<624x1792xbf16, #tpu.memory_space<vmem>>, vector<512x48xbf16>
    %cst_142 = arith.constant dense<0.000000e+00> : vector<2x48xf32>
    %217 = tpu.matmul %215, %216, %cst_142 {dimension_numbers = #tpu.dot_dimension_numbers<[1], [0], [0], [1], [0, 0, 1, 1], [], []>} : vector<2x512xbf16>, vector<512x48xbf16>, vector<2x48xf32> -> vector<2x48xf32>
    %c9 = arith.constant 9 : index
    %c0_143 = arith.constant 0 : index
    %218 = vector.load %arg4[%c9, %c0_143] : memref<440x128xf32, #tpu.memory_space<vmem>>, vector<1x48xf32>
    %219 = vector.broadcast %218 : vector<1x48xf32> to vector<2x48xf32>
    %220 = arith.addf %217, %219 : vector<2x48xf32>
    %c0_144 = arith.constant 0 : index
    %c1536 = arith.constant 1536 : index
    %221 = vector.load %arg8[%c0_144, %c1536] : memref<624x1792xbf16, #tpu.memory_space<vmem>>, vector<512x128xbf16>
    %cst_145 = arith.constant dense<0.000000e+00> : vector<2x128xf32>
    %222 = tpu.matmul %215, %221, %cst_145 {dimension_numbers = #tpu.dot_dimension_numbers<[1], [0], [0], [1], [0, 0, 1, 1], [], []>} : vector<2x512xbf16>, vector<512x128xbf16>, vector<2x128xf32> -> vector<2x128xf32>
    %c3 = arith.constant 3 : index
    %c0_146 = arith.constant 0 : index
    %223 = vector.load %arg4[%c3, %c0_146] : memref<440x128xf32, #tpu.memory_space<vmem>>, vector<1x128xf32>
    %224 = vector.broadcast %223 : vector<1x128xf32> to vector<2x128xf32>
    %225 = arith.addf %222, %224 : vector<2x128xf32>
    %cst_147 = arith.constant 0.000000e+00 : f32
    %226 = vector.broadcast %cst_147 : f32 to vector<2x128xf32>
    %227 = arith.maximumf %225, %226 : vector<2x128xf32>
    %c120 = arith.constant 120 : index
    %c0_148 = arith.constant 0 : index
    %228 = vector.load %arg4[%c120, %c0_148] : memref<440x128xf32, #tpu.memory_space<vmem>>, vector<128x8xf32>
    %cst_149 = arith.constant dense<0.000000e+00> : vector<2x8xf32>
    %229 = tpu.matmul %227, %228, %cst_149 {dimension_numbers = #tpu.dot_dimension_numbers<[1], [0], [0], [1], [0, 0, 1, 1], [], []>} : vector<2x128xf32>, vector<128x8xf32>, vector<2x8xf32> -> vector<2x8xf32>
    %c8 = arith.constant 8 : index
    %c0_150 = arith.constant 0 : index
    %230 = vector.load %arg4[%c8, %c0_150] : memref<440x128xf32, #tpu.memory_space<vmem>>, vector<1x8xf32>
    %231 = vector.broadcast %230 : vector<1x8xf32> to vector<2x8xf32>
    %232 = arith.addf %229, %231 : vector<2x8xf32>
    %cst_151 = arith.constant 0.000000e+00 : f32
    %233 = vector.broadcast %cst_151 : f32 to vector<2x128xf32>
    %c0_152 = arith.constant 0 : index
    %c0_153 = arith.constant 0 : index
    %234 = vector.load %arg7[%c0_152, %c0_153] : memref<2x128xf32, #tpu.memory_space<vmem>>, vector<2x128xf32>
    tpu.vector_store %arg7[%c0_152, %c0_153], %233 {strides = array<i32>} : memref<2x128xf32, #tpu.memory_space<vmem>>, vector<2x128xf32>,
    %c0_154 = arith.constant 0 : index
    %c0_155 = arith.constant 0 : index
    %235 = vector.load %arg7[%c0_154, %c0_155] : memref<2x128xf32, #tpu.memory_space<vmem>>, vector<2x8xf32>
    tpu.vector_store %arg7[%c0_154, %c0_155], %232 {strides = array<i32>} : memref<2x128xf32, #tpu.memory_space<vmem>>, vector<2x8xf32>,
    %c0_156 = arith.constant 0 : index
    %c8_157 = arith.constant 8 : index
    %236 = vector.load %arg7[%c0_156, %c8_157] : memref<2x128xf32, #tpu.memory_space<vmem>>, vector<2x48xf32>
    tpu.vector_store %arg7[%c0_156, %c8_157], %220 {strides = array<i32>} : memref<2x128xf32, #tpu.memory_space<vmem>>, vector<2x48xf32>,
    return
  }
}

</mosaic_0001>

<llo_original>
// kernel: action_values_forward.1
$region0: #{action_values_forward.1}
  #allocation0 [shape = 'u32[]', space=smem, size = 0x4, offset = 0x4, fixed_abs, tag = 'smem constant byte address 0x4 - core index']
  #allocation1 [shape = 'u32[72,128]{1,0:T(1,128)}', space=vmem, size = 0x9000, scoped, tag = 'internal scratch']
  #allocation2 [shape = 'bf16[624,1792]{1,0:T(8,128)(2,1)}', space=vmem, size = 0x222000, scoped, tag = 'scratch operand']
  #allocation3 [shape = 'f32[2,624]{1,0:T(2,128)}', space=vmem, size = 0x1400, scoped, tag = 'scratch operand']
  #allocation4 [shape = 's32[1]{0}', space=sflag, size = 0x4, scoped, tag = 'scratch operand']
  #allocation12 [shape = 's32[]', space=sflag, size = 0x4, offset = 0, fixed_abs, tag = 'sflag constant byte address 0x0 - dummy sync flag']
  #allocation13 [shape = 's32[]', space=sflag, size = 0x4, offset = 0, fixed_abs, tag = 'sflag constant byte address 0x0 - dummy sync flag']
  #allocation14 [shape = 'u32[]', space=smem, size = 0x4, offset = 0x44, fixed_abs, tag = 'smem constant byte address 0x44 - assertion arg 0']
  #allocation15 [shape = 'u32[]', space=smem, size = 0x4, offset = 0x48, fixed_abs, tag = 'smem constant byte address 0x48 - assertion arg 1']
  %s0 = inlined_call_operand.vmem [shape: f32[16,128], index: 0, kind: input, shape index: {}]
  %s1 = inlined_call_operand.hbm [shape: bf16[144,16], index: 1, kind: input, shape index: {}]
  %s2 = inlined_call_operand.vmem [shape: f32[8,48], index: 2, kind: input, shape index: {}]
  %s3 = inlined_call_operand.hbm [shape: bf16[1152,128], index: 3, kind: input, shape index: {}]
  %s4 = inlined_call_operand.hbm [shape: f32[440,128], index: 4, kind: input, shape index: {}]
  %s5 = inlined_call_operand.hbm [shape: f32[1,1536], index: 5, kind: input, shape index: {}]
  %s6 = inlined_call_operand.hbm [shape: bf16[624,1792], index: 6, kind: input, shape index: {}]
  %s7 = inlined_call_operand.vmem [shape: f32[2,128], index: 7, kind: output, shape index: {}]
  %s8 = sld [smem:[#allocation0]]
  $region54: #{action_values_forward.1} parent=0
    _
  %s10 = ssub.s32 1, %s8
  %s11 = scalar_select 0, %s10, %s8
  $region1: #{action_values_forward.1} parent=0
    #allocation5 [shape = 'u8[36864]{0}', space=vmem, size = 0x9000, scoped, tag = 'input window, operand 1, single buffered']
    #allocation6 [shape = 's32[1]{0}', space=sflag, size = 0x4, scoped, tag = 'scoped memory for action_values_forward.1']
    #allocation7 [shape = 'u8[294912]{0}', space=vmem, size = 0x48000, scoped, tag = 'input window, operand 3, single buffered']
    #allocation8 [shape = 's32[1]{0}', space=sflag, size = 0x4, scoped, tag = 'scoped memory for action_values_forward.1']
    #allocation9 [shape = 'u8[225280]{0}', space=vmem, size = 0x37000, scoped, tag = 'input window, operand 4, single buffered']
    #allocation10 [shape = 'u8[6144]{0}', space=vmem, size = 0x1800, scoped, tag = 'input window, operand 5, single buffered']
    #allocation11 [shape = 's32[1]{0}', space=sflag, size = 0x4, scoped, tag = 'scoped memory for action_values_forward.1']
    %12 = vsyncpa [#allocation6], 0
    %13 = vsyncpa [#allocation8], 0
    %14 = vsyncpa [#allocation11], 0
    // Predicated region
    $region2: #{action_values_forward.1} parent=1 // pred_check
      _
    $region3: #{action_values_forward.1} parent=1 // pred_check_branch
      %16 = sbr.rel (0) target = $region5
    $region4: #{action_values_forward.1} parent=1 // pred_region
      _
    $region5: #{action_values_forward.1} parent=1 // pred_fallthru
      _
    // Predicated region
    $region6: #{action_values_forward.1} parent=1 // pred_check
      _
    $region7: #{action_values_forward.1} parent=1 // pred_check_branch
      %18 = sbr.rel (0) target = $region9
    $region8: #{action_values_forward.1} parent=1 // pred_region
      %20 = vsyncadd [#allocation6], 0
      %s21 = sshll.u32 %s1, 4
      %s22 = int_to_ptr.hbm [resolvable:$true] %s21
      %s23 = sshll.u32 [#allocation5], 4
      %s24 = int_to_ptr.vmem [resolvable:$true] %s23
      %29 = dma.hbm_to_vmem [thread:$0]  %s22, 1152, %s24, [#allocation6], 64, 64, 4
    $region9: #{action_values_forward.1} parent=1 // pred_fallthru
      _
    // Predicated region
    $region10: #{action_values_forward.1} parent=1 // pred_check
      _
    $region11: #{action_values_forward.1} parent=1 // pred_check_branch
      %31 = sbr.rel (0) target = $region13
    $region12: #{action_values_forward.1} parent=1 // pred_region
      _
    $region13: #{action_values_forward.1} parent=1 // pred_fallthru
      _
    // Predicated region
    $region14: #{action_values_forward.1} parent=1 // pred_check
      _
    $region15: #{action_values_forward.1} parent=1 // pred_check_branch
      %33 = sbr.rel (0) target = $region17
    $region16: #{action_values_forward.1} parent=1 // pred_region
      %35 = vsyncadd [#allocation8], 0
      %s36 = sshll.u32 %s3, 4
      %s37 = int_to_ptr.hbm [resolvable:$true] %s36
      %s38 = sshll.u32 [#allocation7], 4
      %s39 = int_to_ptr.vmem [resolvable:$true] %s38
      %44 = dma.hbm_to_vmem [thread:$0]  %s37, 9216, %s39, [#allocation8], 64, 64, 4
    $region17: #{action_values_forward.1} parent=1 // pred_fallthru
      _
    // Predicated region
    $region18: #{action_values_forward.1} parent=1 // pred_check
      _
    $region19: #{action_values_forward.1} parent=1 // pred_check_branch
      %46 = sbr.rel (0) target = $region21
    $region20: #{action_values_forward.1} parent=1 // pred_region
      %48 = vsyncadd [#allocation8], 0
      %s49 = sshll.u32 %s4, 4
      %s50 = int_to_ptr.hbm [resolvable:$true] %s49
      %s51 = sshll.u32 [#allocation9], 4
      %s52 = int_to_ptr.vmem [resolvable:$true] %s51
      %57 = dma.hbm_to_vmem [thread:$0]  %s50, 7040, %s52, [#allocation8], 128, 128, 8
    $region21: #{action_values_forward.1} parent=1 // pred_fallthru
      _
    // Predicated region
    $region22: #{action_values_forward.1} parent=1 // pred_check
      _
    $region23: #{action_values_forward.1} parent=1 // pred_check_branch
      %59 = sbr.rel (0) target = $region25
    $region24: #{action_values_forward.1} parent=1 // pred_region
      %61 = vsyncadd [#allocation11], 0
      %s63 = sshll.u32 %s5, 4
      %s64 = int_to_ptr.hbm [resolvable:$true] %s63
      %s65 = sshll.u32 [#allocation10], 4
      %s66 = int_to_ptr.vmem [resolvable:$true] %s65
      %68 = dma.hbm_to_vmem [thread:$0]  %s64, 192, %s66, [#allocation11]
    $region25: #{action_values_forward.1} parent=1 // pred_fallthru
      _
    // Predicated region
    $region26: #{action_values_forward.1} parent=1 // pred_check
      _
    $region27: #{action_values_forward.1} parent=1 // pred_check_branch
      %70 = sbr.rel (0) target = $region29
    $region28: #{action_values_forward.1} parent=1 // pred_region
      %72 = dma.done [#allocation6], 1152
    $region29: #{action_values_forward.1} parent=1 // pred_fallthru
      _
    // Predicated region
    $region30: #{action_values_forward.1} parent=1 // pred_check
      _
    $region31: #{action_values_forward.1} parent=1 // pred_check_branch
      %74 = sbr.rel (0) target = $region33
    $region32: #{action_values_forward.1} parent=1 // pred_region
      %76 = dma.done [#allocation8], 9216
    $region33: #{action_values_forward.1} parent=1 // pred_fallthru
      _
    // Predicated region
    $region34: #{action_values_forward.1} parent=1 // pred_check
      _
    $region35: #{action_values_forward.1} parent=1 // pred_check_branch
      %78 = sbr.rel (0) target = $region37
    $region36: #{action_values_forward.1} parent=1 // pred_region
      %80 = dma.done [#allocation8], 7040
    $region37: #{action_values_forward.1} parent=1 // pred_fallthru
      _
    // Predicated region
    $region38: #{action_values_forward.1} parent=1 // pred_check
      _
    $region39: #{action_values_forward.1} parent=1 // pred_check_branch
      %82 = sbr.rel (0) target = $region41
    $region40: #{action_values_forward.1} parent=1 // pred_region
      %84 = dma.done [#allocation11], 192
    $region41: #{action_values_forward.1} parent=1 // pred_fallthru
      _
    // Predicated region
    $region42: #{action_values_forward.1} parent=1 // pred_check
      _
    $region43: #{action_values_forward.1} parent=1 // pred_check_branch
      %87 = sbr.rel target = $region45
    $region44: #{action_values_forward.1} parent=1 // pred_region
      %88 = sst [smem:[#allocation14]] [#allocation13]
      %89 = sst [smem:[#allocation15]] [#allocation12]
    $region45: #{action_values_forward.1} parent=1 // pred_fallthru
      _
    %91 = shalt.err (0)
    %s93 = sshll.u32 %s6, 4
    %s94 = int_to_ptr.hbm [resolvable:$true] %s93
    %s95 = sshll.u32 [#allocation2], 4
    %s96 = int_to_ptr.vmem [resolvable:$true] %s95
    %98 = dma.hbm_to_vmem [thread:$0]  %s94, 69888, %s96, [#allocation4]
    %v99 = vld [vmem:[#allocation9 + $0xf8] sm:$0xff]
    %v100 = vld [vmem:[#allocation9 + $0x100] sm:$0xff]
    %v101 = vld [vmem:[#allocation9 + $0x108] sm:$0xff]
    %v102 = vld [vmem:[#allocation9 + $0x110] sm:$0xff]
    %v103 = vld [vmem:[#allocation9 + $0x118] sm:$0xff]
    %v104 = vld [vmem:[#allocation9 + $0x120] sm:$0xff]
    %v105 = vld [vmem:[#allocation9 + $0x128] sm:$0xff]
    %v106 = vld [vmem:[#allocation9 + $0x130] sm:$0xff]
    %v107 = vld [vmem:[#allocation9 + $0x138] sm:$0xff]
    %v108 = vld [vmem:[#allocation9 + $0x140] sm:$0xff]
    %v109 = vld [vmem:[#allocation9 + $0x148] sm:$0xff]
    %v110 = vld [vmem:[#allocation9 + $0x150] sm:$0xff]
    %v111 = vld [vmem:[#allocation9 + $0x158] sm:$0xff]
    %v112 = vld [vmem:[#allocation9 + $0x160] sm:$0xff]
    %v113 = vld [vmem:[#allocation9 + $0x168] sm:$0xff]
    %v114 = vld [vmem:[#allocation9 + $0x170] sm:$0xff]
    %v115 = vld [vmem:[#allocation9 + $0x178] sm:$0xff]
    %v116 = vld [vmem:[#allocation9 + $0x180] sm:$0xff]
    %v117 = vld [vmem:[#allocation9 + $0x188] sm:$0xff]
    %v118 = vld [vmem:[#allocation9 + $0x190] sm:$0xff]
    %v119 = vld [vmem:[#allocation9 + $0x198] sm:$0xff]
    %v120 = vld [vmem:[#allocation9 + $0x1a0] sm:$0xff]
    %v121 = vld [vmem:[#allocation9 + $0x1a8] sm:$0xff]
    %v122 = vld [vmem:[#allocation9 + $0x1b0] sm:$0xff]
    %v123 = vld [vmem:[%s0] sm:$0xff]
    %v124 = vld [vmem:[%s0 + $0x8] sm:$0xff]
    %v125 = vpack.c.bf16 %v124, %v123
    %v126 = vld [vmem:[#allocation7] sm:$0xf]
    %v127 = vld [vmem:[#allocation7 + $0x4] sm:$0xf]
    %v128 = vld [vmem:[#allocation7 + $0x8] sm:$0xf]
    %v129 = vld [vmem:[#allocation7 + $0xc] sm:$0xf]
    %v130 = vld [vmem:[#allocation7 + $0x10] sm:$0xf]
    %v131 = vld [vmem:[#allocation7 + $0x14] sm:$0xf]
    %v132 = vld [vmem:[#allocation7 + $0x18] sm:$0xf]
    %v133 = vld [vmem:[#allocation7 + $0x1c] sm:$0xf]
    %v134 = vld [vmem:[#allocation7 + $0x20] sm:$0xf]
    %v135 = vld [vmem:[#allocation7 + $0x24] sm:$0xf]
    %v136 = vld [vmem:[#allocation7 + $0x28] sm:$0xf]
    %v137 = vld [vmem:[#allocation7 + $0x2c] sm:$0xf]
    %v138 = vld [vmem:[#allocation7 + $0x30] sm:$0xf]
    %v139 = vld [vmem:[#allocation7 + $0x34] sm:$0xf]
    %v140 = vld [vmem:[#allocation7 + $0x38] sm:$0xf]
    %v141 = vld [vmem:[#allocation7 + $0x3c] sm:$0xf]
    %v142 = vld [vmem:[#allocation9] sm:$0x1]
    %v143 = vperm.slane %v142, 0
    %v160 = vunpack.c.l.b16 %v126
    %v161 = vunpack.c.l.b16 %v127
    %v162 = vunpack.c.l.b16 %v128
    %v163 = vunpack.c.l.b16 %v129
    %v164 = vunpack.c.l.b16 %v130
    %v165 = vunpack.c.l.b16 %v131
    %v166 = vunpack.c.l.b16 %v132
    %v167 = vunpack.c.l.b16 %v133
    %v168 = vunpack.c.l.b16 %v134
    %v169 = vunpack.c.l.b16 %v135
    %v170 = vunpack.c.l.b16 %v136
    %v171 = vunpack.c.l.b16 %v137
    %v172 = vunpack.c.l.b16 %v138
    %v173 = vunpack.c.l.b16 %v139
    %v174 = vunpack.c.l.b16 %v140
    %v175 = vunpack.c.l.b16 %v141
    %v176 = vpack.c.b16 %v161, %v160
    %v177 = vpack.c.b16 %v163, %v162
    %v178 = vpack.c.b16 %v165, %v164
    %v179 = vpack.c.b16 %v167, %v166
    %v180 = vpack.c.b16 %v169, %v168
    %v181 = vpack.c.b16 %v171, %v170
    %v182 = vpack.c.b16 %v173, %v172
    %v183 = vpack.c.b16 %v175, %v174
    %192 = vmatpush.bf16.msra.mxu0 %v183
    %193 = vmatpush.bf16.msra.mxu0 %v182
    %194 = vmatpush.bf16.msra.mxu0 %v181
    %195 = vmatpush.bf16.msra.mxu0 %v180
    %196 = vmatpush.bf16.msra.mxu0 %v179
    %197 = vmatpush.bf16.msra.mxu0 %v178
    %198 = vmatpush.bf16.msra.mxu0 %v177
    %199 = vmatpush.bf16.msra.mxu0 %v176
    %200 = vmatmul.bf16.gmra.mxu0 %v125
    %v201 = vpop.f32.mrf.mxu0
    %v202 = vadd.f32 %v143, %v201
    %v203 = vpop.f32.mrf.mxu0
    %v204 = vadd.f32 %v143, %v203
    %205 = vdwg.mxu0
    %v206 = vadd.f32 %v202, %v204
    %v207 = vrot.slane %v206, 4
    %v208 = vadd.f32 %v206, %v207
    %v209 = vrot.slane %v208, 2
    %v210 = vadd.f32 %v208, %v209
    %v211 = vrot.slane %v210, 1
    %v212 = vadd.f32 %v210, %v211
    %v213 = vrcp.pop 16.0
    %v214 = vmul.f32 16.0, %v213
    %v215 = vsub.f32 1.0, %v214
    %v216 = vmul.f32 %v213, %v215
    %v217 = vadd.f32 %v213, %v216
    %vm218 = vweird.f32 %v213
    %v219 = vsel %vm218, %v213, %v217
    %v220 = vmul.f32 %v212, %v219
    %221 = vmatpush.msra.mxu0 %v114
    %222 = vmatpush.msra.mxu0 %v113
    %223 = vmatpush.msra.mxu0 %v112
    %224 = vmatpush.msra.mxu0 %v111
    %225 = vmatpush.msra.mxu0 %v110
    %226 = vmatpush.msra.mxu0 %v109
    %227 = vmatpush.msra.mxu0 %v108
    %228 = vmatpush.msra.mxu0 %v107
    %229 = vmatpush.msra.mxu0 %v106
    %230 = vmatpush.msra.mxu0 %v105
    %231 = vmatpush.msra.mxu0 %v104
    %232 = vmatpush.msra.mxu0 %v103
    %233 = vmatpush.msra.mxu0 %v102
    %234 = vmatpush.msra.mxu0 %v101
    %235 = vmatpush.msra.mxu0 %v100
    %236 = vmatpush.msra.mxu0 %v99
    %237 = vmatmul.f32.gmra.mxu0 %v220
    %v238 = vpop.f32.mrf.mxu0
    %v239 = vadd.f32 0.0, %v238
    %240 = vdwg.mxu0
    %v241 = vperm.slane %v239, 0
    %v242 = vsub.f32 %v202, %v241
    %v243 = vsub.f32 %v204, %v241
    %v244 = vmul.f32 %v242, %v242
    %v245 = vmul.f32 %v243, %v243
    %v246 = vadd.f32 %v244, %v245
    %v247 = vrot.slane %v246, 4
    %v248 = vadd.f32 %v246, %v247
    %v249 = vrot.slane %v248, 2
    %v250 = vadd.f32 %v248, %v249
    %v251 = vrot.slane %v250, 1
    %v252 = vadd.f32 %v250, %v251
    %v253 = vmul.f32 %v252, %v219
    %254 = vmatpush.msra.mxu0 %v114
    %255 = vmatpush.msra.mxu0 %v113
    %256 = vmatpush.msra.mxu0 %v112
    %257 = vmatpush.msra.mxu0 %v111
    %258 = vmatpush.msra.mxu0 %v110
    %259 = vmatpush.msra.mxu0 %v109
    %260 = vmatpush.msra.mxu0 %v108
    %261 = vmatpush.msra.mxu0 %v107
    %262 = vmatpush.msra.mxu0 %v106
    %263 = vmatpush.msra.mxu0 %v105
    %264 = vmatpush.msra.mxu0 %v104
    %265 = vmatpush.msra.mxu0 %v103
    %266 = vmatpush.msra.mxu0 %v102
    %267 = vmatpush.msra.mxu0 %v101
    %268 = vmatpush.msra.mxu0 %v100
    %269 = vmatpush.msra.mxu0 %v99
    %270 = vmatmul.f32.gmra.mxu0 %v253
    %v271 = vpop.f32.mrf.mxu0
    %v272 = vadd.f32 1e-05, %v271
    %273 = vdwg.mxu0
    %v274 = vrsqrt.pop %v272
    %v275 = vmul.f32 %v274, %v272
    %v276 = vmul.f32 %v275, %v274
    %v277 = vmul.f32 0.5, %v276
    %v278 = vsub.f32 1.5, %v277
    %v279 = vmul.f32 %v274, %v278
    %vm280 = vweird.f32 %v272
    %vm281 = vweird.f32 %v274
    %vm282 = vmor %vm280, %vm281
    %v283 = vsel %vm282, %v274, %v279
    %v284 = vperm.slane %v283, 0
    %v285 = vmul.f32 %v242, %v284
    %v286 = vmul.f32 %v243, %v284
    %v287 = vmax.f32 %v285, 0.0
    %v288 = vmax.f32 %v286, 0.0
    %v289 = vpack.c.bf16 %v288, %v287
    %v290 = vld [vmem:[#allocation5] sm:$0xf]
    %v291 = vld [vmem:[#allocation5 + $0x4] sm:$0xf]
    %v294 = vunpack.c.l.b16 %v290
    %v295 = vunpack.c.l.b16 %v291
    %v296 = vpack.c.b16 %v295, %v294
    %vm297 = vcmask 130048
    %v299 = vsel %vm297, %v296, 0
    %301 = vmatpush.bf16.msra.mxu0 0
    %302 = vmatpush.bf16.msra.mxu0 0
    %303 = vmatpush.bf16.msra.mxu0 0
    %304 = vmatpush.bf16.msra.mxu0 0
    %305 = vmatpush.bf16.msra.mxu0 0
    %306 = vmatpush.bf16.msra.mxu0 0
    %307 = vmatpush.bf16.msra.mxu0 0
    %308 = vmatpush.bf16.msra.mxu0 %v289
    %309 = vmatmul.bf16.gmra.mxu0 %v299
    %v310 = vpop.f32.mrf.mxu0
    %v311 = vadd.f32 0.0, %v310
    %v312 = vpop.f32.mrf.mxu0
    %v313 = vadd.f32 0.0, %v312
    %314 = vdwg.mxu0
    %v315 = vpack.c.bf16 %v313, %v311
    %v316 = vld [vmem:[#allocation7 + $0x40] sm:$0xf]
    %v317 = vld [vmem:[#allocation7 + $0x44] sm:$0xf]
    %v318 = vld [vmem:[#allocation7 + $0x48] sm:$0xf]
    %v319 = vld [vmem:[#allocation7 + $0x4c] sm:$0xf]
    %v320 = vld [vmem:[#allocation7 + $0x50] sm:$0xf]
    %v321 = vld [vmem:[#allocation7 + $0x54] sm:$0xf]
    %v322 = vld [vmem:[#allocation7 + $0x58] sm:$0xf]
    %v323 = vld [vmem:[#allocation7 + $0x5c] sm:$0xf]
    %v324 = vld [vmem:[#allocation7 + $0x60] sm:$0xf]
    %v325 = vld [vmem:[#allocation7 + $0x64] sm:$0xf]
    %v326 = vld [vmem:[#allocation7 + $0x68] sm:$0xf]
    %v327 = vld [vmem:[#allocation7 + $0x6c] sm:$0xf]
    %v328 = vld [vmem:[#allocation7 + $0x70] sm:$0xf]
    %v329 = vld [vmem:[#allocation7 + $0x74] sm:$0xf]
    %v330 = vld [vmem:[#allocation7 + $0x78] sm:$0xf]
    %v331 = vld [vmem:[#allocation7 + $0x7c] sm:$0xf]
    %v332 = vld [vmem:[#allocation5 + $0x8] sm:$0xf]
    %v333 = vld [vmem:[#allocation5 + $0xc] sm:$0xf]
    %v336 = vunpack.c.l.b16 %v332
    %v337 = vunpack.c.l.b16 %v333
    %v338 = vpack.c.b16 %v337, %v336
    %v340 = vsel %vm297, %v338, 0
    %342 = vmatpush.bf16.msra.mxu0 0
    %343 = vmatpush.bf16.msra.mxu0 0
    %344 = vmatpush.bf16.msra.mxu0 0
    %345 = vmatpush.bf16.msra.mxu0 0
    %346 = vmatpush.bf16.msra.mxu0 0
    %347 = vmatpush.bf16.msra.mxu0 0
    %348 = vmatpush.bf16.msra.mxu0 0
    %349 = vmatpush.bf16.msra.mxu0 %v289
    %350 = vmatmul.bf16.gmra.mxu0 %v340
    %v351 = vpop.f32.mrf.mxu0
    %v352 = vadd.f32 0.0, %v351
    %v353 = vpop.f32.mrf.mxu0
    %v354 = vadd.f32 0.0, %v353
    %355 = vdwg.mxu0
    %v356 = vpack.c.bf16 %v354, %v352
    %v357 = vld [vmem:[#allocation7 + $0x80] sm:$0xf]
    %v358 = vld [vmem:[#allocation7 + $0x84] sm:$0xf]
    %v359 = vld [vmem:[#allocation7 + $0x88] sm:$0xf]
    %v360 = vld [vmem:[#allocation7 + $0x8c] sm:$0xf]
    %v361 = vld [vmem:[#allocation7 + $0x90] sm:$0xf]
    %v362 = vld [vmem:[#allocation7 + $0x94] sm:$0xf]
    %v363 = vld [vmem:[#allocation7 + $0x98] sm:$0xf]
    %v364 = vld [vmem:[#allocation7 + $0x9c] sm:$0xf]
    %v365 = vld [vmem:[#allocation7 + $0xa0] sm:$0xf]
    %v366 = vld [vmem:[#allocation7 + $0xa4] sm:$0xf]
    %v367 = vld [vmem:[#allocation7 + $0xa8] sm:$0xf]
    %v368 = vld [vmem:[#allocation7 + $0xac] sm:$0xf]
    %v369 = vld [vmem:[#allocation7 + $0xb0] sm:$0xf]
    %v370 = vld [vmem:[#allocation7 + $0xb4] sm:$0xf]
    %v371 = vld [vmem:[#allocation7 + $0xb8] sm:$0xf]
    %v372 = vld [vmem:[#allocation7 + $0xbc] sm:$0xf]
    %v389 = vunpack.c.l.b16 %v357
    %v390 = vunpack.c.l.b16 %v358
    %v391 = vunpack.c.l.b16 %v359
    %v392 = vunpack.c.l.b16 %v360
    %v393 = vunpack.c.l.b16 %v361
    %v394 = vunpack.c.l.b16 %v362
    %v395 = vunpack.c.l.b16 %v363
    %v396 = vunpack.c.l.b16 %v364
    %v397 = vunpack.c.l.b16 %v365
    %v398 = vunpack.c.l.b16 %v366
    %v399 = vunpack.c.l.b16 %v367
    %v400 = vunpack.c.l.b16 %v368
    %v401 = vunpack.c.l.b16 %v369
    %v402 = vunpack.c.l.b16 %v370
    %v403 = vunpack.c.l.b16 %v371
    %v404 = vunpack.c.l.b16 %v372
    %v405 = vpack.c.b16 %v390, %v389
    %v406 = vpack.c.b16 %v392, %v391
    %v407 = vpack.c.b16 %v394, %v393
    %v408 = vpack.c.b16 %v396, %v395
    %v409 = vpack.c.b16 %v398, %v397
    %v410 = vpack.c.b16 %v400, %v399
    %v411 = vpack.c.b16 %v402, %v401
    %v412 = vpack.c.b16 %v404, %v403
    %421 = vmatpush.bf16.msra.mxu0 %v412
    %422 = vmatpush.bf16.msra.mxu0 %v411
    %423 = vmatpush.bf16.msra.mxu0 %v410
    %424 = vmatpush.bf16.msra.mxu0 %v409
    %425 = vmatpush.bf16.msra.mxu0 %v408
    %426 = vmatpush.bf16.msra.mxu0 %v407
    %427 = vmatpush.bf16.msra.mxu0 %v406
    %428 = vmatpush.bf16.msra.mxu0 %v405
    %429 = vmatmul.bf16.gmra.mxu0 %v356
    %v430 = vpop.f32.mrf.mxu0
    %v431 = vadd.f32 0.0, %v430
    %v432 = vpop.f32.mrf.mxu0
    %v433 = vadd.f32 0.0, %v432
    %434 = vdwg.mxu0
    %v451 = vunpack.c.l.b16 %v316
    %v452 = vunpack.c.l.b16 %v317
    %v453 = vunpack.c.l.b16 %v318
    %v454 = vunpack.c.l.b16 %v319
    %v455 = vunpack.c.l.b16 %v320
    %v456 = vunpack.c.l.b16 %v321
    %v457 = vunpack.c.l.b16 %v322
    %v458 = vunpack.c.l.b16 %v323
    %v459 = vunpack.c.l.b16 %v324
    %v460 = vunpack.c.l.b16 %v325
    %v461 = vunpack.c.l.b16 %v326
    %v462 = vunpack.c.l.b16 %v327
    %v463 = vunpack.c.l.b16 %v328
    %v464 = vunpack.c.l.b16 %v329
    %v465 = vunpack.c.l.b16 %v330
    %v466 = vunpack.c.l.b16 %v331
    %v467 = vpack.c.b16 %v452, %v451
    %v468 = vpack.c.b16 %v454, %v453
    %v469 = vpack.c.b16 %v456, %v455
    %v470 = vpack.c.b16 %v458, %v457
    %v471 = vpack.c.b16 %v460, %v459
    %v472 = vpack.c.b16 %v462, %v461
    %v473 = vpack.c.b16 %v464, %v463
    %v474 = vpack.c.b16 %v466, %v465
    %483 = vmatpush.bf16.msra.mxu0 %v474
    %484 = vmatpush.bf16.msra.mxu0 %v473
    %485 = vmatpush.bf16.msra.mxu0 %v472
    %486 = vmatpush.bf16.msra.mxu0 %v471
    %487 = vmatpush.bf16.msra.mxu0 %v470
    %488 = vmatpush.bf16.msra.mxu0 %v469
    %489 = vmatpush.bf16.msra.mxu0 %v468
    %490 = vmatpush.bf16.msra.mxu0 %v467
    %491 = vmatmul.bf16.gmra.mxu0 %v315
    %v492 = vpop.f32.mrf.mxu0
    %v493 = vadd.f32 %v431, %v492
    %v494 = vpop.f32.mrf.mxu0
    %v495 = vadd.f32 %v433, %v494
    %496 = vdwg.mxu0
    %v497 = vld [vmem:[#allocation5 + $0x10] sm:$0xf]
    %v498 = vld [vmem:[#allocation5 + $0x14] sm:$0xf]
    %v501 = vunpack.c.l.b16 %v497
    %v502 = vunpack.c.l.b16 %v498
    %v503 = vpack.c.b16 %v502, %v501
    %v505 = vsel %vm297, %v503, 0
    %507 = vmatpush.bf16.msra.mxu0 0
    %508 = vmatpush.bf16.msra.mxu0 0
    %509 = vmatpush.bf16.msra.mxu0 0
    %510 = vmatpush.bf16.msra.mxu0 0
    %511 = vmatpush.bf16.msra.mxu0 0
    %512 = vmatpush.bf16.msra.mxu0 0
    %513 = vmatpush.bf16.msra.mxu0 0
    %514 = vmatpush.bf16.msra.mxu0 %v289
    %515 = vmatmul.bf16.gmra.mxu0 %v505
    %v516 = vpop.f32.mrf.mxu0
    %v517 = vadd.f32 0.0, %v516
    %v518 = vpop.f32.mrf.mxu0
    %v519 = vadd.f32 0.0, %v518
    %520 = vdwg.mxu0
    %v521 = vpack.c.bf16 %v519, %v517
    %v522 = vld [vmem:[#allocation7 + $0xc0] sm:$0xf]
    %v523 = vld [vmem:[#allocation7 + $0xc4] sm:$0xf]
    %v524 = vld [vmem:[#allocation7 + $0xc8] sm:$0xf]
    %v525 = vld [vmem:[#allocation7 + $0xcc] sm:$0xf]
    %v526 = vld [vmem:[#allocation7 + $0xd0] sm:$0xf]
    %v527 = vld [vmem:[#allocation7 + $0xd4] sm:$0xf]
    %v528 = vld [vmem:[#allocation7 + $0xd8] sm:$0xf]
    %v529 = vld [vmem:[#allocation7 + $0xdc] sm:$0xf]
    %v530 = vld [vmem:[#allocation7 + $0xe0] sm:$0xf]
    %v531 = vld [vmem:[#allocation7 + $0xe4] sm:$0xf]
    %v532 = vld [vmem:[#allocation7 + $0xe8] sm:$0xf]
    %v533 = vld [vmem:[#allocation7 + $0xec] sm:$0xf]
    %v534 = vld [vmem:[#allocation7 + $0xf0] sm:$0xf]
    %v535 = vld [vmem:[#allocation7 + $0xf4] sm:$0xf]
    %v536 = vld [vmem:[#allocation7 + $0xf8] sm:$0xf]
    %v537 = vld [vmem:[#allocation7 + $0xfc] sm:$0xf]
    %v554 = vunpack.c.l.b16 %v522
    %v555 = vunpack.c.l.b16 %v523
    %v556 = vunpack.c.l.b16 %v524
    %v557 = vunpack.c.l.b16 %v525
    %v558 = vunpack.c.l.b16 %v526
    %v559 = vunpack.c.l.b16 %v527
    %v560 = vunpack.c.l.b16 %v528
    %v561 = vunpack.c.l.b16 %v529
    %v562 = vunpack.c.l.b16 %v530
    %v563 = vunpack.c.l.b16 %v531
    %v564 = vunpack.c.l.b16 %v532
    %v565 = vunpack.c.l.b16 %v533
    %v566 = vunpack.c.l.b16 %v534
    %v567 = vunpack.c.l.b16 %v535
    %v568 = vunpack.c.l.b16 %v536
    %v569 = vunpack.c.l.b16 %v537
    %v570 = vpack.c.b16 %v555, %v554
    %v571 = vpack.c.b16 %v557, %v556
    %v572 = vpack.c.b16 %v559, %v558
    %v573 = vpack.c.b16 %v561, %v560
    %v574 = vpack.c.b16 %v563, %v562
    %v575 = vpack.c.b16 %v565, %v564
    %v576 = vpack.c.b16 %v567, %v566
    %v577 = vpack.c.b16 %v569, %v568
    %586 = vmatpush.bf16.msra.mxu0 %v577
    %587 = vmatpush.bf16.msra.mxu0 %v576
    %588 = vmatpush.bf16.msra.mxu0 %v575
    %589 = vmatpush.bf16.msra.mxu0 %v574
    %590 = vmatpush.bf16.msra.mxu0 %v573
    %591 = vmatpush.bf16.msra.mxu0 %v572
    %592 = vmatpush.bf16.msra.mxu0 %v571
    %593 = vmatpush.bf16.msra.mxu0 %v570
    %594 = vmatmul.bf16.gmra.mxu0 %v521
    %v595 = vpop.f32.mrf.mxu0
    %v596 = vadd.f32 0.0, %v595
    %v597 = vpop.f32.mrf.mxu0
    %v598 = vadd.f32 0.0, %v597
    %599 = vdwg.mxu0
    %v600 = vadd.f32 %v493, %v596
    %v601 = vadd.f32 %v495, %v598
    %v602 = vld [vmem:[#allocation9 + $0x1] sm:$0x1]
    %v603 = vperm.slane %v602, 0
    %v604 = vadd.f32 %v600, %v603
    %v605 = vadd.f32 %v601, %v603
    %v606 = vadd.f32 %v604, %v605
    %v607 = vrot.slane %v606, 4
    %v608 = vadd.f32 %v606, %v607
    %v609 = vrot.slane %v608, 2
    %v610 = vadd.f32 %v608, %v609
    %v611 = vrot.slane %v610, 1
    %v612 = vadd.f32 %v610, %v611
    %v613 = vmul.f32 %v612, %v219
    %614 = vmatpush.msra.mxu0 %v114
    %615 = vmatpush.msra.mxu0 %v113
    %616 = vmatpush.msra.mxu0 %v112
    %617 = vmatpush.msra.mxu0 %v111
    %618 = vmatpush.msra.mxu0 %v110
    %619 = vmatpush.msra.mxu0 %v109
    %620 = vmatpush.msra.mxu0 %v108
    %621 = vmatpush.msra.mxu0 %v107
    %622 = vmatpush.msra.mxu0 %v106
    %623 = vmatpush.msra.mxu0 %v105
    %624 = vmatpush.msra.mxu0 %v104
    %625 = vmatpush.msra.mxu0 %v103
    %626 = vmatpush.msra.mxu0 %v102
    %627 = vmatpush.msra.mxu0 %v101
    %628 = vmatpush.msra.mxu0 %v100
    %629 = vmatpush.msra.mxu0 %v99
    %630 = vmatmul.f32.gmra.mxu0 %v613
    %v631 = vpop.f32.mrf.mxu0
    %v632 = vadd.f32 0.0, %v631
    %633 = vdwg.mxu0
    %v634 = vperm.slane %v632, 0
    %v635 = vsub.f32 %v604, %v634
    %v636 = vsub.f32 %v605, %v634
    %v637 = vmul.f32 %v635, %v635
    %v638 = vmul.f32 %v636, %v636
    %v639 = vadd.f32 %v637, %v638
    %v640 = vrot.slane %v639, 4
    %v641 = vadd.f32 %v639, %v640
    %v642 = vrot.slane %v641, 2
    %v643 = vadd.f32 %v641, %v642
    %v644 = vrot.slane %v643, 1
    %v645 = vadd.f32 %v643, %v644
    %v646 = vmul.f32 %v645, %v219
    %647 = vmatpush.msra.mxu0 %v114
    %648 = vmatpush.msra.mxu0 %v113
    %649 = vmatpush.msra.mxu0 %v112
    %650 = vmatpush.msra.mxu0 %v111
    %651 = vmatpush.msra.mxu0 %v110
    %652 = vmatpush.msra.mxu0 %v109
    %653 = vmatpush.msra.mxu0 %v108
    %654 = vmatpush.msra.mxu0 %v107
    %655 = vmatpush.msra.mxu0 %v106
    %656 = vmatpush.msra.mxu0 %v105
    %657 = vmatpush.msra.mxu0 %v104
    %658 = vmatpush.msra.mxu0 %v103
    %659 = vmatpush.msra.mxu0 %v102
    %660 = vmatpush.msra.mxu0 %v101
    %661 = vmatpush.msra.mxu0 %v100
    %662 = vmatpush.msra.mxu0 %v99
    %663 = vmatmul.f32.gmra.mxu0 %v646
    %v664 = vpop.f32.mrf.mxu0
    %v665 = vadd.f32 1e-05, %v664
    %666 = vdwg.mxu0
    %v667 = vrsqrt.pop %v665
    %v668 = vmul.f32 %v667, %v665
    %v669 = vmul.f32 %v668, %v667
    %v670 = vmul.f32 0.5, %v669
    %v671 = vsub.f32 1.5, %v670
    %v672 = vmul.f32 %v667, %v671
    %vm673 = vweird.f32 %v665
    %vm674 = vweird.f32 %v667
    %vm675 = vmor %vm673, %vm674
    %v676 = vsel %vm675, %v667, %v672
    %v677 = vperm.slane %v676, 0
    %v678 = vmul.f32 %v635, %v677
    %v679 = vmul.f32 %v636, %v677
    %v680 = vmax.f32 %v678, 0.0
    %v681 = vmax.f32 %v679, 0.0
    %v682 = vpack.c.bf16 %v681, %v680
    %v683 = vld [vmem:[#allocation5 + $0x18] sm:$0xf]
    %v684 = vld [vmem:[#allocation5 + $0x1c] sm:$0xf]
    %v687 = vunpack.c.l.b16 %v683
    %v688 = vunpack.c.l.b16 %v684
    %v689 = vpack.c.b16 %v688, %v687
    %v691 = vsel %vm297, %v689, 0
    %693 = vmatpush.bf16.msra.mxu0 0
    %694 = vmatpush.bf16.msra.mxu0 0
    %695 = vmatpush.bf16.msra.mxu0 0
    %696 = vmatpush.bf16.msra.mxu0 0
    %697 = vmatpush.bf16.msra.mxu0 0
    %698 = vmatpush.bf16.msra.mxu0 0
    %699 = vmatpush.bf16.msra.mxu0 0
    %700 = vmatpush.bf16.msra.mxu0 %v682
    %701 = vmatmul.bf16.gmra.mxu0 %v691
    %v702 = vpop.f32.mrf.mxu0
    %v703 = vadd.f32 0.0, %v702
    %v704 = vpop.f32.mrf.mxu0
    %v705 = vadd.f32 0.0, %v704
    %706 = vdwg.mxu0
    %v707 = vpack.c.bf16 %v705, %v703
    %v708 = vld [vmem:[#allocation7 + $0x100] sm:$0xf]
    %v709 = vld [vmem:[#allocation7 + $0x104] sm:$0xf]
    %v710 = vld [vmem:[#allocation7 + $0x108] sm:$0xf]
    %v711 = vld [vmem:[#allocation7 + $0x10c] sm:$0xf]
    %v712 = vld [vmem:[#allocation7 + $0x110] sm:$0xf]
    %v713 = vld [vmem:[#allocation7 + $0x114] sm:$0xf]
    %v714 = vld [vmem:[#allocation7 + $0x118] sm:$0xf]
    %v715 = vld [vmem:[#allocation7 + $0x11c] sm:$0xf]
    %v716 = vld [vmem:[#allocation7 + $0x120] sm:$0xf]
    %v717 = vld [vmem:[#allocation7 + $0x124] sm:$0xf]
    %v718 = vld [vmem:[#allocation7 + $0x128] sm:$0xf]
    %v719 = vld [vmem:[#allocation7 + $0x12c] sm:$0xf]
    %v720 = vld [vmem:[#allocation7 + $0x130] sm:$0xf]
    %v721 = vld [vmem:[#allocation7 + $0x134] sm:$0xf]
    %v722 = vld [vmem:[#allocation7 + $0x138] sm:$0xf]
    %v723 = vld [vmem:[#allocation7 + $0x13c] sm:$0xf]
    %v724 = vld [vmem:[#allocation5 + $0x20] sm:$0xf]
    %v725 = vld [vmem:[#allocation5 + $0x24] sm:$0xf]
    %v728 = vunpack.c.l.b16 %v724
    %v729 = vunpack.c.l.b16 %v725
    %v730 = vpack.c.b16 %v729, %v728
    %v732 = vsel %vm297, %v730, 0
    %734 = vmatpush.bf16.msra.mxu0 0
    %735 = vmatpush.bf16.msra.mxu0 0
    %736 = vmatpush.bf16.msra.mxu0 0
    %737 = vmatpush.bf16.msra.mxu0 0
    %738 = vmatpush.bf16.msra.mxu0 0
    %739 = vmatpush.bf16.msra.mxu0 0
    %740 = vmatpush.bf16.msra.mxu0 0
    %741 = vmatpush.bf16.msra.mxu0 %v682
    %742 = vmatmul.bf16.gmra.mxu0 %v732
    %v743 = vpop.f32.mrf.mxu0
    %v744 = vadd.f32 0.0, %v743
    %v745 = vpop.f32.mrf.mxu0
    %v746 = vadd.f32 0.0, %v745
    %747 = vdwg.mxu0
    %v748 = vpack.c.bf16 %v746, %v744
    %v749 = vld [vmem:[#allocation7 + $0x140] sm:$0xf]
    %v750 = vld [vmem:[#allocation7 + $0x144] sm:$0xf]
    %v751 = vld [vmem:[#allocation7 + $0x148] sm:$0xf]
    %v752 = vld [vmem:[#allocation7 + $0x14c] sm:$0xf]
    %v753 = vld [vmem:[#allocation7 + $0x150] sm:$0xf]
    %v754 = vld [vmem:[#allocation7 + $0x154] sm:$0xf]
    %v755 = vld [vmem:[#allocation7 + $0x158] sm:$0xf]
    %v756 = vld [vmem:[#allocation7 + $0x15c] sm:$0xf]
    %v757 = vld [vmem:[#allocation7 + $0x160] sm:$0xf]
    %v758 = vld [vmem:[#allocation7 + $0x164] sm:$0xf]
    %v759 = vld [vmem:[#allocation7 + $0x168] sm:$0xf]
    %v760 = vld [vmem:[#allocation7 + $0x16c] sm:$0xf]
    %v761 = vld [vmem:[#allocation7 + $0x170] sm:$0xf]
    %v762 = vld [vmem:[#allocation7 + $0x174] sm:$0xf]
    %v763 = vld [vmem:[#allocation7 + $0x178] sm:$0xf]
    %v764 = vld [vmem:[#allocation7 + $0x17c] sm:$0xf]
    %v781 = vunpack.c.l.b16 %v749
    %v782 = vunpack.c.l.b16 %v750
    %v783 = vunpack.c.l.b16 %v751
    %v784 = vunpack.c.l.b16 %v752
    %v785 = vunpack.c.l.b16 %v753
    %v786 = vunpack.c.l.b16 %v754
    %v787 = vunpack.c.l.b16 %v755
    %v788 = vunpack.c.l.b16 %v756
    %v789 = vunpack.c.l.b16 %v757
    %v790 = vunpack.c.l.b16 %v758
    %v791 = vunpack.c.l.b16 %v759
    %v792 = vunpack.c.l.b16 %v760
    %v793 = vunpack.c.l.b16 %v761
    %v794 = vunpack.c.l.b16 %v762
    %v795 = vunpack.c.l.b16 %v763
    %v796 = vunpack.c.l.b16 %v764
    %v797 = vpack.c.b16 %v782, %v781
    %v798 = vpack.c.b16 %v784, %v783
    %v799 = vpack.c.b16 %v786, %v785
    %v800 = vpack.c.b16 %v788, %v787
    %v801 = vpack.c.b16 %v790, %v789
    %v802 = vpack.c.b16 %v792, %v791
    %v803 = vpack.c.b16 %v794, %v793
    %v804 = vpack.c.b16 %v796, %v795
    %813 = vmatpush.bf16.msra.mxu0 %v804
    %814 = vmatpush.bf16.msra.mxu0 %v803
    %815 = vmatpush.bf16.msra.mxu0 %v802
    %816 = vmatpush.bf16.msra.mxu0 %v801
    %817 = vmatpush.bf16.msra.mxu0 %v800
    %818 = vmatpush.bf16.msra.mxu0 %v799
    %819 = vmatpush.bf16.msra.mxu0 %v798
    %820 = vmatpush.bf16.msra.mxu0 %v797
    %821 = vmatmul.bf16.gmra.mxu0 %v748
    %v822 = vpop.f32.mrf.mxu0
    %v823 = vadd.f32 0.0, %v822
    %v824 = vpop.f32.mrf.mxu0
    %v825 = vadd.f32 0.0, %v824
    %826 = vdwg.mxu0
    %v843 = vunpack.c.l.b16 %v708
    %v844 = vunpack.c.l.b16 %v709
    %v845 = vunpack.c.l.b16 %v710
    %v846 = vunpack.c.l.b16 %v711
    %v847 = vunpack.c.l.b16 %v712
    %v848 = vunpack.c.l.b16 %v713
    %v849 = vunpack.c.l.b16 %v714
    %v850 = vunpack.c.l.b16 %v715
    %v851 = vunpack.c.l.b16 %v716
    %v852 = vunpack.c.l.b16 %v717
    %v853 = vunpack.c.l.b16 %v718
    %v854 = vunpack.c.l.b16 %v719
    %v855 = vunpack.c.l.b16 %v720
    %v856 = vunpack.c.l.b16 %v721
    %v857 = vunpack.c.l.b16 %v722
    %v858 = vunpack.c.l.b16 %v723
    %v859 = vpack.c.b16 %v844, %v843
    %v860 = vpack.c.b16 %v846, %v845
    %v861 = vpack.c.b16 %v848, %v847
    %v862 = vpack.c.b16 %v850, %v849
    %v863 = vpack.c.b16 %v852, %v851
    %v864 = vpack.c.b16 %v854, %v853
    %v865 = vpack.c.b16 %v856, %v855
    %v866 = vpack.c.b16 %v858, %v857
    %875 = vmatpush.bf16.msra.mxu0 %v866
    %876 = vmatpush.bf16.msra.mxu0 %v865
    %877 = vmatpush.bf16.msra.mxu0 %v864
    %878 = vmatpush.bf16.msra.mxu0 %v863
    %879 = vmatpush.bf16.msra.mxu0 %v862
    %880 = vmatpush.bf16.msra.mxu0 %v861
    %881 = vmatpush.bf16.msra.mxu0 %v860
    %882 = vmatpush.bf16.msra.mxu0 %v859
    %883 = vmatmul.bf16.gmra.mxu0 %v707
    %v884 = vpop.f32.mrf.mxu0
    %v885 = vadd.f32 %v823, %v884
    %v886 = vpop.f32.mrf.mxu0
    %v887 = vadd.f32 %v825, %v886
    %888 = vdwg.mxu0
    %v889 = vld [vmem:[#allocation5 + $0x28] sm:$0xf]
    %v890 = vld [vmem:[#allocation5 + $0x2c] sm:$0xf]
    %v893 = vunpack.c.l.b16 %v889
    %v894 = vunpack.c.l.b16 %v890
    %v895 = vpack.c.b16 %v894, %v893
    %v897 = vsel %vm297, %v895, 0
    %899 = vmatpush.bf16.msra.mxu0 0
    %900 = vmatpush.bf16.msra.mxu0 0
    %901 = vmatpush.bf16.msra.mxu0 0
    %902 = vmatpush.bf16.msra.mxu0 0
    %903 = vmatpush.bf16.msra.mxu0 0
    %904 = vmatpush.bf16.msra.mxu0 0
    %905 = vmatpush.bf16.msra.mxu0 0
    %906 = vmatpush.bf16.msra.mxu0 %v682
    %907 = vmatmul.bf16.gmra.mxu0 %v897
    %v908 = vpop.f32.mrf.mxu0
    %v909 = vadd.f32 0.0, %v908
    %v910 = vpop.f32.mrf.mxu0
    %v911 = vadd.f32 0.0, %v910
    %912 = vdwg.mxu0
    %v913 = vpack.c.bf16 %v911, %v909
    %v914 = vld [vmem:[#allocation7 + $0x180] sm:$0xf]
    %v915 = vld [vmem:[#allocation7 + $0x184] sm:$0xf]
    %v916 = vld [vmem:[#allocation7 + $0x188] sm:$0xf]
    %v917 = vld [vmem:[#allocation7 + $0x18c] sm:$0xf]
    %v918 = vld [vmem:[#allocation7 + $0x190] sm:$0xf]
    %v919 = vld [vmem:[#allocation7 + $0x194] sm:$0xf]
    %v920 = vld [vmem:[#allocation7 + $0x198] sm:$0xf]
    %v921 = vld [vmem:[#allocation7 + $0x19c] sm:$0xf]
    %v922 = vld [vmem:[#allocation7 + $0x1a0] sm:$0xf]
    %v923 = vld [vmem:[#allocation7 + $0x1a4] sm:$0xf]
    %v924 = vld [vmem:[#allocation7 + $0x1a8] sm:$0xf]
    %v925 = vld [vmem:[#allocation7 + $0x1ac] sm:$0xf]
    %v926 = vld [vmem:[#allocation7 + $0x1b0] sm:$0xf]
    %v927 = vld [vmem:[#allocation7 + $0x1b4] sm:$0xf]
    %v928 = vld [vmem:[#allocation7 + $0x1b8] sm:$0xf]
    %v929 = vld [vmem:[#allocation7 + $0x1bc] sm:$0xf]
    %v946 = vunpack.c.l.b16 %v914
    %v947 = vunpack.c.l.b16 %v915
    %v948 = vunpack.c.l.b16 %v916
    %v949 = vunpack.c.l.b16 %v917
    %v950 = vunpack.c.l.b16 %v918
    %v951 = vunpack.c.l.b16 %v919
    %v952 = vunpack.c.l.b16 %v920
    %v953 = vunpack.c.l.b16 %v921
    %v954 = vunpack.c.l.b16 %v922
    %v955 = vunpack.c.l.b16 %v923
    %v956 = vunpack.c.l.b16 %v924
    %v957 = vunpack.c.l.b16 %v925
    %v958 = vunpack.c.l.b16 %v926
    %v959 = vunpack.c.l.b16 %v927
    %v960 = vunpack.c.l.b16 %v928
    %v961 = vunpack.c.l.b16 %v929
    %v962 = vpack.c.b16 %v947, %v946
    %v963 = vpack.c.b16 %v949, %v948
    %v964 = vpack.c.b16 %v951, %v950
    %v965 = vpack.c.b16 %v953, %v952
    %v966 = vpack.c.b16 %v955, %v954
    %v967 = vpack.c.b16 %v957, %v956
    %v968 = vpack.c.b16 %v959, %v958
    %v969 = vpack.c.b16 %v961, %v960
    %978 = vmatpush.bf16.msra.mxu0 %v969
    %979 = vmatpush.bf16.msra.mxu0 %v968
    %980 = vmatpush.bf16.msra.mxu0 %v967
    %981 = vmatpush.bf16.msra.mxu0 %v966
    %982 = vmatpush.bf16.msra.mxu0 %v965
    %983 = vmatpush.bf16.msra.mxu0 %v964
    %984 = vmatpush.bf16.msra.mxu0 %v963
    %985 = vmatpush.bf16.msra.mxu0 %v962
    %986 = vmatmul.bf16.gmra.mxu0 %v913
    %v987 = vpop.f32.mrf.mxu0
    %v988 = vadd.f32 0.0, %v987
    %v989 = vpop.f32.mrf.mxu0
    %v990 = vadd.f32 0.0, %v989
    %991 = vdwg.mxu0
    %v992 = vadd.f32 %v885, %v988
    %v993 = vadd.f32 %v887, %v990
    %v994 = vld [vmem:[#allocation5 + $0x30] sm:$0xf]
    %v995 = vld [vmem:[#allocation5 + $0x34] sm:$0xf]
    %v998 = vunpack.c.l.b16 %v994
    %v999 = vunpack.c.l.b16 %v995
    %v1000 = vpack.c.b16 %v999, %v998
    %v1002 = vsel %vm297, %v1000, 0
    %1004 = vmatpush.bf16.msra.mxu0 0
    %1005 = vmatpush.bf16.msra.mxu0 0
    %1006 = vmatpush.bf16.msra.mxu0 0
    %1007 = vmatpush.bf16.msra.mxu0 0
    %1008 = vmatpush.bf16.msra.mxu0 0
    %1009 = vmatpush.bf16.msra.mxu0 0
    %1010 = vmatpush.bf16.msra.mxu0 0
    %1011 = vmatpush.bf16.msra.mxu0 %v682
    %1012 = vmatmul.bf16.gmra.mxu0 %v1002
    %v1013 = vpop.f32.mrf.mxu0
    %v1014 = vadd.f32 0.0, %v1013
    %v1015 = vpop.f32.mrf.mxu0
    %v1016 = vadd.f32 0.0, %v1015
    %1017 = vdwg.mxu0
    %v1018 = vpack.c.bf16 %v1016, %v1014
    %v1019 = vld [vmem:[#allocation7 + $0x1c0] sm:$0xf]
    %v1020 = vld [vmem:[#allocation7 + $0x1c4] sm:$0xf]
    %v1021 = vld [vmem:[#allocation7 + $0x1c8] sm:$0xf]
    %v1022 = vld [vmem:[#allocation7 + $0x1cc] sm:$0xf]
    %v1023 = vld [vmem:[#allocation7 + $0x1d0] sm:$0xf]
    %v1024 = vld [vmem:[#allocation7 + $0x1d4] sm:$0xf]
    %v1025 = vld [vmem:[#allocation7 + $0x1d8] sm:$0xf]
    %v1026 = vld [vmem:[#allocation7 + $0x1dc] sm:$0xf]
    %v1027 = vld [vmem:[#allocation7 + $0x1e0] sm:$0xf]
    %v1028 = vld [vmem:[#allocation7 + $0x1e4] sm:$0xf]
    %v1029 = vld [vmem:[#allocation7 + $0x1e8] sm:$0xf]
    %v1030 = vld [vmem:[#allocation7 + $0x1ec] sm:$0xf]
    %v1031 = vld [vmem:[#allocation7 + $0x1f0] sm:$0xf]
    %v1032 = vld [vmem:[#allocation7 + $0x1f4] sm:$0xf]
    %v1033 = vld [vmem:[#allocation7 + $0x1f8] sm:$0xf]
    %v1034 = vld [vmem:[#allocation7 + $0x1fc] sm:$0xf]
    %v1051 = vunpack.c.l.b16 %v1019
    %v1052 = vunpack.c.l.b16 %v1020
    %v1053 = vunpack.c.l.b16 %v1021
    %v1054 = vunpack.c.l.b16 %v1022
    %v1055 = vunpack.c.l.b16 %v1023
    %v1056 = vunpack.c.l.b16 %v1024
    %v1057 = vunpack.c.l.b16 %v1025
    %v1058 = vunpack.c.l.b16 %v1026
    %v1059 = vunpack.c.l.b16 %v1027
    %v1060 = vunpack.c.l.b16 %v1028
    %v1061 = vunpack.c.l.b16 %v1029
    %v1062 = vunpack.c.l.b16 %v1030
    %v1063 = vunpack.c.l.b16 %v1031
    %v1064 = vunpack.c.l.b16 %v1032
    %v1065 = vunpack.c.l.b16 %v1033
    %v1066 = vunpack.c.l.b16 %v1034
    %v1067 = vpack.c.b16 %v1052, %v1051
    %v1068 = vpack.c.b16 %v1054, %v1053
    %v1069 = vpack.c.b16 %v1056, %v1055
    %v1070 = vpack.c.b16 %v1058, %v1057
    %v1071 = vpack.c.b16 %v1060, %v1059
    %v1072 = vpack.c.b16 %v1062, %v1061
    %v1073 = vpack.c.b16 %v1064, %v1063
    %v1074 = vpack.c.b16 %v1066, %v1065
    %1083 = vmatpush.bf16.msra.mxu0 %v1074
    %1084 = vmatpush.bf16.msra.mxu0 %v1073
    %1085 = vmatpush.bf16.msra.mxu0 %v1072
    %1086 = vmatpush.bf16.msra.mxu0 %v1071
    %1087 = vmatpush.bf16.msra.mxu0 %v1070
    %1088 = vmatpush.bf16.msra.mxu0 %v1069
    %1089 = vmatpush.bf16.msra.mxu0 %v1068
    %1090 = vmatpush.bf16.msra.mxu0 %v1067
    %1091 = vmatmul.bf16.gmra.mxu0 %v1018
    %v1092 = vpop.f32.mrf.mxu0
    %v1093 = vadd.f32 0.0, %v1092
    %v1094 = vpop.f32.mrf.mxu0
    %v1095 = vadd.f32 0.0, %v1094
    %1096 = vdwg.mxu0
    %v1097 = vadd.f32 %v992, %v1093
    %v1098 = vadd.f32 %v993, %v1095
    %v1099 = vld [vmem:[#allocation5 + $0x38] sm:$0xf]
    %v1100 = vld [vmem:[#allocation5 + $0x3c] sm:$0xf]
    %v1103 = vunpack.c.l.b16 %v1099
    %v1104 = vunpack.c.l.b16 %v1100
    %v1105 = vpack.c.b16 %v1104, %v1103
    %v1107 = vsel %vm297, %v1105, 0
    %1109 = vmatpush.bf16.msra.mxu0 0
    %1110 = vmatpush.bf16.msra.mxu0 0
    %1111 = vmatpush.bf16.msra.mxu0 0
    %1112 = vmatpush.bf16.msra.mxu0 0
    %1113 = vmatpush.bf16.msra.mxu0 0
    %1114 = vmatpush.bf16.msra.mxu0 0
    %1115 = vmatpush.bf16.msra.mxu0 0
    %1116 = vmatpush.bf16.msra.mxu0 %v682
    %1117 = vmatmul.bf16.gmra.mxu0 %v1107
    %v1118 = vpop.f32.mrf.mxu0
    %v1119 = vadd.f32 0.0, %v1118
    %v1120 = vpop.f32.mrf.mxu0
    %v1121 = vadd.f32 0.0, %v1120
    %1122 = vdwg.mxu0
    %v1123 = vpack.c.bf16 %v1121, %v1119
    %v1124 = vld [vmem:[#allocation7 + $0x200] sm:$0xf]
    %v1125 = vld [vmem:[#allocation7 + $0x204] sm:$0xf]
    %v1126 = vld [vmem:[#allocation7 + $0x208] sm:$0xf]
    %v1127 = vld [vmem:[#allocation7 + $0x20c] sm:$0xf]
    %v1128 = vld [vmem:[#allocation7 + $0x210] sm:$0xf]
    %v1129 = vld [vmem:[#allocation7 + $0x214] sm:$0xf]
    %v1130 = vld [vmem:[#allocation7 + $0x218] sm:$0xf]
    %v1131 = vld [vmem:[#allocation7 + $0x21c] sm:$0xf]
    %v1132 = vld [vmem:[#allocation7 + $0x220] sm:$0xf]
    %v1133 = vld [vmem:[#allocation7 + $0x224] sm:$0xf]
    %v1134 = vld [vmem:[#allocation7 + $0x228] sm:$0xf]
    %v1135 = vld [vmem:[#allocation7 + $0x22c] sm:$0xf]
    %v1136 = vld [vmem:[#allocation7 + $0x230] sm:$0xf]
    %v1137 = vld [vmem:[#allocation7 + $0x234] sm:$0xf]
    %v1138 = vld [vmem:[#allocation7 + $0x238] sm:$0xf]
    %v1139 = vld [vmem:[#allocation7 + $0x23c] sm:$0xf]
    %v1156 = vunpack.c.l.b16 %v1124
    %v1157 = vunpack.c.l.b16 %v1125
    %v1158 = vunpack.c.l.b16 %v1126
    %v1159 = vunpack.c.l.b16 %v1127
    %v1160 = vunpack.c.l.b16 %v1128
    %v1161 = vunpack.c.l.b16 %v1129
    %v1162 = vunpack.c.l.b16 %v1130
    %v1163 = vunpack.c.l.b16 %v1131
    %v1164 = vunpack.c.l.b16 %v1132
    %v1165 = vunpack.c.l.b16 %v1133
    %v1166 = vunpack.c.l.b16 %v1134
    %v1167 = vunpack.c.l.b16 %v1135
    %v1168 = vunpack.c.l.b16 %v1136
    %v1169 = vunpack.c.l.b16 %v1137
    %v1170 = vunpack.c.l.b16 %v1138
    %v1171 = vunpack.c.l.b16 %v1139
    %v1172 = vpack.c.b16 %v1157, %v1156
    %v1173 = vpack.c.b16 %v1159, %v1158
    %v1174 = vpack.c.b16 %v1161, %v1160
    %v1175 = vpack.c.b16 %v1163, %v1162
    %v1176 = vpack.c.b16 %v1165, %v1164
    %v1177 = vpack.c.b16 %v1167, %v1166
    %v1178 = vpack.c.b16 %v1169, %v1168
    %v1179 = vpack.c.b16 %v1171, %v1170
    %1188 = vmatpush.bf16.msra.mxu0 %v1179
    %1189 = vmatpush.bf16.msra.mxu0 %v1178
    %1190 = vmatpush.bf16.msra.mxu0 %v1177
    %1191 = vmatpush.bf16.msra.mxu0 %v1176
    %1192 = vmatpush.bf16.msra.mxu0 %v1175
    %1193 = vmatpush.bf16.msra.mxu0 %v1174
    %1194 = vmatpush.bf16.msra.mxu0 %v1173
    %1195 = vmatpush.bf16.msra.mxu0 %v1172
    %1196 = vmatmul.bf16.gmra.mxu0 %v1123
    %v1197 = vpop.f32.mrf.mxu0
    %v1198 = vadd.f32 0.0, %v1197
    %v1199 = vpop.f32.mrf.mxu0
    %v1200 = vadd.f32 0.0, %v1199
    %1201 = vdwg.mxu0
    %v1202 = vadd.f32 %v1097, %v1198
    %v1203 = vadd.f32 %v1098, %v1200
    %v1204 = vld [vmem:[#allocation9 + $0x2] sm:$0x1]
    %v1205 = vperm.slane %v1204, 0
    %v1206 = vadd.f32 %v1202, %v1205
    %v1207 = vadd.f32 %v1203, %v1205
    %vm1208 = vcmask 523264
    %v1209 = vsel %vm1208, %v1206, 0.0
    %v1210 = vsel %vm1208, %v1207, 0.0
    %v1211 = vadd.f32 %v1209, %v1210
    %v1212 = vrot.slane %v1211, 4
    %v1213 = vadd.f32 %v1211, %v1212
    %v1214 = vrot.slane %v1213, 2
    %v1215 = vadd.f32 %v1213, %v1214
    %v1216 = vrot.slane %v1215, 1
    %v1217 = vadd.f32 %v1215, %v1216
    %v1218 = vmul.f32 %v1217, %v219
    %v1220 = vsel %vm1208, %v1218, 0
    %1222 = vmatpush.msra.mxu0 0.0
    %1223 = vmatpush.msra.mxu0 0.0
    %1224 = vmatpush.msra.mxu0 0.0
    %1225 = vmatpush.msra.mxu0 0.0
    %1226 = vmatpush.msra.mxu0 0.0
    %1227 = vmatpush.msra.mxu0 0.0
    %1228 = vmatpush.msra.mxu0 0.0
    %1229 = vmatpush.msra.mxu0 0.0
    %1230 = vmatpush.msra.mxu0 %v122
    %1231 = vmatpush.msra.mxu0 %v121
    %1232 = vmatpush.msra.mxu0 %v120
    %1233 = vmatpush.msra.mxu0 %v119
    %1234 = vmatpush.msra.mxu0 %v118
    %1235 = vmatpush.msra.mxu0 %v117
    %1236 = vmatpush.msra.mxu0 %v116
    %1237 = vmatpush.msra.mxu0 %v115
    %1238 = vmatmul.f32.gmra.mxu0 %v1220
    %v1239 = vpop.f32.mrf.mxu0
    %v1240 = vadd.f32 0.0, %v1239
    %1241 = vdwg.mxu0
    %v1242 = vperm.slane %v1240, 0
    %v1243 = vsub.f32 %v1206, %v1242
    %v1244 = vsub.f32 %v1207, %v1242
    %v1245 = vmul.f32 %v1243, %v1243
    %v1246 = vmul.f32 %v1244, %v1244
    %v1247 = vsel %vm1208, %v1245, 0.0
    %v1248 = vsel %vm1208, %v1246, 0.0
    %v1249 = vadd.f32 %v1247, %v1248
    %v1250 = vrot.slane %v1249, 4
    %v1251 = vadd.f32 %v1249, %v1250
    %v1252 = vrot.slane %v1251, 2
    %v1253 = vadd.f32 %v1251, %v1252
    %v1254 = vrot.slane %v1253, 1
    %v1255 = vadd.f32 %v1253, %v1254
    %v1256 = vmul.f32 %v1255, %v219
    %v1258 = vsel %vm1208, %v1256, 0
    %1260 = vmatpush.msra.mxu0 0.0
    %1261 = vmatpush.msra.mxu0 0.0
    %1262 = vmatpush.msra.mxu0 0.0
    %1263 = vmatpush.msra.mxu0 0.0
    %1264 = vmatpush.msra.mxu0 0.0
    %1265 = vmatpush.msra.mxu0 0.0
    %1266 = vmatpush.msra.mxu0 0.0
    %1267 = vmatpush.msra.mxu0 0.0
    %1268 = vmatpush.msra.mxu0 %v122
    %1269 = vmatpush.msra.mxu0 %v121
    %1270 = vmatpush.msra.mxu0 %v120
    %1271 = vmatpush.msra.mxu0 %v119
    %1272 = vmatpush.msra.mxu0 %v118
    %1273 = vmatpush.msra.mxu0 %v117
    %1274 = vmatpush.msra.mxu0 %v116
    %1275 = vmatpush.msra.mxu0 %v115
    %1276 = vmatmul.f32.gmra.mxu0 %v1258
    %v1277 = vpop.f32.mrf.mxu0
    %v1278 = vadd.f32 1e-05, %v1277
    %1279 = vdwg.mxu0
    %v1280 = vrsqrt.pop %v1278
    %v1281 = vmul.f32 %v1280, %v1278
    %v1282 = vmul.f32 %v1281, %v1280
    %v1283 = vmul.f32 0.5, %v1282
    %v1284 = vsub.f32 1.5, %v1283
    %v1285 = vmul.f32 %v1280, %v1284
    %vm1286 = vweird.f32 %v1278
    %vm1287 = vweird.f32 %v1280
    %vm1288 = vmor %vm1286, %vm1287
    %v1289 = vsel %vm1288, %v1280, %v1285
    %v1290 = vperm.slane %v1289, 0
    %v1291 = vmul.f32 %v1243, %v1290
    %v1292 = vmul.f32 %v1244, %v1290
    %v1293 = vmax.f32 %v1291, 0.0
    %v1294 = vmax.f32 %v1292, 0.0
    %v1295 = vld [vmem:[%s2] sm:$0x3]
    %v1296 = vld [vmem:[%s2 + $0x2] sm:$0x3]
    %v1297 = vld [vmem:[%s2 + $0x4] sm:$0x1]
    %v1298 = vld [vmem:[%s2 + $0x5] sm:$0x1]
    %v1299 = vld [vmem:[%s2 + $0x6] sm:$0x3]
    %v1300 = vld [vmem:[#allocation9 + $0x10] sm:$0xf]
    %v1301 = vld [vmem:[#allocation9 + $0x4] sm:$0x1]
    %v1302 = vperm.slane %v1301, 0
    %vm1303 = vcmask 31744
    %v1305 = vsel %vm1303, %v1295, 0
    %vm1307 = vcmask 1043456
    %v1309 = vsel %vm1307, %v1300, 0
    %1311 = vmatpush.msra.mxu0 0.0
    %1312 = vmatpush.msra.mxu0 0.0
    %1313 = vmatpush.msra.mxu0 0.0
    %1314 = vmatpush.msra.mxu0 0.0
    %1315 = vmatpush.msra.mxu0 0.0
    %1316 = vmatpush.msra.mxu0 0.0
    %1317 = vmatpush.msra.mxu0 0.0
    %1318 = vmatpush.msra.mxu0 0.0
    %1319 = vmatpush.msra.mxu0 0.0
    %1320 = vmatpush.msra.mxu0 0.0
    %1321 = vmatpush.msra.mxu0 0.0
    %1322 = vmatpush.msra.mxu0 0.0
    %1323 = vmatpush.msra.mxu0 0.0
    %1324 = vmatpush.msra.mxu0 0.0
    %1325 = vmatpush.msra.mxu0 0.0
    %1326 = vmatpush.msra.mxu0 %v1309
    %1327 = vmatmul.f32.gmra.mxu0 %v1305
    %v1328 = vpop.f32.mrf.mxu0
    %v1329 = vadd.f32 %v1302, %v1328
    %1330 = vdwg.mxu0
    %v1331 = vmax.f32 %v1329, 0.0
    %v1332 = vld [vmem:[#allocation9 + $0x14] sm:$0xf]
    %v1333 = vld [vmem:[#allocation9 + $0x5] sm:$0x1]
    %v1334 = vperm.slane %v1333, 0
    %v1336 = vsel %vm1303, %v1296, 0
    %v1339 = vsel %vm1307, %v1332, 0
    %1341 = vmatpush.msra.mxu0 0.0
    %1342 = vmatpush.msra.mxu0 0.0
    %1343 = vmatpush.msra.mxu0 0.0
    %1344 = vmatpush.msra.mxu0 0.0
    %1345 = vmatpush.msra.mxu0 0.0
    %1346 = vmatpush.msra.mxu0 0.0
    %1347 = vmatpush.msra.mxu0 0.0
    %1348 = vmatpush.msra.mxu0 0.0
    %1349 = vmatpush.msra.mxu0 0.0
    %1350 = vmatpush.msra.mxu0 0.0
    %1351 = vmatpush.msra.mxu0 0.0
    %1352 = vmatpush.msra.mxu0 0.0
    %1353 = vmatpush.msra.mxu0 0.0
    %1354 = vmatpush.msra.mxu0 0.0
    %1355 = vmatpush.msra.mxu0 0.0
    %1356 = vmatpush.msra.mxu0 %v1339
    %1357 = vmatmul.f32.gmra.mxu0 %v1336
    %v1358 = vpop.f32.mrf.mxu0
    %v1359 = vadd.f32 %v1334, %v1358
    %1360 = vdwg.mxu0
    %v1361 = vmax.f32 %v1359, 0.0
    %v1362 = vld [vmem:[#allocation9 + $0x18] sm:$0xff]
    %v1363 = vld [vmem:[#allocation9 + $0x20] sm:$0xff]
    %v1364 = vld [vmem:[#allocation9 + $0x28] sm:$0xff]
    %v1365 = vld [vmem:[#allocation9 + $0x30] sm:$0xff]
    %v1366 = vld [vmem:[#allocation9 + $0x38] sm:$0xff]
    %v1367 = vld [vmem:[#allocation9 + $0x40] sm:$0xff]
    %v1368 = vld [vmem:[#allocation9 + $0x6] sm:$0x1]
    %vm1369 = vcmask 392192
    %v1371 = vsel %vm1369, %v1297, 0
    %1373 = vmatpush.msra.mxu0 0.0
    %1374 = vmatpush.msra.mxu0 0.0
    %1375 = vmatpush.msra.mxu0 0.0
    %1376 = vmatpush.msra.mxu0 0.0
    %1377 = vmatpush.msra.mxu0 0.0
    %1378 = vmatpush.msra.mxu0 0.0
    %1379 = vmatpush.msra.mxu0 0.0
    %1380 = vmatpush.msra.mxu0 0.0
    %1381 = vmatpush.msra.mxu0 0.0
    %1382 = vmatpush.msra.mxu0 0.0
    %1383 = vmatpush.msra.mxu0 %v1367
    %1384 = vmatpush.msra.mxu0 %v1366
    %1385 = vmatpush.msra.mxu0 %v1365
    %1386 = vmatpush.msra.mxu0 %v1364
    %1387 = vmatpush.msra.mxu0 %v1363
    %1388 = vmatpush.msra.mxu0 %v1362
    %1389 = vmatmul.f32.gmra.mxu0 %v1371
    %v1390 = vpop.f32.mrf.mxu0
    %v1391 = vadd.f32 %v1368, %v1390
    %1392 = vdwg.mxu0
    %v1393 = vmax.f32 %v1391, 0.0
    %v1394 = vperm.slane %v1393, 0
    %v1395 = vmul.f32 %v1299, %v1394
    %v1396 = vld [vmem:[#allocation9 + $0x48] sm:$0xff]
    %v1397 = vld [vmem:[#allocation9 + $0x50] sm:$0xff]
    %v1398 = vld [vmem:[#allocation9 + $0x58] sm:$0xff]
    %v1399 = vld [vmem:[#allocation9 + $0x60] sm:$0xff]
    %v1400 = vld [vmem:[#allocation9 + $0x68] sm:$0xff]
    %v1401 = vld [vmem:[#allocation9 + $0x70] sm:$0xff]
    %v1402 = vld [vmem:[#allocation9 + $0x7] sm:$0x1]
    %v1404 = vsel %vm1369, %v1298, 0
    %1406 = vmatpush.msra.mxu0 0.0
    %1407 = vmatpush.msra.mxu0 0.0
    %1408 = vmatpush.msra.mxu0 0.0
    %1409 = vmatpush.msra.mxu0 0.0
    %1410 = vmatpush.msra.mxu0 0.0
    %1411 = vmatpush.msra.mxu0 0.0
    %1412 = vmatpush.msra.mxu0 0.0
    %1413 = vmatpush.msra.mxu0 0.0
    %1414 = vmatpush.msra.mxu0 0.0
    %1415 = vmatpush.msra.mxu0 0.0
    %1416 = vmatpush.msra.mxu0 %v1401
    %1417 = vmatpush.msra.mxu0 %v1400
    %1418 = vmatpush.msra.mxu0 %v1399
    %1419 = vmatpush.msra.mxu0 %v1398
    %1420 = vmatpush.msra.mxu0 %v1397
    %1421 = vmatpush.msra.mxu0 %v1396
    %1422 = vmatmul.f32.gmra.mxu0 %v1404
    %v1423 = vpop.f32.mrf.mxu0
    %v1424 = vadd.f32 %v1402, %v1423
    %1425 = vdwg.mxu0
    %v1426 = vmax.f32 %v1424, 0.0
    %1427 = vst [vmem:[#allocation3] sm:$0xff] 0.0
    %vm1428 = vcmask 910336
    %1429 = vst.msk [vmem:[#allocation3 + $0x8] sm:$0x3] %vm1428, 0.0
    %v1430 = vpack.c.bf16 %v1294, %v1293
    %v1431 = vld [vmem:[#allocation5 + $0x40] sm:$0x1]
    %v1433 = vsel %vm297, %v1431, 0
    %1435 = vmatpush.bf16.msra.mxu0 0
    %1436 = vmatpush.bf16.msra.mxu0 0
    %1437 = vmatpush.bf16.msra.mxu0 0
    %1438 = vmatpush.bf16.msra.mxu0 0
    %1439 = vmatpush.bf16.msra.mxu0 0
    %1440 = vmatpush.bf16.msra.mxu0 0
    %1441 = vmatpush.bf16.msra.mxu0 0
    %1442 = vmatpush.bf16.msra.mxu0 %v1430
    %1443 = vmatmul.bf16.gmra.mxu0 %v1433
    %v1444 = vpop.f32.mrf.mxu0
    %v1445 = vadd.f32 0.0, %v1444
    %v1446 = vpop.f32.mrf.mxu0
    %1447 = vdwg.mxu0
    %vm1448 = vcmask 517120
    %1449 = vst.msk [vmem:[#allocation3] sm:$0x3] %vm1448, %v1445
    %v1450 = vld [vmem:[#allocation5 + $0x40] sm:$0x2]
    %v1452 = vunpack.c.l.b16 %v1450
    %v1453 = vpack.c.b16 %v1452, %v1452
    %v1454 = vrot.slane %v1453, 1
    %v1456 = vsel %vm297, %v1454, 0
    %1458 = vmatpush.bf16.msra.mxu0 0
    %1459 = vmatpush.bf16.msra.mxu0 0
    %1460 = vmatpush.bf16.msra.mxu0 0
    %1461 = vmatpush.bf16.msra.mxu0 0
    %1462 = vmatpush.bf16.msra.mxu0 0
    %1463 = vmatpush.bf16.msra.mxu0 0
    %1464 = vmatpush.bf16.msra.mxu0 0
    %1465 = vmatpush.bf16.msra.mxu0 %v1430
    %1466 = vmatmul.bf16.gmra.mxu0 %v1456
    %v1467 = vpop.f32.mrf.mxu0
    %v1468 = vadd.f32 0.0, %v1467
    %v1469 = vpop.f32.mrf.mxu0
    %1470 = vdwg.mxu0
    %1472 = vrot.lane.b32.xlu0 %v1468, 64
    %v1473 = vpop.permute.xlu0 %1472
    %vm1475 = vcmask 1041920
    %1476 = vst.msk [vmem:[#allocation3] sm:$0x3] %vm1475, %v1473
    %v1477 = vld [vmem:[#allocation5 + $0x40] sm:$0x4]
    %v1479 = vunpack.c.l.b16 %v1477
    %v1480 = vpack.c.b16 %v1479, %v1479
    %v1481 = vrot.slane %v1480, 2
    %v1483 = vsel %vm297, %v1481, 0
    %1485 = vmatpush.bf16.msra.mxu0 0
    %1486 = vmatpush.bf16.msra.mxu0 0
    %1487 = vmatpush.bf16.msra.mxu0 0
    %1488 = vmatpush.bf16.msra.mxu0 0
    %1489 = vmatpush.bf16.msra.mxu0 0
    %1490 = vmatpush.bf16.msra.mxu0 0
    %1491 = vmatpush.bf16.msra.mxu0 0
    %1492 = vmatpush.bf16.msra.mxu0 %v1430
    %1493 = vmatmul.bf16.gmra.mxu0 %v1483
    %v1494 = vpop.f32.mrf.mxu0
    %v1495 = vadd.f32 0.0, %v1494
    %v1496 = vpop.f32.mrf.mxu0
    %1497 = vdwg.mxu0
    %1498 = vst.msk [vmem:[#allocation3 + $0x2] sm:$0x3] %vm1448, %v1495
    %v1499 = vld [vmem:[#allocation5 + $0x40] sm:$0x8]
    %v1501 = vunpack.c.l.b16 %v1499
    %v1502 = vpack.c.b16 %v1501, %v1501
    %v1503 = vrot.slane %v1502, 3
    %v1505 = vsel %vm297, %v1503, 0
    %1507 = vmatpush.bf16.msra.mxu0 0
    %1508 = vmatpush.bf16.msra.mxu0 0
    %1509 = vmatpush.bf16.msra.mxu0 0
    %1510 = vmatpush.bf16.msra.mxu0 0
    %1511 = vmatpush.bf16.msra.mxu0 0
    %1512 = vmatpush.bf16.msra.mxu0 0
    %1513 = vmatpush.bf16.msra.mxu0 0
    %1514 = vmatpush.bf16.msra.mxu0 %v1430
    %1515 = vmatmul.bf16.gmra.mxu0 %v1505
    %v1516 = vpop.f32.mrf.mxu0
    %v1517 = vadd.f32 0.0, %v1516
    %v1518 = vpop.f32.mrf.mxu0
    %1519 = vdwg.mxu0
    %1521 = vrot.lane.b32.xlu0 %v1517, 64
    %v1522 = vpop.permute.xlu0 %1521
    %1524 = vst.msk [vmem:[#allocation3 + $0x2] sm:$0x3] %vm1475, %v1522
    %v1525 = vld [vmem:[#allocation5 + $0x44] sm:$0x1]
    %v1527 = vsel %vm297, %v1525, 0
    %1529 = vmatpush.bf16.msra.mxu0 0
    %1530 = vmatpush.bf16.msra.mxu0 0
    %1531 = vmatpush.bf16.msra.mxu0 0
    %1532 = vmatpush.bf16.msra.mxu0 0
    %1533 = vmatpush.bf16.msra.mxu0 0
    %1534 = vmatpush.bf16.msra.mxu0 0
    %1535 = vmatpush.bf16.msra.mxu0 0
    %1536 = vmatpush.bf16.msra.mxu0 %v1430
    %1537 = vmatmul.bf16.gmra.mxu0 %v1527
    %v1538 = vpop.f32.mrf.mxu0
    %v1539 = vadd.f32 0.0, %v1538
    %v1540 = vpop.f32.mrf.mxu0
    %1541 = vdwg.mxu0
    %1542 = vst.msk [vmem:[#allocation3 + $0x4] sm:$0x3] %vm1448, %v1539
    %v1543 = vld [vmem:[#allocation5 + $0x44] sm:$0x2]
    %v1545 = vunpack.c.l.b16 %v1543
    %v1546 = vpack.c.b16 %v1545, %v1545
    %v1547 = vrot.slane %v1546, 1
    %v1549 = vsel %vm297, %v1547, 0
    %1551 = vmatpush.bf16.msra.mxu0 0
    %1552 = vmatpush.bf16.msra.mxu0 0
    %1553 = vmatpush.bf16.msra.mxu0 0
    %1554 = vmatpush.bf16.msra.mxu0 0
    %1555 = vmatpush.bf16.msra.mxu0 0
    %1556 = vmatpush.bf16.msra.mxu0 0
    %1557 = vmatpush.bf16.msra.mxu0 0
    %1558 = vmatpush.bf16.msra.mxu0 %v1430
    %1559 = vmatmul.bf16.gmra.mxu0 %v1549
    %v1560 = vpop.f32.mrf.mxu0
    %v1561 = vadd.f32 0.0, %v1560
    %v1562 = vpop.f32.mrf.mxu0
    %1563 = vdwg.mxu0
    %1565 = vrot.lane.b32.xlu0 %v1561, 64
    %v1566 = vpop.permute.xlu0 %1565
    %1568 = vst.msk [vmem:[#allocation3 + $0x4] sm:$0x3] %vm1475, %v1566
    %v1569 = vld [vmem:[#allocation5 + $0x44] sm:$0x4]
    %v1571 = vunpack.c.l.b16 %v1569
    %v1572 = vpack.c.b16 %v1571, %v1571
    %v1573 = vrot.slane %v1572, 2
    %v1575 = vsel %vm297, %v1573, 0
    %1577 = vmatpush.bf16.msra.mxu0 0
    %1578 = vmatpush.bf16.msra.mxu0 0
    %1579 = vmatpush.bf16.msra.mxu0 0
    %1580 = vmatpush.bf16.msra.mxu0 0
    %1581 = vmatpush.bf16.msra.mxu0 0
    %1582 = vmatpush.bf16.msra.mxu0 0
    %1583 = vmatpush.bf16.msra.mxu0 0
    %1584 = vmatpush.bf16.msra.mxu0 %v1430
    %1585 = vmatmul.bf16.gmra.mxu0 %v1575
    %v1586 = vpop.f32.mrf.mxu0
    %v1587 = vadd.f32 0.0, %v1586
    %v1588 = vpop.f32.mrf.mxu0
    %1589 = vdwg.mxu0
    %1590 = vst.msk [vmem:[#allocation3 + $0x6] sm:$0x3] %vm1448, %v1587
    %v1591 = vld [vmem:[#allocation5 + $0x44] sm:$0x8]
    %v1593 = vunpack.c.l.b16 %v1591
    %v1594 = vpack.c.b16 %v1593, %v1593
    %v1595 = vrot.slane %v1594, 3
    %v1597 = vsel %vm297, %v1595, 0
    %1599 = vmatpush.bf16.msra.mxu0 0
    %1600 = vmatpush.bf16.msra.mxu0 0
    %1601 = vmatpush.bf16.msra.mxu0 0
    %1602 = vmatpush.bf16.msra.mxu0 0
    %1603 = vmatpush.bf16.msra.mxu0 0
    %1604 = vmatpush.bf16.msra.mxu0 0
    %1605 = vmatpush.bf16.msra.mxu0 0
    %1606 = vmatpush.bf16.msra.mxu0 %v1430
    %1607 = vmatmul.bf16.gmra.mxu0 %v1597
    %v1608 = vpop.f32.mrf.mxu0
    %v1609 = vadd.f32 0.0, %v1608
    %v1610 = vpop.f32.mrf.mxu0
    %1611 = vdwg.mxu0
    %1613 = vrot.lane.b32.xlu0 %v1609, 64
    %v1614 = vpop.permute.xlu0 %1613
    %1616 = vst.msk [vmem:[#allocation3 + $0x6] sm:$0x3] %vm1475, %v1614
    %vm1617 = vcmask 25600
    %1618 = vst.msk [vmem:[#allocation3 + $0x8] sm:$0x3] %vm1617, %v1331
    %1620 = vrot.lane.b32.xlu0 %v1361, 4
    %v1621 = vpop.permute.xlu0 %1620
    %vm1623 = vcmask 58400
    %1624 = vst.msk [vmem:[#allocation3 + $0x8] sm:$0x3] %vm1623, %v1621
    %1626 = vrot.lane.b32.xlu0 %v1395, 8
    %v1627 = vpop.permute.xlu0 %1626
    %vm1629 = vcmask 451648
    %1630 = vst.msk [vmem:[#allocation3 + $0x8] sm:$0x3] %vm1629, %v1627
    %v1631 = vperm.slane %v1426, 0
    %1633 = vrot.lane.b32.xlu0 %v1631, 56
    %v1634 = vpop.permute.xlu0 %1633
    %vm1636 = vcmask 845248
    %1637 = vst.msk [vmem:[#allocation3 + $0x8] sm:$0x3] %vm1636, %v1634
    %s1638 = smul.u32 4, 78
    %s1639 = smul.u32 %s1638, 14
    %s1640 = sshll.u32 %s1639, 4
    %1641 = dma.done [#allocation4], %s1640
    %v1642 = vld [vmem:[#allocation3] sm:$0xff]
    %v1643 = vld [vmem:[#allocation3 + $0x8] sm:$0x3]
    %1646 = vst [vmem:[#allocation1] ss:$4 sm:$0xff] %v1642
    %s1647 = scalar_lea.vmem [#allocation1], 32
    %1648 = vst [vmem:[%s1647] ss:$4 sm:$0xff] %v1643
    %v1649 = vld.sshfl [vmem:[#allocation1] sm:$0xff pattern:$0x73625140]
    %v1650 = vld.sshfl [vmem:[#allocation1 + $0x8] sm:$0xff pattern:$0x73625140]
    %v1651 = vld.sshfl [vmem:[#allocation1 + $0x10] sm:$0xff pattern:$0x73625140]
    %v1652 = vld.sshfl [vmem:[#allocation1 + $0x18] sm:$0xff pattern:$0x73625140]
    %v1653 = vld.sshfl [vmem:[#allocation1 + $0x20] sm:$0xff pattern:$0x73625140]
    %v1659 = vpack.c.bf16 %v1649, %v1649
    %v1660 = vpack.c.bf16 %v1650, %v1650
    %v1661 = vpack.c.bf16 %v1651, %v1651
    %v1662 = vpack.c.bf16 %v1652, %v1652
    %v1663 = vpack.c.bf16 %v1653, %v1653
    %v1664 = vld [vmem:[#allocation2] sm:$0xff]
    %v1665 = vld [vmem:[#allocation2 + $0x8] sm:$0xff]
    %v1666 = vld [vmem:[#allocation2 + $0x10] sm:$0xff]
    %v1667 = vld [vmem:[#allocation2 + $0x18] sm:$0xff]
    %v1668 = vld [vmem:[#allocation2 + $0x20] sm:$0xff]
    %v1669 = vld [vmem:[#allocation2 + $0x28] sm:$0xff]
    %v1670 = vld [vmem:[#allocation2 + $0x38] sm:$0xff]
    %v1671 = vld [vmem:[#allocation2 + $0x40] sm:$0xff]
    %v1672 = vld [vmem:[#allocation2 + $0x48] sm:$0xff]
    %v1673 = vld [vmem:[#allocation2 + $0x50] sm:$0xff]
    %v1674 = vld [vmem:[#allocation2 + $0x58] sm:$0xff]
    %v1675 = vld [vmem:[#allocation2 + $0x60] sm:$0xff]
    %v1676 = vld [vmem:[#allocation2 + $0x70] sm:$0xff]
    %v1677 = vld [vmem:[#allocation2 + $0x78] sm:$0xff]
    %v1678 = vld [vmem:[#allocation2 + $0x80] sm:$0xff]
    %v1679 = vld [vmem:[#allocation2 + $0x88] sm:$0xff]
    %v1680 = vld [vmem:[#allocation2 + $0x90] sm:$0xff]
    %v1681 = vld [vmem:[#allocation2 + $0x98] sm:$0xff]
    %v1682 = vld [vmem:[#allocation2 + $0xa8] sm:$0xff]
    %v1683 = vld [vmem:[#allocation2 + $0xb0] sm:$0xff]
    %v1684 = vld [vmem:[#allocation2 + $0xb8] sm:$0xff]
    %v1685 = vld [vmem:[#allocation2 + $0xc0] sm:$0xff]
    %v1686 = vld [vmem:[#allocation2 + $0xc8] sm:$0xff]
    %v1687 = vld [vmem:[#allocation2 + $0xd0] sm:$0xff]
    %v1688 = vld [vmem:[#allocation2 + $0xe0] sm:$0xff]
    %v1689 = vld [vmem:[#allocation2 + $0xe8] sm:$0xff]
    %v1690 = vld [vmem:[#allocation2 + $0xf0] sm:$0xff]
    %v1691 = vld [vmem:[#allocation2 + $0xf8] sm:$0xff]
    %v1692 = vld [vmem:[#allocation2 + $0x100] sm:$0xff]
    %v1693 = vld [vmem:[#allocation2 + $0x108] sm:$0xff]
    %v1694 = vld [vmem:[#allocation2 + $0x118] sm:$0xff]
    %v1695 = vld [vmem:[#allocation2 + $0x120] sm:$0xff]
    %v1696 = vld [vmem:[#allocation2 + $0x128] sm:$0xff]
    %v1697 = vld [vmem:[#allocation2 + $0x130] sm:$0xff]
    %v1698 = vld [vmem:[#allocation2 + $0x138] sm:$0xff]
    %v1699 = vld [vmem:[#allocation2 + $0x140] sm:$0xff]
    %v1700 = vld [vmem:[#allocation2 + $0x150] sm:$0xff]
    %v1701 = vld [vmem:[#allocation2 + $0x158] sm:$0xff]
    %v1702 = vld [vmem:[#allocation2 + $0x160] sm:$0xff]
    %v1703 = vld [vmem:[#allocation2 + $0x168] sm:$0xff]
    %v1704 = vld [vmem:[#allocation2 + $0x170] sm:$0xff]
    %v1705 = vld [vmem:[#allocation2 + $0x178] sm:$0xff]
    %v1706 = vld [vmem:[#allocation2 + $0x188] sm:$0xff]
    %v1707 = vld [vmem:[#allocation2 + $0x190] sm:$0xff]
    %v1708 = vld [vmem:[#allocation2 + $0x198] sm:$0xff]
    %v1709 = vld [vmem:[#allocation2 + $0x1a0] sm:$0xff]
    %v1710 = vld [vmem:[#allocation2 + $0x1a8] sm:$0xff]
    %v1711 = vld [vmem:[#allocation2 + $0x1b0] sm:$0xff]
    %v1712 = vld [vmem:[#allocation2 + $0x1c0] sm:$0xff]
    %v1713 = vld [vmem:[#allocation2 + $0x1c8] sm:$0xff]
    %v1714 = vld [vmem:[#allocation2 + $0x1d0] sm:$0xff]
    %v1715 = vld [vmem:[#allocation2 + $0x1d8] sm:$0xff]
    %v1716 = vld [vmem:[#allocation2 + $0x1e0] sm:$0xff]
    %v1717 = vld [vmem:[#allocation2 + $0x1e8] sm:$0xff]
    %v1718 = vld [vmem:[#allocation2 + $0x1f8] sm:$0xff]
    %v1719 = vld [vmem:[#allocation2 + $0x200] sm:$0xff]
    %v1720 = vld [vmem:[#allocation2 + $0x208] sm:$0xff]
    %v1721 = vld [vmem:[#allocation2 + $0x210] sm:$0xff]
    %v1722 = vld [vmem:[#allocation2 + $0x218] sm:$0xff]
    %v1723 = vld [vmem:[#allocation2 + $0x220] sm:$0xff]
    %v1724 = vld [vmem:[#allocation2 + $0x230] sm:$0xff]
    %v1725 = vld [vmem:[#allocation2 + $0x238] sm:$0xff]
    %v1726 = vld [vmem:[#allocation2 + $0x240] sm:$0xff]
    %v1727 = vld [vmem:[#allocation2 + $0x248] sm:$0xff]
    %v1728 = vld [vmem:[#allocation2 + $0x250] sm:$0xff]
    %v1729 = vld [vmem:[#allocation2 + $0x258] sm:$0xff]
    %v1730 = vld [vmem:[#allocation2 + $0x268] sm:$0xff]
    %v1731 = vld [vmem:[#allocation2 + $0x270] sm:$0xff]
    %v1732 = vld [vmem:[#allocation2 + $0x278] sm:$0xff]
    %v1733 = vld [vmem:[#allocation2 + $0x280] sm:$0xff]
    %v1734 = vld [vmem:[#allocation2 + $0x288] sm:$0xff]
    %v1735 = vld [vmem:[#allocation2 + $0x290] sm:$0xff]
    %v1736 = vld [vmem:[#allocation2 + $0x2a0] sm:$0xff]
    %v1737 = vld [vmem:[#allocation2 + $0x2a8] sm:$0xff]
    %v1738 = vld [vmem:[#allocation2 + $0x2b0] sm:$0xff]
    %v1739 = vld [vmem:[#allocation2 + $0x2b8] sm:$0xff]
    %v1740 = vld [vmem:[#allocation2 + $0x2c0] sm:$0xff]
    %v1741 = vld [vmem:[#allocation2 + $0x2c8] sm:$0xff]
    %v1742 = vld [vmem:[#allocation2 + $0x2d8] sm:$0xff]
    %v1743 = vld [vmem:[#allocation2 + $0x2e0] sm:$0xff]
    %v1744 = vld [vmem:[#allocation2 + $0x2e8] sm:$0xff]
    %v1745 = vld [vmem:[#allocation2 + $0x2f0] sm:$0xff]
    %v1746 = vld [vmem:[#allocation2 + $0x2f8] sm:$0xff]
    %v1747 = vld [vmem:[#allocation2 + $0x300] sm:$0xff]
    %v1748 = vld [vmem:[#allocation2 + $0x310] sm:$0xff]
    %v1749 = vld [vmem:[#allocation2 + $0x318] sm:$0xff]
    %v1750 = vld [vmem:[#allocation2 + $0x320] sm:$0xff]
    %v1751 = vld [vmem:[#allocation2 + $0x328] sm:$0xff]
    %v1752 = vld [vmem:[#allocation2 + $0x330] sm:$0xff]
    %v1753 = vld [vmem:[#allocation2 + $0x338] sm:$0xff]
    %v1754 = vld [vmem:[#allocation2 + $0x348] sm:$0xff]
    %v1755 = vld [vmem:[#allocation2 + $0x350] sm:$0xff]
    %v1756 = vld [vmem:[#allocation2 + $0x358] sm:$0xff]
    %v1757 = vld [vmem:[#allocation2 + $0x360] sm:$0xff]
    %v1758 = vld [vmem:[#allocation2 + $0x368] sm:$0xff]
    %v1759 = vld [vmem:[#allocation2 + $0x370] sm:$0xff]
    %v1760 = vld [vmem:[#allocation2 + $0x380] sm:$0xff]
    %v1761 = vld [vmem:[#allocation2 + $0x388] sm:$0xff]
    %v1762 = vld [vmem:[#allocation2 + $0x390] sm:$0xff]
    %v1763 = vld [vmem:[#allocation2 + $0x398] sm:$0xff]
    %v1764 = vld [vmem:[#allocation2 + $0x3a0] sm:$0xff]
    %v1765 = vld [vmem:[#allocation2 + $0x3a8] sm:$0xff]
    %v1766 = vld [vmem:[#allocation2 + $0x3b8] sm:$0xff]
    %v1767 = vld [vmem:[#allocation2 + $0x3c0] sm:$0xff]
    %v1768 = vld [vmem:[#allocation2 + $0x3c8] sm:$0xff]
    %v1769 = vld [vmem:[#allocation2 + $0x3d0] sm:$0xff]
    %v1770 = vld [vmem:[#allocation2 + $0x3d8] sm:$0xff]
    %v1771 = vld [vmem:[#allocation2 + $0x3e0] sm:$0xff]
    %v1772 = vld [vmem:[#allocation2 + $0x3f0] sm:$0xff]
    %v1773 = vld [vmem:[#allocation2 + $0x3f8] sm:$0xff]
    %v1774 = vld [vmem:[#allocation2 + $0x400] sm:$0xff]
    %v1775 = vld [vmem:[#allocation2 + $0x408] sm:$0xff]
    %v1776 = vld [vmem:[#allocation2 + $0x410] sm:$0xff]
    %v1777 = vld [vmem:[#allocation2 + $0x418] sm:$0xff]
    %v1778 = vld [vmem:[#allocation2 + $0x428] sm:$0xff]
    %v1779 = vld [vmem:[#allocation2 + $0x430] sm:$0xff]
    %v1780 = vld [vmem:[#allocation2 + $0x438] sm:$0xff]
    %v1781 = vld [vmem:[#allocation2 + $0x440] sm:$0xff]
    %v1782 = vld [vmem:[#allocation2 + $0x448] sm:$0xff]
    %v1783 = vld [vmem:[#allocation2 + $0x450] sm:$0xff]
    %v1784 = vld [vmem:[#allocation2 + $0x460] sm:$0xff]
    %v1785 = vld [vmem:[#allocation2 + $0x468] sm:$0xff]
    %v1786 = vld [vmem:[#allocation2 + $0x470] sm:$0xff]
    %v1787 = vld [vmem:[#allocation2 + $0x478] sm:$0xff]
    %v1788 = vld [vmem:[#allocation2 + $0x480] sm:$0xff]
    %v1789 = vld [vmem:[#allocation2 + $0x488] sm:$0xff]
    %v1790 = vld [vmem:[#allocation2 + $0x498] sm:$0xff]
    %v1791 = vld [vmem:[#allocation2 + $0x4a0] sm:$0xff]
    %v1792 = vld [vmem:[#allocation2 + $0x4a8] sm:$0xff]
    %v1793 = vld [vmem:[#allocation2 + $0x4b0] sm:$0xff]
    %v1794 = vld [vmem:[#allocation2 + $0x4b8] sm:$0xff]
    %v1795 = vld [vmem:[#allocation2 + $0x4c0] sm:$0xff]
    %v1796 = vld [vmem:[#allocation2 + $0x4d0] sm:$0xff]
    %v1797 = vld [vmem:[#allocation2 + $0x4d8] sm:$0xff]
    %v1798 = vld [vmem:[#allocation2 + $0x4e0] sm:$0xff]
    %v1799 = vld [vmem:[#allocation2 + $0x4e8] sm:$0xff]
    %v1800 = vld [vmem:[#allocation2 + $0x4f0] sm:$0xff]
    %v1801 = vld [vmem:[#allocation2 + $0x4f8] sm:$0xff]
    %v1802 = vld [vmem:[#allocation2 + $0x508] sm:$0xff]
    %v1803 = vld [vmem:[#allocation2 + $0x510] sm:$0xff]
    %v1804 = vld [vmem:[#allocation2 + $0x518] sm:$0xff]
    %v1805 = vld [vmem:[#allocation2 + $0x520] sm:$0xff]
    %v1806 = vld [vmem:[#allocation2 + $0x528] sm:$0xff]
    %v1807 = vld [vmem:[#allocation2 + $0x530] sm:$0xff]
    %v1808 = vld [vmem:[#allocation2 + $0x540] sm:$0xff]
    %v1809 = vld [vmem:[#allocation2 + $0x548] sm:$0xff]
    %v1810 = vld [vmem:[#allocation2 + $0x550] sm:$0xff]
    %v1811 = vld [vmem:[#allocation2 + $0x558] sm:$0xff]
    %v1812 = vld [vmem:[#allocation2 + $0x560] sm:$0xff]
    %v1813 = vld [vmem:[#allocation2 + $0x568] sm:$0xff]
    %v1814 = vld [vmem:[#allocation2 + $0x578] sm:$0xff]
    %v1815 = vld [vmem:[#allocation2 + $0x580] sm:$0xff]
    %v1816 = vld [vmem:[#allocation2 + $0x588] sm:$0xff]
    %v1817 = vld [vmem:[#allocation2 + $0x590] sm:$0xff]
    %v1818 = vld [vmem:[#allocation2 + $0x598] sm:$0xff]
    %v1819 = vld [vmem:[#allocation2 + $0x5a0] sm:$0xff]
    %v1820 = vld [vmem:[#allocation2 + $0x5b0] sm:$0xff]
    %v1821 = vld [vmem:[#allocation2 + $0x5b8] sm:$0xff]
    %v1822 = vld [vmem:[#allocation2 + $0x5c0] sm:$0xff]
    %v1823 = vld [vmem:[#allocation2 + $0x5c8] sm:$0xff]
    %v1824 = vld [vmem:[#allocation2 + $0x5d0] sm:$0xff]
    %v1825 = vld [vmem:[#allocation2 + $0x5d8] sm:$0xff]
    %v1826 = vld [vmem:[#allocation2 + $0x5e8] sm:$0xff]
    %v1827 = vld [vmem:[#allocation2 + $0x5f0] sm:$0xff]
    %v1828 = vld [vmem:[#allocation2 + $0x5f8] sm:$0xff]
    %v1829 = vld [vmem:[#allocation2 + $0x600] sm:$0xff]
    %v1830 = vld [vmem:[#allocation2 + $0x608] sm:$0xff]
    %v1831 = vld [vmem:[#allocation2 + $0x610] sm:$0xff]
    %v1832 = vld [vmem:[#allocation2 + $0x620] sm:$0xff]
    %v1833 = vld [vmem:[#allocation2 + $0x628] sm:$0xff]
    %v1834 = vld [vmem:[#allocation2 + $0x630] sm:$0xff]
    %v1835 = vld [vmem:[#allocation2 + $0x638] sm:$0xff]
    %v1836 = vld [vmem:[#allocation2 + $0x640] sm:$0xff]
    %v1837 = vld [vmem:[#allocation2 + $0x648] sm:$0xff]
    %v1838 = vld [vmem:[#allocation2 + $0x658] sm:$0xff]
    %v1839 = vld [vmem:[#allocation2 + $0x660] sm:$0xff]
    %v1840 = vld [vmem:[#allocation2 + $0x668] sm:$0xff]
    %v1841 = vld [vmem:[#allocation2 + $0x670] sm:$0xff]
    %v1842 = vld [vmem:[#allocation2 + $0x678] sm:$0xff]
    %v1843 = vld [vmem:[#allocation2 + $0x680] sm:$0xff]
    %v1844 = vld [vmem:[#allocation2 + $0x690] sm:$0xff]
    %v1845 = vld [vmem:[#allocation2 + $0x698] sm:$0xff]
    %v1846 = vld [vmem:[#allocation2 + $0x6a0] sm:$0xff]
    %v1847 = vld [vmem:[#allocation2 + $0x6a8] sm:$0xff]
    %v1848 = vld [vmem:[#allocation2 + $0x6b0] sm:$0xff]
    %v1849 = vld [vmem:[#allocation2 + $0x6b8] sm:$0xff]
    %v1850 = vld [vmem:[#allocation2 + $0x6c8] sm:$0xff]
    %v1851 = vld [vmem:[#allocation2 + $0x6d0] sm:$0xff]
    %v1852 = vld [vmem:[#allocation2 + $0x6d8] sm:$0xff]
    %v1853 = vld [vmem:[#allocation2 + $0x6e0] sm:$0xff]
    %v1854 = vld [vmem:[#allocation2 + $0x6e8] sm:$0xff]
    %v1855 = vld [vmem:[#allocation2 + $0x6f0] sm:$0xff]
    %v1856 = vld [vmem:[#allocation2 + $0x700] sm:$0xff]
    %v1857 = vld [vmem:[#allocation2 + $0x708] sm:$0xff]
    %v1858 = vld [vmem:[#allocation2 + $0x710] sm:$0xff]
    %v1859 = vld [vmem:[#allocation2 + $0x718] sm:$0xff]
    %v1860 = vld [vmem:[#allocation2 + $0x720] sm:$0xff]
    %v1861 = vld [vmem:[#allocation2 + $0x728] sm:$0xff]
    %v1862 = vld [vmem:[#allocation2 + $0x738] sm:$0xff]
    %v1863 = vld [vmem:[#allocation2 + $0x740] sm:$0xff]
    %v1864 = vld [vmem:[#allocation2 + $0x748] sm:$0xff]
    %v1865 = vld [vmem:[#allocation2 + $0x750] sm:$0xff]
    %v1866 = vld [vmem:[#allocation2 + $0x758] sm:$0xff]
    %v1867 = vld [vmem:[#allocation2 + $0x760] sm:$0xff]
    %v1868 = vld [vmem:[#allocation2 + $0x770] sm:$0xff]
    %v1869 = vld [vmem:[#allocation2 + $0x778] sm:$0xff]
    %v1870 = vld [vmem:[#allocation2 + $0x780] sm:$0xff]
    %v1871 = vld [vmem:[#allocation2 + $0x788] sm:$0xff]
    %v1872 = vld [vmem:[#allocation2 + $0x790] sm:$0xff]
    %v1873 = vld [vmem:[#allocation2 + $0x798] sm:$0xff]
    %v1874 = vld [vmem:[#allocation2 + $0x7a8] sm:$0xff]
    %v1875 = vld [vmem:[#allocation2 + $0x7b0] sm:$0xff]
    %v1876 = vld [vmem:[#allocation2 + $0x7b8] sm:$0xff]
    %v1877 = vld [vmem:[#allocation2 + $0x7c0] sm:$0xff]
    %v1878 = vld [vmem:[#allocation2 + $0x7c8] sm:$0xff]
    %v1879 = vld [vmem:[#allocation2 + $0x7d0] sm:$0xff]
    %v1880 = vld [vmem:[#allocation2 + $0x7e0] sm:$0xff]
    %v1881 = vld [vmem:[#allocation2 + $0x7e8] sm:$0xff]
    %v1882 = vld [vmem:[#allocation2 + $0x7f0] sm:$0xff]
    %v1883 = vld [vmem:[#allocation2 + $0x7f8] sm:$0xff]
    %v1884 = vld [vmem:[#allocation2 + $0x800] sm:$0xff]
    %v1885 = vld [vmem:[#allocation2 + $0x808] sm:$0xff]
    %v1886 = vld [vmem:[#allocation2 + $0x818] sm:$0xff]
    %v1887 = vld [vmem:[#allocation2 + $0x820] sm:$0xff]
    %v1888 = vld [vmem:[#allocation2 + $0x828] sm:$0xff]
    %v1889 = vld [vmem:[#allocation2 + $0x830] sm:$0xff]
    %v1890 = vld [vmem:[#allocation2 + $0x838] sm:$0xff]
    %v1891 = vld [vmem:[#allocation2 + $0x840] sm:$0xff]
    %v1892 = vld [vmem:[#allocation2 + $0x850] sm:$0xff]
    %v1893 = vld [vmem:[#allocation2 + $0x858] sm:$0xff]
    %v1894 = vld [vmem:[#allocation2 + $0x860] sm:$0xff]
    %v1895 = vld [vmem:[#allocation2 + $0x868] sm:$0xff]
    %v1896 = vld [vmem:[#allocation2 + $0x870] sm:$0xff]
    %v1897 = vld [vmem:[#allocation2 + $0x878] sm:$0xff]
    %v1898 = vld [vmem:[#allocation2 + $0x888] sm:$0xff]
    %v1899 = vld [vmem:[#allocation2 + $0x890] sm:$0xff]
    %v1900 = vld [vmem:[#allocation2 + $0x898] sm:$0xff]
    %v1901 = vld [vmem:[#allocation2 + $0x8a0] sm:$0xff]
    %v1902 = vld [vmem:[#allocation2 + $0x8a8] sm:$0xff]
    %v1903 = vld [vmem:[#allocation2 + $0x8b0] sm:$0xff]
    %v1904 = vld [vmem:[#allocation2 + $0x8c0] sm:$0xff]
    %v1905 = vld [vmem:[#allocation2 + $0x8c8] sm:$0xff]
    %v1906 = vld [vmem:[#allocation2 + $0x8d0] sm:$0xff]
    %v1907 = vld [vmem:[#allocation2 + $0x8d8] sm:$0xff]
    %v1908 = vld [vmem:[#allocation2 + $0x8e0] sm:$0xff]
    %v1909 = vld [vmem:[#allocation2 + $0x8e8] sm:$0xff]
    %v1910 = vld [vmem:[#allocation2 + $0x8f8] sm:$0xff]
    %v1911 = vld [vmem:[#allocation2 + $0x900] sm:$0xff]
    %v1912 = vld [vmem:[#allocation2 + $0x908] sm:$0xff]
    %v1913 = vld [vmem:[#allocation2 + $0x910] sm:$0xff]
    %v1914 = vld [vmem:[#allocation2 + $0x918] sm:$0xff]
    %v1915 = vld [vmem:[#allocation2 + $0x920] sm:$0xff]
    %v1916 = vld [vmem:[#allocation2 + $0x930] sm:$0xff]
    %v1917 = vld [vmem:[#allocation2 + $0x938] sm:$0xff]
    %v1918 = vld [vmem:[#allocation2 + $0x940] sm:$0xff]
    %v1919 = vld [vmem:[#allocation2 + $0x948] sm:$0xff]
    %v1920 = vld [vmem:[#allocation2 + $0x950] sm:$0xff]
    %v1921 = vld [vmem:[#allocation2 + $0x958] sm:$0xff]
    %v1922 = vld [vmem:[#allocation2 + $0x968] sm:$0xff]
    %v1923 = vld [vmem:[#allocation2 + $0x970] sm:$0xff]
    %v1924 = vld [vmem:[#allocation2 + $0x978] sm:$0xff]
    %v1925 = vld [vmem:[#allocation2 + $0x980] sm:$0xff]
    %v1926 = vld [vmem:[#allocation2 + $0x988] sm:$0xff]
    %v1927 = vld [vmem:[#allocation2 + $0x990] sm:$0xff]
    %v1928 = vld [vmem:[#allocation2 + $0x9a0] sm:$0xff]
    %v1929 = vld [vmem:[#allocation2 + $0x9a8] sm:$0xff]
    %v1930 = vld [vmem:[#allocation2 + $0x9b0] sm:$0xff]
    %v1931 = vld [vmem:[#allocation2 + $0x9b8] sm:$0xff]
    %v1932 = vld [vmem:[#allocation2 + $0x9c0] sm:$0xff]
    %v1933 = vld [vmem:[#allocation2 + $0x9c8] sm:$0xff]
    %v1934 = vld [vmem:[#allocation2 + $0x9d8] sm:$0xff]
    %v1935 = vld [vmem:[#allocation2 + $0x9e0] sm:$0xff]
    %v1936 = vld [vmem:[#allocation2 + $0x9e8] sm:$0xff]
    %v1937 = vld [vmem:[#allocation2 + $0x9f0] sm:$0xff]
    %v1938 = vld [vmem:[#allocation2 + $0x9f8] sm:$0xff]
    %v1939 = vld [vmem:[#allocation2 + $0xa00] sm:$0xff]
    %v1940 = vld [vmem:[#allocation2 + $0xa10] sm:$0xff]
    %v1941 = vld [vmem:[#allocation2 + $0xa18] sm:$0xff]
    %v1942 = vld [vmem:[#allocation2 + $0xa20] sm:$0xff]
    %v1943 = vld [vmem:[#allocation2 + $0xa28] sm:$0xff]
    %v1944 = vld [vmem:[#allocation2 + $0xa30] sm:$0xff]
    %v1945 = vld [vmem:[#allocation2 + $0xa38] sm:$0xff]
    %v1946 = vld [vmem:[#allocation2 + $0xa48] sm:$0xff]
    %v1947 = vld [vmem:[#allocation2 + $0xa50] sm:$0xff]
    %v1948 = vld [vmem:[#allocation2 + $0xa58] sm:$0xff]
    %v1949 = vld [vmem:[#allocation2 + $0xa60] sm:$0xff]
    %v1950 = vld [vmem:[#allocation2 + $0xa68] sm:$0xff]
    %v1951 = vld [vmem:[#allocation2 + $0xa70] sm:$0xff]
    %v1952 = vld [vmem:[#allocation2 + $0xa80] sm:$0xff]
    %v1953 = vld [vmem:[#allocation2 + $0xa88] sm:$0xff]
    %v1954 = vld [vmem:[#allocation2 + $0xa90] sm:$0xff]
    %v1955 = vld [vmem:[#allocation2 + $0xa98] sm:$0xff]
    %v1956 = vld [vmem:[#allocation2 + $0xaa0] sm:$0xff]
    %v1957 = vld [vmem:[#allocation2 + $0xaa8] sm:$0xff]
    %v1958 = vld [vmem:[#allocation2 + $0xab8] sm:$0xff]
    %v1959 = vld [vmem:[#allocation2 + $0xac0] sm:$0xff]
    %v1960 = vld [vmem:[#allocation2 + $0xac8] sm:$0xff]
    %v1961 = vld [vmem:[#allocation2 + $0xad0] sm:$0xff]
    %v1962 = vld [vmem:[#allocation2 + $0xad8] sm:$0xff]
    %v1963 = vld [vmem:[#allocation2 + $0xae0] sm:$0xff]
    %v1964 = vld [vmem:[#allocation2 + $0xaf0] sm:$0xff]
    %v1965 = vld [vmem:[#allocation2 + $0xaf8] sm:$0xff]
    %v1966 = vld [vmem:[#allocation2 + $0xb00] sm:$0xff]
    %v1967 = vld [vmem:[#allocation2 + $0xb08] sm:$0xff]
    %v1968 = vld [vmem:[#allocation2 + $0xb10] sm:$0xff]
    %v1969 = vld [vmem:[#allocation2 + $0xb18] sm:$0xff]
    %v1970 = vld [vmem:[#allocation2 + $0xb28] sm:$0xff]
    %v1971 = vld [vmem:[#allocation2 + $0xb30] sm:$0xff]
    %v1972 = vld [vmem:[#allocation2 + $0xb38] sm:$0xff]
    %v1973 = vld [vmem:[#allocation2 + $0xb40] sm:$0xff]
    %v1974 = vld [vmem:[#allocation2 + $0xb48] sm:$0xff]
    %v1975 = vld [vmem:[#allocation2 + $0xb50] sm:$0xff]
    %v1976 = vld [vmem:[#allocation2 + $0xb60] sm:$0xff]
    %v1977 = vld [vmem:[#allocation2 + $0xb68] sm:$0xff]
    %v1978 = vld [vmem:[#allocation2 + $0xb70] sm:$0xff]
    %v1979 = vld [vmem:[#allocation2 + $0xb78] sm:$0xff]
    %v1980 = vld [vmem:[#allocation2 + $0xb80] sm:$0xff]
    %v1981 = vld [vmem:[#allocation2 + $0xb88] sm:$0xff]
    %v1982 = vld [vmem:[#allocation2 + $0xb98] sm:$0xff]
    %v1983 = vld [vmem:[#allocation2 + $0xba0] sm:$0xff]
    %v1984 = vld [vmem:[#allocation2 + $0xba8] sm:$0xff]
    %v1985 = vld [vmem:[#allocation2 + $0xbb0] sm:$0xff]
    %v1986 = vld [vmem:[#allocation2 + $0xbb8] sm:$0xff]
    %v1987 = vld [vmem:[#allocation2 + $0xbc0] sm:$0xff]
    %v1988 = vld [vmem:[#allocation2 + $0xbd0] sm:$0xff]
    %v1989 = vld [vmem:[#allocation2 + $0xbd8] sm:$0xff]
    %v1990 = vld [vmem:[#allocation2 + $0xbe0] sm:$0xff]
    %v1991 = vld [vmem:[#allocation2 + $0xbe8] sm:$0xff]
    %v1992 = vld [vmem:[#allocation2 + $0xbf0] sm:$0xff]
    %v1993 = vld [vmem:[#allocation2 + $0xbf8] sm:$0xff]
    %v1994 = vld [vmem:[#allocation2 + $0xc08] sm:$0xff]
    %v1995 = vld [vmem:[#allocation2 + $0xc10] sm:$0xff]
    %v1996 = vld [vmem:[#allocation2 + $0xc18] sm:$0xff]
    %v1997 = vld [vmem:[#allocation2 + $0xc20] sm:$0xff]
    %v1998 = vld [vmem:[#allocation2 + $0xc28] sm:$0xff]
    %v1999 = vld [vmem:[#allocation2 + $0xc30] sm:$0xff]
    %v2000 = vld [vmem:[#allocation2 + $0xc40] sm:$0xff]
    %v2001 = vld [vmem:[#allocation2 + $0xc48] sm:$0xff]
    %v2002 = vld [vmem:[#allocation2 + $0xc50] sm:$0xff]
    %v2003 = vld [vmem:[#allocation2 + $0xc58] sm:$0xff]
    %v2004 = vld [vmem:[#allocation2 + $0xc60] sm:$0xff]
    %v2005 = vld [vmem:[#allocation2 + $0xc68] sm:$0xff]
    %v2006 = vld [vmem:[#allocation2 + $0xc78] sm:$0xff]
    %v2007 = vld [vmem:[#allocation2 + $0xc80] sm:$0xff]
    %v2008 = vld [vmem:[#allocation2 + $0xc88] sm:$0xff]
    %v2009 = vld [vmem:[#allocation2 + $0xc90] sm:$0xff]
    %v2010 = vld [vmem:[#allocation2 + $0xc98] sm:$0xff]
    %v2011 = vld [vmem:[#allocation2 + $0xca0] sm:$0xff]
    %v2012 = vld [vmem:[#allocation2 + $0xcb0] sm:$0xff]
    %v2013 = vld [vmem:[#allocation2 + $0xcb8] sm:$0xff]
    %v2014 = vld [vmem:[#allocation2 + $0xcc0] sm:$0xff]
    %v2015 = vld [vmem:[#allocation2 + $0xcc8] sm:$0xff]
    %v2016 = vld [vmem:[#allocation2 + $0xcd0] sm:$0xff]
    %v2017 = vld [vmem:[#allocation2 + $0xcd8] sm:$0xff]
    %v2018 = vld [vmem:[#allocation2 + $0xce8] sm:$0xff]
    %v2019 = vld [vmem:[#allocation2 + $0xcf0] sm:$0xff]
    %v2020 = vld [vmem:[#allocation2 + $0xcf8] sm:$0xff]
    %v2021 = vld [vmem:[#allocation2 + $0xd00] sm:$0xff]
    %v2022 = vld [vmem:[#allocation2 + $0xd08] sm:$0xff]
    %v2023 = vld [vmem:[#allocation2 + $0xd10] sm:$0xff]
    %v2024 = vld [vmem:[#allocation2 + $0xd20] sm:$0xff]
    %v2025 = vld [vmem:[#allocation2 + $0xd28] sm:$0xff]
    %v2026 = vld [vmem:[#allocation2 + $0xd30] sm:$0xff]
    %v2027 = vld [vmem:[#allocation2 + $0xd38] sm:$0xff]
    %v2028 = vld [vmem:[#allocation2 + $0xd40] sm:$0xff]
    %v2029 = vld [vmem:[#allocation2 + $0xd48] sm:$0xff]
    %v2030 = vld [vmem:[#allocation2 + $0xd58] sm:$0xff]
    %v2031 = vld [vmem:[#allocation2 + $0xd60] sm:$0xff]
    %v2032 = vld [vmem:[#allocation2 + $0xd68] sm:$0xff]
    %v2033 = vld [vmem:[#allocation2 + $0xd70] sm:$0xff]
    %v2034 = vld [vmem:[#allocation2 + $0xd78] sm:$0xff]
    %v2035 = vld [vmem:[#allocation2 + $0xd80] sm:$0xff]
    %v2036 = vld [vmem:[#allocation2 + $0xd90] sm:$0xff]
    %v2037 = vld [vmem:[#allocation2 + $0xd98] sm:$0xff]
    %v2038 = vld [vmem:[#allocation2 + $0xda0] sm:$0xff]
    %v2039 = vld [vmem:[#allocation2 + $0xda8] sm:$0xff]
    %v2040 = vld [vmem:[#allocation2 + $0xdb0] sm:$0xff]
    %v2041 = vld [vmem:[#allocation2 + $0xdb8] sm:$0xff]
    %v2042 = vld [vmem:[#allocation2 + $0xdc8] sm:$0xff]
    %v2043 = vld [vmem:[#allocation2 + $0xdd0] sm:$0xff]
    %v2044 = vld [vmem:[#allocation2 + $0xdd8] sm:$0xff]
    %v2045 = vld [vmem:[#allocation2 + $0xde0] sm:$0xff]
    %v2046 = vld [vmem:[#allocation2 + $0xde8] sm:$0xff]
    %v2047 = vld [vmem:[#allocation2 + $0xdf0] sm:$0xff]
    %v2048 = vld [vmem:[#allocation2 + $0xe00] sm:$0xff]
    %v2049 = vld [vmem:[#allocation2 + $0xe08] sm:$0xff]
    %v2050 = vld [vmem:[#allocation2 + $0xe10] sm:$0xff]
    %v2051 = vld [vmem:[#allocation2 + $0xe18] sm:$0xff]
    %v2052 = vld [vmem:[#allocation2 + $0xe20] sm:$0xff]
    %v2053 = vld [vmem:[#allocation2 + $0xe28] sm:$0xff]
    %v2054 = vld [vmem:[#allocation2 + $0xe38] sm:$0xff]
    %v2055 = vld [vmem:[#allocation2 + $0xe40] sm:$0xff]
    %v2056 = vld [vmem:[#allocation2 + $0xe48] sm:$0xff]
    %v2057 = vld [vmem:[#allocation2 + $0xe50] sm:$0xff]
    %v2058 = vld [vmem:[#allocation2 + $0xe58] sm:$0xff]
    %v2059 = vld [vmem:[#allocation2 + $0xe60] sm:$0xff]
    %v2060 = vld [vmem:[#allocation2 + $0xe70] sm:$0xff]
    %v2061 = vld [vmem:[#allocation2 + $0xe78] sm:$0xff]
    %v2062 = vld [vmem:[#allocation2 + $0xe80] sm:$0xff]
    %v2063 = vld [vmem:[#allocation2 + $0xe88] sm:$0xff]
    %v2064 = vld [vmem:[#allocation2 + $0xe90] sm:$0xff]
    %v2065 = vld [vmem:[#allocation2 + $0xe98] sm:$0xff]
    %v2066 = vld [vmem:[#allocation2 + $0xea8] sm:$0xff]
    %v2067 = vld [vmem:[#allocation2 + $0xeb0] sm:$0xff]
    %v2068 = vld [vmem:[#allocation2 + $0xeb8] sm:$0xff]
    %v2069 = vld [vmem:[#allocation2 + $0xec0] sm:$0xff]
    %v2070 = vld [vmem:[#allocation2 + $0xec8] sm:$0xff]
    %v2071 = vld [vmem:[#allocation2 + $0xed0] sm:$0xff]
    %v2072 = vld [vmem:[#allocation2 + $0xee0] sm:$0xff]
    %v2073 = vld [vmem:[#allocation2 + $0xee8] sm:$0xff]
    %v2074 = vld [vmem:[#allocation2 + $0xef0] sm:$0xff]
    %v2075 = vld [vmem:[#allocation2 + $0xef8] sm:$0xff]
    %v2076 = vld [vmem:[#allocation2 + $0xf00] sm:$0xff]
    %v2077 = vld [vmem:[#allocation2 + $0xf08] sm:$0xff]
    %v2078 = vld [vmem:[#allocation2 + $0xf18] sm:$0xff]
    %v2079 = vld [vmem:[#allocation2 + $0xf20] sm:$0xff]
    %v2080 = vld [vmem:[#allocation2 + $0xf28] sm:$0xff]
    %v2081 = vld [vmem:[#allocation2 + $0xf30] sm:$0xff]
    %v2082 = vld [vmem:[#allocation2 + $0xf38] sm:$0xff]
    %v2083 = vld [vmem:[#allocation2 + $0xf40] sm:$0xff]
    %v2084 = vld [vmem:[#allocation2 + $0xf50] sm:$0xff]
    %v2085 = vld [vmem:[#allocation2 + $0xf58] sm:$0xff]
    %v2086 = vld [vmem:[#allocation2 + $0xf60] sm:$0xff]
    %v2087 = vld [vmem:[#allocation2 + $0xf68] sm:$0xff]
    %v2088 = vld [vmem:[#allocation2 + $0xf70] sm:$0xff]
    %v2089 = vld [vmem:[#allocation2 + $0xf78] sm:$0xff]
    %v2090 = vld [vmem:[#allocation2 + $0xf88] sm:$0xff]
    %v2091 = vld [vmem:[#allocation2 + $0xf90] sm:$0xff]
    %v2092 = vld [vmem:[#allocation2 + $0xf98] sm:$0xff]
    %v2093 = vld [vmem:[#allocation2 + $0xfa0] sm:$0xff]
    %v2094 = vld [vmem:[#allocation2 + $0xfa8] sm:$0xff]
    %v2095 = vld [vmem:[#allocation2 + $0xfb0] sm:$0xff]
    %v2096 = vld [vmem:[#allocation2 + $0xfc0] sm:$0xff]
    %v2097 = vld [vmem:[#allocation2 + $0xfc8] sm:$0xff]
    %v2098 = vld [vmem:[#allocation2 + $0xfd0] sm:$0xff]
    %v2099 = vld [vmem:[#allocation2 + $0xfd8] sm:$0xff]
    %v2100 = vld [vmem:[#allocation2 + $0xfe0] sm:$0xff]
    %v2101 = vld [vmem:[#allocation2 + $0xfe8] sm:$0xff]
    %v2102 = vld [vmem:[#allocation2 + $0xff8] sm:$0xff]
    %v2103 = vld [vmem:[#allocation2 + $0x1000] sm:$0xff]
    %v2104 = vld [vmem:[#allocation2 + $0x1008] sm:$0xff]
    %v2105 = vld [vmem:[#allocation2 + $0x1010] sm:$0xff]
    %v2106 = vld [vmem:[#allocation2 + $0x1018] sm:$0xff]
    %v2107 = vld [vmem:[#allocation2 + $0x1020] sm:$0xff]
    %v2108 = vld [vmem:[#allocation2 + $0x1030] sm:$0xff]
    %v2109 = vld [vmem:[#allocation2 + $0x1038] sm:$0xff]
    %v2110 = vld [vmem:[#allocation2 + $0x1040] sm:$0xff]
    %v2111 = vld [vmem:[#allocation2 + $0x1048] sm:$0xff]
    %v2112 = vld [vmem:[#allocation2 + $0x1050] sm:$0xff]
    %v2113 = vld [vmem:[#allocation2 + $0x1058] sm:$0xff]
    %v2114 = vld [vmem:[#allocation2 + $0x1068] sm:$0xff]
    %v2115 = vld [vmem:[#allocation2 + $0x1070] sm:$0xff]
    %v2116 = vld [vmem:[#allocation2 + $0x1078] sm:$0xff]
    %v2117 = vld [vmem:[#allocation2 + $0x1080] sm:$0xff]
    %v2118 = vld [vmem:[#allocation2 + $0x1088] sm:$0xff]
    %v2119 = vld [vmem:[#allocation2 + $0x1090] sm:$0xff]
    %v2120 = vld [vmem:[#allocation2 + $0x10a0] sm:$0xff]
    %v2121 = vld [vmem:[#allocation2 + $0x10a8] sm:$0xff]
    %v2122 = vld [vmem:[#allocation2 + $0x10b0] sm:$0xff]
    %v2123 = vld [vmem:[#allocation2 + $0x10b8] sm:$0xff]
    %v2124 = vld [vmem:[#allocation2 + $0x10c0] sm:$0xff]
    %v2125 = vld [vmem:[#allocation2 + $0x10c8] sm:$0xff]
    %v2126 = vld [vmem:[#allocation2 + $0x10d8] sm:$0xff]
    %v2127 = vld [vmem:[#allocation2 + $0x10e0] sm:$0xff]
    %v2128 = vld [vmem:[#allocation2 + $0x10e8] sm:$0xff]
    %v2129 = vld [vmem:[#allocation2 + $0x10f0] sm:$0xff]
    %v2130 = vld [vmem:[#allocation2 + $0x10f8] sm:$0xff]
    %v2131 = vld [vmem:[#allocation2 + $0x1100] sm:$0xff]
    %v2132 = vld [vmem:[#allocation10] sm:$0xff]
    %v2133 = vld [vmem:[#allocation10 + $0x8] sm:$0xf]
    %v2136 = vperm.slane %v2132, 0
    %v2137 = vperm.slane %v2132, 1
    %v2138 = vperm.slane %v2132, 2
    %v2139 = vperm.slane %v2132, 3
    %v2140 = vperm.slane %v2132, 4
    %v2141 = vperm.slane %v2132, 5
    %v2142 = vperm.slane %v2132, 6
    %v2143 = vperm.slane %v2132, 7
    %v2144 = vperm.slane %v2133, 0
    %v2145 = vperm.slane %v2133, 1
    %v2146 = vperm.slane %v2133, 2
    %v2147 = vperm.slane %v2133, 3
    %v2628 = vunpack.c.l.b16 %v1664
    %v2629 = vunpack.c.h.b16 %v1664
    %v2630 = vunpack.c.l.b16 %v1665
    %v2631 = vunpack.c.h.b16 %v1665
    %v2632 = vunpack.c.l.b16 %v1666
    %v2633 = vunpack.c.h.b16 %v1666
    %v2634 = vunpack.c.l.b16 %v1667
    %v2635 = vunpack.c.h.b16 %v1667
    %v2636 = vunpack.c.l.b16 %v1668
    %v2637 = vunpack.c.h.b16 %v1668
    %v2638 = vunpack.c.l.b16 %v1669
    %v2639 = vunpack.c.h.b16 %v1669
    %v2640 = vunpack.c.l.b16 %v1670
    %v2641 = vunpack.c.h.b16 %v1670
    %v2642 = vunpack.c.l.b16 %v1671
    %v2643 = vunpack.c.h.b16 %v1671
    %v2644 = vunpack.c.l.b16 %v1672
    %v2645 = vunpack.c.h.b16 %v1672
    %v2646 = vunpack.c.l.b16 %v1673
    %v2647 = vunpack.c.h.b16 %v1673
    %v2648 = vunpack.c.l.b16 %v1674
    %v2649 = vunpack.c.h.b16 %v1674
    %v2650 = vunpack.c.l.b16 %v1675
    %v2651 = vunpack.c.h.b16 %v1675
    %v2652 = vunpack.c.l.b16 %v1676
    %v2653 = vunpack.c.h.b16 %v1676
    %v2654 = vunpack.c.l.b16 %v1677
    %v2655 = vunpack.c.h.b16 %v1677
    %v2656 = vunpack.c.l.b16 %v1678
    %v2657 = vunpack.c.h.b16 %v1678
    %v2658 = vunpack.c.l.b16 %v1679
    %v2659 = vunpack.c.h.b16 %v1679
    %v2660 = vunpack.c.l.b16 %v1680
    %v2661 = vunpack.c.h.b16 %v1680
    %v2662 = vunpack.c.l.b16 %v1681
    %v2663 = vunpack.c.h.b16 %v1681
    %v2664 = vunpack.c.l.b16 %v1682
    %v2665 = vunpack.c.h.b16 %v1682
    %v2666 = vunpack.c.l.b16 %v1683
    %v2667 = vunpack.c.h.b16 %v1683
    %v2668 = vunpack.c.l.b16 %v1684
    %v2669 = vunpack.c.h.b16 %v1684
    %v2670 = vunpack.c.l.b16 %v1685
    %v2671 = vunpack.c.h.b16 %v1685
    %v2672 = vunpack.c.l.b16 %v1686
    %v2673 = vunpack.c.h.b16 %v1686
    %v2674 = vunpack.c.l.b16 %v1687
    %v2675 = vunpack.c.h.b16 %v1687
    %v2676 = vunpack.c.l.b16 %v1688
    %v2677 = vunpack.c.h.b16 %v1688
    %v2678 = vunpack.c.l.b16 %v1689
    %v2679 = vunpack.c.h.b16 %v1689
    %v2680 = vunpack.c.l.b16 %v1690
    %v2681 = vunpack.c.h.b16 %v1690
    %v2682 = vunpack.c.l.b16 %v1691
    %v2683 = vunpack.c.h.b16 %v1691
    %v2684 = vunpack.c.l.b16 %v1692
    %v2685 = vunpack.c.h.b16 %v1692
    %v2686 = vunpack.c.l.b16 %v1693
    %v2687 = vunpack.c.h.b16 %v1693
    %v2688 = vunpack.c.l.b16 %v1694
    %v2689 = vunpack.c.h.b16 %v1694
    %v2690 = vunpack.c.l.b16 %v1695
    %v2691 = vunpack.c.h.b16 %v1695
    %v2692 = vunpack.c.l.b16 %v1696
    %v2693 = vunpack.c.h.b16 %v1696
    %v2694 = vunpack.c.l.b16 %v1697
    %v2695 = vunpack.c.h.b16 %v1697
    %v2696 = vunpack.c.l.b16 %v1698
    %v2697 = vunpack.c.h.b16 %v1698
    %v2698 = vunpack.c.l.b16 %v1699
    %v2699 = vunpack.c.h.b16 %v1699
    %v2700 = vunpack.c.l.b16 %v1700
    %v2701 = vunpack.c.h.b16 %v1700
    %v2702 = vunpack.c.l.b16 %v1701
    %v2703 = vunpack.c.h.b16 %v1701
    %v2704 = vunpack.c.l.b16 %v1702
    %v2705 = vunpack.c.h.b16 %v1702
    %v2706 = vunpack.c.l.b16 %v1703
    %v2707 = vunpack.c.h.b16 %v1703
    %v2708 = vunpack.c.l.b16 %v1704
    %v2709 = vunpack.c.h.b16 %v1704
    %v2710 = vunpack.c.l.b16 %v1705
    %v2711 = vunpack.c.h.b16 %v1705
    %v2712 = vunpack.c.l.b16 %v1706
    %v2713 = vunpack.c.h.b16 %v1706
    %v2714 = vunpack.c.l.b16 %v1707
    %v2715 = vunpack.c.h.b16 %v1707
    %v2716 = vunpack.c.l.b16 %v1708
    %v2717 = vunpack.c.h.b16 %v1708
    %v2718 = vunpack.c.l.b16 %v1709
    %v2719 = vunpack.c.h.b16 %v1709
    %v2720 = vunpack.c.l.b16 %v1710
    %v2721 = vunpack.c.h.b16 %v1710
    %v2722 = vunpack.c.l.b16 %v1711
    %v2723 = vunpack.c.h.b16 %v1711
    %v2724 = vunpack.c.l.b16 %v1712
    %v2725 = vunpack.c.h.b16 %v1712
    %v2726 = vunpack.c.l.b16 %v1713
    %v2727 = vunpack.c.h.b16 %v1713
    %v2728 = vunpack.c.l.b16 %v1714
    %v2729 = vunpack.c.h.b16 %v1714
    %v2730 = vunpack.c.l.b16 %v1715
    %v2731 = vunpack.c.h.b16 %v1715
    %v2732 = vunpack.c.l.b16 %v1716
    %v2733 = vunpack.c.h.b16 %v1716
    %v2734 = vunpack.c.l.b16 %v1717
    %v2735 = vunpack.c.h.b16 %v1717
    %v2736 = vunpack.c.l.b16 %v1718
    %v2737 = vunpack.c.h.b16 %v1718
    %v2738 = vunpack.c.l.b16 %v1719
    %v2739 = vunpack.c.h.b16 %v1719
    %v2740 = vunpack.c.l.b16 %v1720
    %v2741 = vunpack.c.h.b16 %v1720
    %v2742 = vunpack.c.l.b16 %v1721
    %v2743 = vunpack.c.h.b16 %v1721
    %v2744 = vunpack.c.l.b16 %v1722
    %v2745 = vunpack.c.h.b16 %v1722
    %v2746 = vunpack.c.l.b16 %v1723
    %v2747 = vunpack.c.h.b16 %v1723
    %v2748 = vunpack.c.l.b16 %v1724
    %v2749 = vunpack.c.h.b16 %v1724
    %v2750 = vunpack.c.l.b16 %v1725
    %v2751 = vunpack.c.h.b16 %v1725
    %v2752 = vunpack.c.l.b16 %v1726
    %v2753 = vunpack.c.h.b16 %v1726
    %v2754 = vunpack.c.l.b16 %v1727
    %v2755 = vunpack.c.h.b16 %v1727
    %v2756 = vunpack.c.l.b16 %v1728
    %v2757 = vunpack.c.h.b16 %v1728
    %v2758 = vunpack.c.l.b16 %v1729
    %v2759 = vunpack.c.h.b16 %v1729
    %v2760 = vunpack.c.l.b16 %v1730
    %v2761 = vunpack.c.h.b16 %v1730
    %v2762 = vunpack.c.l.b16 %v1731
    %v2763 = vunpack.c.h.b16 %v1731
    %v2764 = vunpack.c.l.b16 %v1732
    %v2765 = vunpack.c.h.b16 %v1732
    %v2766 = vunpack.c.l.b16 %v1733
    %v2767 = vunpack.c.h.b16 %v1733
    %v2768 = vunpack.c.l.b16 %v1734
    %v2769 = vunpack.c.h.b16 %v1734
    %v2770 = vunpack.c.l.b16 %v1735
    %v2771 = vunpack.c.h.b16 %v1735
    %v2772 = vunpack.c.l.b16 %v1736
    %v2773 = vunpack.c.h.b16 %v1736
    %v2774 = vunpack.c.l.b16 %v1737
    %v2775 = vunpack.c.h.b16 %v1737
    %v2776 = vunpack.c.l.b16 %v1738
    %v2777 = vunpack.c.h.b16 %v1738
    %v2778 = vunpack.c.l.b16 %v1739
    %v2779 = vunpack.c.h.b16 %v1739
    %v2780 = vunpack.c.l.b16 %v1740
    %v2781 = vunpack.c.h.b16 %v1740
    %v2782 = vunpack.c.l.b16 %v1741
    %v2783 = vunpack.c.h.b16 %v1741
    %v2784 = vunpack.c.l.b16 %v1742
    %v2785 = vunpack.c.h.b16 %v1742
    %v2786 = vunpack.c.l.b16 %v1743
    %v2787 = vunpack.c.h.b16 %v1743
    %v2788 = vunpack.c.l.b16 %v1744
    %v2789 = vunpack.c.h.b16 %v1744
    %v2790 = vunpack.c.l.b16 %v1745
    %v2791 = vunpack.c.h.b16 %v1745
    %v2792 = vunpack.c.l.b16 %v1746
    %v2793 = vunpack.c.h.b16 %v1746
    %v2794 = vunpack.c.l.b16 %v1747
    %v2795 = vunpack.c.h.b16 %v1747
    %v2796 = vunpack.c.l.b16 %v1748
    %v2797 = vunpack.c.h.b16 %v1748
    %v2798 = vunpack.c.l.b16 %v1749
    %v2799 = vunpack.c.h.b16 %v1749
    %v2800 = vunpack.c.l.b16 %v1750
    %v2801 = vunpack.c.h.b16 %v1750
    %v2802 = vunpack.c.l.b16 %v1751
    %v2803 = vunpack.c.h.b16 %v1751
    %v2804 = vunpack.c.l.b16 %v1752
    %v2805 = vunpack.c.h.b16 %v1752
    %v2806 = vunpack.c.l.b16 %v1753
    %v2807 = vunpack.c.h.b16 %v1753
    %v2808 = vunpack.c.l.b16 %v1754
    %v2809 = vunpack.c.h.b16 %v1754
    %v2810 = vunpack.c.l.b16 %v1755
    %v2811 = vunpack.c.h.b16 %v1755
    %v2812 = vunpack.c.l.b16 %v1756
    %v2813 = vunpack.c.h.b16 %v1756
    %v2814 = vunpack.c.l.b16 %v1757
    %v2815 = vunpack.c.h.b16 %v1757
    %v2816 = vunpack.c.l.b16 %v1758
    %v2817 = vunpack.c.h.b16 %v1758
    %v2818 = vunpack.c.l.b16 %v1759
    %v2819 = vunpack.c.h.b16 %v1759
    %v2820 = vunpack.c.l.b16 %v1760
    %v2821 = vunpack.c.h.b16 %v1760
    %v2822 = vunpack.c.l.b16 %v1761
    %v2823 = vunpack.c.h.b16 %v1761
    %v2824 = vunpack.c.l.b16 %v1762
    %v2825 = vunpack.c.h.b16 %v1762
    %v2826 = vunpack.c.l.b16 %v1763
    %v2827 = vunpack.c.h.b16 %v1763
    %v2828 = vunpack.c.l.b16 %v1764
    %v2829 = vunpack.c.h.b16 %v1764
    %v2830 = vunpack.c.l.b16 %v1765
    %v2831 = vunpack.c.h.b16 %v1765
    %v2832 = vunpack.c.l.b16 %v1766
    %v2833 = vunpack.c.h.b16 %v1766
    %v2834 = vunpack.c.l.b16 %v1767
    %v2835 = vunpack.c.h.b16 %v1767
    %v2836 = vunpack.c.l.b16 %v1768
    %v2837 = vunpack.c.h.b16 %v1768
    %v2838 = vunpack.c.l.b16 %v1769
    %v2839 = vunpack.c.h.b16 %v1769
    %v2840 = vunpack.c.l.b16 %v1770
    %v2841 = vunpack.c.h.b16 %v1770
    %v2842 = vunpack.c.l.b16 %v1771
    %v2843 = vunpack.c.h.b16 %v1771
    %v2844 = vunpack.c.l.b16 %v1772
    %v2845 = vunpack.c.h.b16 %v1772
    %v2846 = vunpack.c.l.b16 %v1773
    %v2847 = vunpack.c.h.b16 %v1773
    %v2848 = vunpack.c.l.b16 %v1774
    %v2849 = vunpack.c.h.b16 %v1774
    %v2850 = vunpack.c.l.b16 %v1775
    %v2851 = vunpack.c.h.b16 %v1775
    %v2852 = vunpack.c.l.b16 %v1776
    %v2853 = vunpack.c.h.b16 %v1776
    %v2854 = vunpack.c.l.b16 %v1777
    %v2855 = vunpack.c.h.b16 %v1777
    %v2856 = vunpack.c.l.b16 %v1778
    %v2857 = vunpack.c.h.b16 %v1778
    %v2858 = vunpack.c.l.b16 %v1779
    %v2859 = vunpack.c.h.b16 %v1779
    %v2860 = vunpack.c.l.b16 %v1780
    %v2861 = vunpack.c.h.b16 %v1780
    %v2862 = vunpack.c.l.b16 %v1781
    %v2863 = vunpack.c.h.b16 %v1781
    %v2864 = vunpack.c.l.b16 %v1782
    %v2865 = vunpack.c.h.b16 %v1782
    %v2866 = vunpack.c.l.b16 %v1783
    %v2867 = vunpack.c.h.b16 %v1783
    %v2868 = vunpack.c.l.b16 %v1784
    %v2869 = vunpack.c.h.b16 %v1784
    %v2870 = vunpack.c.l.b16 %v1785
    %v2871 = vunpack.c.h.b16 %v1785
    %v2872 = vunpack.c.l.b16 %v1786
    %v2873 = vunpack.c.h.b16 %v1786
    %v2874 = vunpack.c.l.b16 %v1787
    %v2875 = vunpack.c.h.b16 %v1787
    %v2876 = vunpack.c.l.b16 %v1788
    %v2877 = vunpack.c.h.b16 %v1788
    %v2878 = vunpack.c.l.b16 %v1789
    %v2879 = vunpack.c.h.b16 %v1789
    %v2880 = vunpack.c.l.b16 %v1790
    %v2881 = vunpack.c.h.b16 %v1790
    %v2882 = vunpack.c.l.b16 %v1791
    %v2883 = vunpack.c.h.b16 %v1791
    %v2884 = vunpack.c.l.b16 %v1792
    %v2885 = vunpack.c.h.b16 %v1792
    %v2886 = vunpack.c.l.b16 %v1793
    %v2887 = vunpack.c.h.b16 %v1793
    %v2888 = vunpack.c.l.b16 %v1794
    %v2889 = vunpack.c.h.b16 %v1794
    %v2890 = vunpack.c.l.b16 %v1795
    %v2891 = vunpack.c.h.b16 %v1795
    %v2892 = vunpack.c.l.b16 %v1796
    %v2893 = vunpack.c.h.b16 %v1796
    %v2894 = vunpack.c.l.b16 %v1797
    %v2895 = vunpack.c.h.b16 %v1797
    %v2896 = vunpack.c.l.b16 %v1798
    %v2897 = vunpack.c.h.b16 %v1798
    %v2898 = vunpack.c.l.b16 %v1799
    %v2899 = vunpack.c.h.b16 %v1799
    %v2900 = vunpack.c.l.b16 %v1800
    %v2901 = vunpack.c.h.b16 %v1800
    %v2902 = vunpack.c.l.b16 %v1801
    %v2903 = vunpack.c.h.b16 %v1801
    %v2904 = vunpack.c.l.b16 %v1802
    %v2905 = vunpack.c.h.b16 %v1802
    %v2906 = vunpack.c.l.b16 %v1803
    %v2907 = vunpack.c.h.b16 %v1803
    %v2908 = vunpack.c.l.b16 %v1804
    %v2909 = vunpack.c.h.b16 %v1804
    %v2910 = vunpack.c.l.b16 %v1805
    %v2911 = vunpack.c.h.b16 %v1805
    %v2912 = vunpack.c.l.b16 %v1806
    %v2913 = vunpack.c.h.b16 %v1806
    %v2914 = vunpack.c.l.b16 %v1807
    %v2915 = vunpack.c.h.b16 %v1807
    %v2916 = vunpack.c.l.b16 %v1808
    %v2917 = vunpack.c.h.b16 %v1808
    %v2918 = vunpack.c.l.b16 %v1809
    %v2919 = vunpack.c.h.b16 %v1809
    %v2920 = vunpack.c.l.b16 %v1810
    %v2921 = vunpack.c.h.b16 %v1810
    %v2922 = vunpack.c.l.b16 %v1811
    %v2923 = vunpack.c.h.b16 %v1811
    %v2924 = vunpack.c.l.b16 %v1812
    %v2925 = vunpack.c.h.b16 %v1812
    %v2926 = vunpack.c.l.b16 %v1813
    %v2927 = vunpack.c.h.b16 %v1813
    %v2928 = vunpack.c.l.b16 %v1814
    %v2929 = vunpack.c.h.b16 %v1814
    %v2930 = vunpack.c.l.b16 %v1815
    %v2931 = vunpack.c.h.b16 %v1815
    %v2932 = vunpack.c.l.b16 %v1816
    %v2933 = vunpack.c.h.b16 %v1816
    %v2934 = vunpack.c.l.b16 %v1817
    %v2935 = vunpack.c.h.b16 %v1817
    %v2936 = vunpack.c.l.b16 %v1818
    %v2937 = vunpack.c.h.b16 %v1818
    %v2938 = vunpack.c.l.b16 %v1819
    %v2939 = vunpack.c.h.b16 %v1819
    %v2940 = vunpack.c.l.b16 %v1820
    %v2941 = vunpack.c.h.b16 %v1820
    %v2942 = vunpack.c.l.b16 %v1821
    %v2943 = vunpack.c.h.b16 %v1821
    %v2944 = vunpack.c.l.b16 %v1822
    %v2945 = vunpack.c.h.b16 %v1822
    %v2946 = vunpack.c.l.b16 %v1823
    %v2947 = vunpack.c.h.b16 %v1823
    %v2948 = vunpack.c.l.b16 %v1824
    %v2949 = vunpack.c.h.b16 %v1824
    %v2950 = vunpack.c.l.b16 %v1825
    %v2951 = vunpack.c.h.b16 %v1825
    %v2952 = vunpack.c.l.b16 %v1826
    %v2953 = vunpack.c.h.b16 %v1826
    %v2954 = vunpack.c.l.b16 %v1827
    %v2955 = vunpack.c.h.b16 %v1827
    %v2956 = vunpack.c.l.b16 %v1828
    %v2957 = vunpack.c.h.b16 %v1828
    %v2958 = vunpack.c.l.b16 %v1829
    %v2959 = vunpack.c.h.b16 %v1829
    %v2960 = vunpack.c.l.b16 %v1830
    %v2961 = vunpack.c.h.b16 %v1830
    %v2962 = vunpack.c.l.b16 %v1831
    %v2963 = vunpack.c.h.b16 %v1831
    %v2964 = vunpack.c.l.b16 %v1832
    %v2965 = vunpack.c.h.b16 %v1832
    %v2966 = vunpack.c.l.b16 %v1833
    %v2967 = vunpack.c.h.b16 %v1833
    %v2968 = vunpack.c.l.b16 %v1834
    %v2969 = vunpack.c.h.b16 %v1834
    %v2970 = vunpack.c.l.b16 %v1835
    %v2971 = vunpack.c.h.b16 %v1835
    %v2972 = vunpack.c.l.b16 %v1836
    %v2973 = vunpack.c.h.b16 %v1836
    %v2974 = vunpack.c.l.b16 %v1837
    %v2975 = vunpack.c.h.b16 %v1837
    %v2976 = vunpack.c.l.b16 %v1838
    %v2977 = vunpack.c.h.b16 %v1838
    %v2978 = vunpack.c.l.b16 %v1839
    %v2979 = vunpack.c.h.b16 %v1839
    %v2980 = vunpack.c.l.b16 %v1840
    %v2981 = vunpack.c.h.b16 %v1840
    %v2982 = vunpack.c.l.b16 %v1841
    %v2983 = vunpack.c.h.b16 %v1841
    %v2984 = vunpack.c.l.b16 %v1842
    %v2985 = vunpack.c.h.b16 %v1842
    %v2986 = vunpack.c.l.b16 %v1843
    %v2987 = vunpack.c.h.b16 %v1843
    %v2988 = vunpack.c.l.b16 %v1844
    %v2989 = vunpack.c.h.b16 %v1844
    %v2990 = vunpack.c.l.b16 %v1845
    %v2991 = vunpack.c.h.b16 %v1845
    %v2992 = vunpack.c.l.b16 %v1846
    %v2993 = vunpack.c.h.b16 %v1846
    %v2994 = vunpack.c.l.b16 %v1847
    %v2995 = vunpack.c.h.b16 %v1847
    %v2996 = vunpack.c.l.b16 %v1848
    %v2997 = vunpack.c.h.b16 %v1848
    %v2998 = vunpack.c.l.b16 %v1849
    %v2999 = vunpack.c.h.b16 %v1849
    %v3000 = vunpack.c.l.b16 %v1850
    %v3001 = vunpack.c.h.b16 %v1850
    %v3002 = vunpack.c.l.b16 %v1851
    %v3003 = vunpack.c.h.b16 %v1851
    %v3004 = vunpack.c.l.b16 %v1852
    %v3005 = vunpack.c.h.b16 %v1852
    %v3006 = vunpack.c.l.b16 %v1853
    %v3007 = vunpack.c.h.b16 %v1853
    %v3008 = vunpack.c.l.b16 %v1854
    %v3009 = vunpack.c.h.b16 %v1854
    %v3010 = vunpack.c.l.b16 %v1855
    %v3011 = vunpack.c.h.b16 %v1855
    %v3012 = vunpack.c.l.b16 %v1856
    %v3013 = vunpack.c.h.b16 %v1856
    %v3014 = vunpack.c.l.b16 %v1857
    %v3015 = vunpack.c.h.b16 %v1857
    %v3016 = vunpack.c.l.b16 %v1858
    %v3017 = vunpack.c.h.b16 %v1858
    %v3018 = vunpack.c.l.b16 %v1859
    %v3019 = vunpack.c.h.b16 %v1859
    %v3020 = vunpack.c.l.b16 %v1860
    %v3021 = vunpack.c.h.b16 %v1860
    %v3022 = vunpack.c.l.b16 %v1861
    %v3023 = vunpack.c.h.b16 %v1861
    %v3024 = vunpack.c.l.b16 %v1862
    %v3025 = vunpack.c.h.b16 %v1862
    %v3026 = vunpack.c.l.b16 %v1863
    %v3027 = vunpack.c.h.b16 %v1863
    %v3028 = vunpack.c.l.b16 %v1864
    %v3029 = vunpack.c.h.b16 %v1864
    %v3030 = vunpack.c.l.b16 %v1865
    %v3031 = vunpack.c.h.b16 %v1865
    %v3032 = vunpack.c.l.b16 %v1866
    %v3033 = vunpack.c.h.b16 %v1866
    %v3034 = vunpack.c.l.b16 %v1867
    %v3035 = vunpack.c.h.b16 %v1867
    %v3036 = vunpack.c.l.b16 %v1868
    %v3037 = vunpack.c.h.b16 %v1868
    %v3038 = vunpack.c.l.b16 %v1869
    %v3039 = vunpack.c.h.b16 %v1869
    %v3040 = vunpack.c.l.b16 %v1870
    %v3041 = vunpack.c.h.b16 %v1870
    %v3042 = vunpack.c.l.b16 %v1871
    %v3043 = vunpack.c.h.b16 %v1871
    %v3044 = vunpack.c.l.b16 %v1872
    %v3045 = vunpack.c.h.b16 %v1872
    %v3046 = vunpack.c.l.b16 %v1873
    %v3047 = vunpack.c.h.b16 %v1873
    %v3048 = vunpack.c.l.b16 %v1874
    %v3049 = vunpack.c.h.b16 %v1874
    %v3050 = vunpack.c.l.b16 %v1875
    %v3051 = vunpack.c.h.b16 %v1875
    %v3052 = vunpack.c.l.b16 %v1876
    %v3053 = vunpack.c.h.b16 %v1876
    %v3054 = vunpack.c.l.b16 %v1877
    %v3055 = vunpack.c.h.b16 %v1877
    %v3056 = vunpack.c.l.b16 %v1878
    %v3057 = vunpack.c.h.b16 %v1878
    %v3058 = vunpack.c.l.b16 %v1879
    %v3059 = vunpack.c.h.b16 %v1879
    %v3060 = vunpack.c.l.b16 %v1880
    %v3061 = vunpack.c.h.b16 %v1880
    %v3062 = vunpack.c.l.b16 %v1881
    %v3063 = vunpack.c.h.b16 %v1881
    %v3064 = vunpack.c.l.b16 %v1882
    %v3065 = vunpack.c.h.b16 %v1882
    %v3066 = vunpack.c.l.b16 %v1883
    %v3067 = vunpack.c.h.b16 %v1883
    %v3068 = vunpack.c.l.b16 %v1884
    %v3069 = vunpack.c.h.b16 %v1884
    %v3070 = vunpack.c.l.b16 %v1885
    %v3071 = vunpack.c.h.b16 %v1885
    %v3072 = vunpack.c.l.b16 %v1886
    %v3073 = vunpack.c.h.b16 %v1886
    %v3074 = vunpack.c.l.b16 %v1887
    %v3075 = vunpack.c.h.b16 %v1887
    %v3076 = vunpack.c.l.b16 %v1888
    %v3077 = vunpack.c.h.b16 %v1888
    %v3078 = vunpack.c.l.b16 %v1889
    %v3079 = vunpack.c.h.b16 %v1889
    %v3080 = vunpack.c.l.b16 %v1890
    %v3081 = vunpack.c.h.b16 %v1890
    %v3082 = vunpack.c.l.b16 %v1891
    %v3083 = vunpack.c.h.b16 %v1891
    %v3084 = vunpack.c.l.b16 %v1892
    %v3085 = vunpack.c.h.b16 %v1892
    %v3086 = vunpack.c.l.b16 %v1893
    %v3087 = vunpack.c.h.b16 %v1893
    %v3088 = vunpack.c.l.b16 %v1894
    %v3089 = vunpack.c.h.b16 %v1894
    %v3090 = vunpack.c.l.b16 %v1895
    %v3091 = vunpack.c.h.b16 %v1895
    %v3092 = vunpack.c.l.b16 %v1896
    %v3093 = vunpack.c.h.b16 %v1896
    %v3094 = vunpack.c.l.b16 %v1897
    %v3095 = vunpack.c.h.b16 %v1897
    %v3096 = vunpack.c.l.b16 %v1898
    %v3097 = vunpack.c.h.b16 %v1898
    %v3098 = vunpack.c.l.b16 %v1899
    %v3099 = vunpack.c.h.b16 %v1899
    %v3100 = vunpack.c.l.b16 %v1900
    %v3101 = vunpack.c.h.b16 %v1900
    %v3102 = vunpack.c.l.b16 %v1901
    %v3103 = vunpack.c.h.b16 %v1901
    %v3104 = vunpack.c.l.b16 %v1902
    %v3105 = vunpack.c.h.b16 %v1902
    %v3106 = vunpack.c.l.b16 %v1903
    %v3107 = vunpack.c.h.b16 %v1903
    %v3108 = vunpack.c.l.b16 %v1904
    %v3109 = vunpack.c.h.b16 %v1904
    %v3110 = vunpack.c.l.b16 %v1905
    %v3111 = vunpack.c.h.b16 %v1905
    %v3112 = vunpack.c.l.b16 %v1906
    %v3113 = vunpack.c.h.b16 %v1906
    %v3114 = vunpack.c.l.b16 %v1907
    %v3115 = vunpack.c.h.b16 %v1907
    %v3116 = vunpack.c.l.b16 %v1908
    %v3117 = vunpack.c.h.b16 %v1908
    %v3118 = vunpack.c.l.b16 %v1909
    %v3119 = vunpack.c.h.b16 %v1909
    %v3120 = vunpack.c.l.b16 %v1910
    %v3121 = vunpack.c.h.b16 %v1910
    %v3122 = vunpack.c.l.b16 %v1911
    %v3123 = vunpack.c.h.b16 %v1911
    %v3124 = vunpack.c.l.b16 %v1912
    %v3125 = vunpack.c.h.b16 %v1912
    %v3126 = vunpack.c.l.b16 %v1913
    %v3127 = vunpack.c.h.b16 %v1913
    %v3128 = vunpack.c.l.b16 %v1914
    %v3129 = vunpack.c.h.b16 %v1914
    %v3130 = vunpack.c.l.b16 %v1915
    %v3131 = vunpack.c.h.b16 %v1915
    %v3132 = vunpack.c.l.b16 %v1916
    %v3133 = vunpack.c.h.b16 %v1916
    %v3134 = vunpack.c.l.b16 %v1917
    %v3135 = vunpack.c.h.b16 %v1917
    %v3136 = vunpack.c.l.b16 %v1918
    %v3137 = vunpack.c.h.b16 %v1918
    %v3138 = vunpack.c.l.b16 %v1919
    %v3139 = vunpack.c.h.b16 %v1919
    %v3140 = vunpack.c.l.b16 %v1920
    %v3141 = vunpack.c.h.b16 %v1920
    %v3142 = vunpack.c.l.b16 %v1921
    %v3143 = vunpack.c.h.b16 %v1921
    %v3144 = vunpack.c.l.b16 %v1922
    %v3145 = vunpack.c.h.b16 %v1922
    %v3146 = vunpack.c.l.b16 %v1923
    %v3147 = vunpack.c.h.b16 %v1923
    %v3148 = vunpack.c.l.b16 %v1924
    %v3149 = vunpack.c.h.b16 %v1924
    %v3150 = vunpack.c.l.b16 %v1925
    %v3151 = vunpack.c.h.b16 %v1925
    %v3152 = vunpack.c.l.b16 %v1926
    %v3153 = vunpack.c.h.b16 %v1926
    %v3154 = vunpack.c.l.b16 %v1927
    %v3155 = vunpack.c.h.b16 %v1927
    %v3156 = vunpack.c.l.b16 %v1928
    %v3157 = vunpack.c.h.b16 %v1928
    %v3158 = vunpack.c.l.b16 %v1929
    %v3159 = vunpack.c.h.b16 %v1929
    %v3160 = vunpack.c.l.b16 %v1930
    %v3161 = vunpack.c.h.b16 %v1930
    %v3162 = vunpack.c.l.b16 %v1931
    %v3163 = vunpack.c.h.b16 %v1931
    %v3164 = vunpack.c.l.b16 %v1932
    %v3165 = vunpack.c.h.b16 %v1932
    %v3166 = vunpack.c.l.b16 %v1933
    %v3167 = vunpack.c.h.b16 %v1933
    %v3168 = vunpack.c.l.b16 %v1934
    %v3169 = vunpack.c.h.b16 %v1934
    %v3170 = vunpack.c.l.b16 %v1935
    %v3171 = vunpack.c.h.b16 %v1935
    %v3172 = vunpack.c.l.b16 %v1936
    %v3173 = vunpack.c.h.b16 %v1936
    %v3174 = vunpack.c.l.b16 %v1937
    %v3175 = vunpack.c.h.b16 %v1937
    %v3176 = vunpack.c.l.b16 %v1938
    %v3177 = vunpack.c.h.b16 %v1938
    %v3178 = vunpack.c.l.b16 %v1939
    %v3179 = vunpack.c.h.b16 %v1939
    %v3180 = vunpack.c.l.b16 %v1940
    %v3181 = vunpack.c.h.b16 %v1940
    %v3182 = vunpack.c.l.b16 %v1941
    %v3183 = vunpack.c.h.b16 %v1941
    %v3184 = vunpack.c.l.b16 %v1942
    %v3185 = vunpack.c.h.b16 %v1942
    %v3186 = vunpack.c.l.b16 %v1943
    %v3187 = vunpack.c.h.b16 %v1943
    %v3188 = vunpack.c.l.b16 %v1944
    %v3189 = vunpack.c.h.b16 %v1944
    %v3190 = vunpack.c.l.b16 %v1945
    %v3191 = vunpack.c.h.b16 %v1945
    %v3192 = vunpack.c.l.b16 %v1946
    %v3193 = vunpack.c.h.b16 %v1946
    %v3194 = vunpack.c.l.b16 %v1947
    %v3195 = vunpack.c.h.b16 %v1947
    %v3196 = vunpack.c.l.b16 %v1948
    %v3197 = vunpack.c.h.b16 %v1948
    %v3198 = vunpack.c.l.b16 %v1949
    %v3199 = vunpack.c.h.b16 %v1949
    %v3200 = vunpack.c.l.b16 %v1950
    %v3201 = vunpack.c.h.b16 %v1950
    %v3202 = vunpack.c.l.b16 %v1951
    %v3203 = vunpack.c.h.b16 %v1951
    %v3204 = vunpack.c.l.b16 %v1952
    %v3205 = vunpack.c.h.b16 %v1952
    %v3206 = vunpack.c.l.b16 %v1953
    %v3207 = vunpack.c.h.b16 %v1953
    %v3208 = vunpack.c.l.b16 %v1954
    %v3209 = vunpack.c.h.b16 %v1954
    %v3210 = vunpack.c.l.b16 %v1955
    %v3211 = vunpack.c.h.b16 %v1955
    %v3212 = vunpack.c.l.b16 %v1956
    %v3213 = vunpack.c.h.b16 %v1956
    %v3214 = vunpack.c.l.b16 %v1957
    %v3215 = vunpack.c.h.b16 %v1957
    %v3216 = vunpack.c.l.b16 %v1958
    %v3217 = vunpack.c.h.b16 %v1958
    %v3218 = vunpack.c.l.b16 %v1959
    %v3219 = vunpack.c.h.b16 %v1959
    %v3220 = vunpack.c.l.b16 %v1960
    %v3221 = vunpack.c.h.b16 %v1960
    %v3222 = vunpack.c.l.b16 %v1961
    %v3223 = vunpack.c.h.b16 %v1961
    %v3224 = vunpack.c.l.b16 %v1962
    %v3225 = vunpack.c.h.b16 %v1962
    %v3226 = vunpack.c.l.b16 %v1963
    %v3227 = vunpack.c.h.b16 %v1963
    %v3228 = vunpack.c.l.b16 %v1964
    %v3229 = vunpack.c.h.b16 %v1964
    %v3230 = vunpack.c.l.b16 %v1965
    %v3231 = vunpack.c.h.b16 %v1965
    %v3232 = vunpack.c.l.b16 %v1966
    %v3233 = vunpack.c.h.b16 %v1966
    %v3234 = vunpack.c.l.b16 %v1967
    %v3235 = vunpack.c.h.b16 %v1967
    %v3236 = vunpack.c.l.b16 %v1968
    %v3237 = vunpack.c.h.b16 %v1968
    %v3238 = vunpack.c.l.b16 %v1969
    %v3239 = vunpack.c.h.b16 %v1969
    %v3240 = vunpack.c.l.b16 %v1970
    %v3241 = vunpack.c.h.b16 %v1970
    %v3242 = vunpack.c.l.b16 %v1971
    %v3243 = vunpack.c.h.b16 %v1971
    %v3244 = vunpack.c.l.b16 %v1972
    %v3245 = vunpack.c.h.b16 %v1972
    %v3246 = vunpack.c.l.b16 %v1973
    %v3247 = vunpack.c.h.b16 %v1973
    %v3248 = vunpack.c.l.b16 %v1974
    %v3249 = vunpack.c.h.b16 %v1974
    %v3250 = vunpack.c.l.b16 %v1975
    %v3251 = vunpack.c.h.b16 %v1975
    %v3252 = vunpack.c.l.b16 %v1976
    %v3253 = vunpack.c.h.b16 %v1976
    %v3254 = vunpack.c.l.b16 %v1977
    %v3255 = vunpack.c.h.b16 %v1977
    %v3256 = vunpack.c.l.b16 %v1978
    %v3257 = vunpack.c.h.b16 %v1978
    %v3258 = vunpack.c.l.b16 %v1979
    %v3259 = vunpack.c.h.b16 %v1979
    %v3260 = vunpack.c.l.b16 %v1980
    %v3261 = vunpack.c.h.b16 %v1980
    %v3262 = vunpack.c.l.b16 %v1981
    %v3263 = vunpack.c.h.b16 %v1981
    %v3264 = vunpack.c.l.b16 %v1982
    %v3265 = vunpack.c.h.b16 %v1982
    %v3266 = vunpack.c.l.b16 %v1983
    %v3267 = vunpack.c.h.b16 %v1983
    %v3268 = vunpack.c.l.b16 %v1984
    %v3269 = vunpack.c.h.b16 %v1984
    %v3270 = vunpack.c.l.b16 %v1985
    %v3271 = vunpack.c.h.b16 %v1985
    %v3272 = vunpack.c.l.b16 %v1986
    %v3273 = vunpack.c.h.b16 %v1986
    %v3274 = vunpack.c.l.b16 %v1987
    %v3275 = vunpack.c.h.b16 %v1987
    %v3276 = vunpack.c.l.b16 %v1988
    %v3277 = vunpack.c.h.b16 %v1988
    %v3278 = vunpack.c.l.b16 %v1989
    %v3279 = vunpack.c.h.b16 %v1989
    %v3280 = vunpack.c.l.b16 %v1990
    %v3281 = vunpack.c.h.b16 %v1990
    %v3282 = vunpack.c.l.b16 %v1991
    %v3283 = vunpack.c.h.b16 %v1991
    %v3284 = vunpack.c.l.b16 %v1992
    %v3285 = vunpack.c.h.b16 %v1992
    %v3286 = vunpack.c.l.b16 %v1993
    %v3287 = vunpack.c.h.b16 %v1993
    %v3288 = vunpack.c.l.b16 %v1994
    %v3289 = vunpack.c.h.b16 %v1994
    %v3290 = vunpack.c.l.b16 %v1995
    %v3291 = vunpack.c.h.b16 %v1995
    %v3292 = vunpack.c.l.b16 %v1996
    %v3293 = vunpack.c.h.b16 %v1996
    %v3294 = vunpack.c.l.b16 %v1997
    %v3295 = vunpack.c.h.b16 %v1997
    %v3296 = vunpack.c.l.b16 %v1998
    %v3297 = vunpack.c.h.b16 %v1998
    %v3298 = vunpack.c.l.b16 %v1999
    %v3299 = vunpack.c.h.b16 %v1999
    %v3300 = vunpack.c.l.b16 %v2000
    %v3301 = vunpack.c.h.b16 %v2000
    %v3302 = vunpack.c.l.b16 %v2001
    %v3303 = vunpack.c.h.b16 %v2001
    %v3304 = vunpack.c.l.b16 %v2002
    %v3305 = vunpack.c.h.b16 %v2002
    %v3306 = vunpack.c.l.b16 %v2003
    %v3307 = vunpack.c.h.b16 %v2003
    %v3308 = vunpack.c.l.b16 %v2004
    %v3309 = vunpack.c.h.b16 %v2004
    %v3310 = vunpack.c.l.b16 %v2005
    %v3311 = vunpack.c.h.b16 %v2005
    %v3312 = vunpack.c.l.b16 %v2006
    %v3313 = vunpack.c.h.b16 %v2006
    %v3314 = vunpack.c.l.b16 %v2007
    %v3315 = vunpack.c.h.b16 %v2007
    %v3316 = vunpack.c.l.b16 %v2008
    %v3317 = vunpack.c.h.b16 %v2008
    %v3318 = vunpack.c.l.b16 %v2009
    %v3319 = vunpack.c.h.b16 %v2009
    %v3320 = vunpack.c.l.b16 %v2010
    %v3321 = vunpack.c.h.b16 %v2010
    %v3322 = vunpack.c.l.b16 %v2011
    %v3323 = vunpack.c.h.b16 %v2011
    %v3324 = vunpack.c.l.b16 %v2012
    %v3325 = vunpack.c.h.b16 %v2012
    %v3326 = vunpack.c.l.b16 %v2013
    %v3327 = vunpack.c.h.b16 %v2013
    %v3328 = vunpack.c.l.b16 %v2014
    %v3329 = vunpack.c.h.b16 %v2014
    %v3330 = vunpack.c.l.b16 %v2015
    %v3331 = vunpack.c.h.b16 %v2015
    %v3332 = vunpack.c.l.b16 %v2016
    %v3333 = vunpack.c.h.b16 %v2016
    %v3334 = vunpack.c.l.b16 %v2017
    %v3335 = vunpack.c.h.b16 %v2017
    %v3336 = vunpack.c.l.b16 %v2018
    %v3337 = vunpack.c.h.b16 %v2018
    %v3338 = vunpack.c.l.b16 %v2019
    %v3339 = vunpack.c.h.b16 %v2019
    %v3340 = vunpack.c.l.b16 %v2020
    %v3341 = vunpack.c.h.b16 %v2020
    %v3342 = vunpack.c.l.b16 %v2021
    %v3343 = vunpack.c.h.b16 %v2021
    %v3344 = vunpack.c.l.b16 %v2022
    %v3345 = vunpack.c.h.b16 %v2022
    %v3346 = vunpack.c.l.b16 %v2023
    %v3347 = vunpack.c.h.b16 %v2023
    %v3348 = vunpack.c.l.b16 %v2024
    %v3349 = vunpack.c.h.b16 %v2024
    %v3350 = vunpack.c.l.b16 %v2025
    %v3351 = vunpack.c.h.b16 %v2025
    %v3352 = vunpack.c.l.b16 %v2026
    %v3353 = vunpack.c.h.b16 %v2026
    %v3354 = vunpack.c.l.b16 %v2027
    %v3355 = vunpack.c.h.b16 %v2027
    %v3356 = vunpack.c.l.b16 %v2028
    %v3357 = vunpack.c.h.b16 %v2028
    %v3358 = vunpack.c.l.b16 %v2029
    %v3359 = vunpack.c.h.b16 %v2029
    %v3360 = vunpack.c.l.b16 %v2030
    %v3361 = vunpack.c.h.b16 %v2030
    %v3362 = vunpack.c.l.b16 %v2031
    %v3363 = vunpack.c.h.b16 %v2031
    %v3364 = vunpack.c.l.b16 %v2032
    %v3365 = vunpack.c.h.b16 %v2032
    %v3366 = vunpack.c.l.b16 %v2033
    %v3367 = vunpack.c.h.b16 %v2033
    %v3368 = vunpack.c.l.b16 %v2034
    %v3369 = vunpack.c.h.b16 %v2034
    %v3370 = vunpack.c.l.b16 %v2035
    %v3371 = vunpack.c.h.b16 %v2035
    %v3372 = vunpack.c.l.b16 %v2036
    %v3373 = vunpack.c.h.b16 %v2036
    %v3374 = vunpack.c.l.b16 %v2037
    %v3375 = vunpack.c.h.b16 %v2037
    %v3376 = vunpack.c.l.b16 %v2038
    %v3377 = vunpack.c.h.b16 %v2038
    %v3378 = vunpack.c.l.b16 %v2039
    %v3379 = vunpack.c.h.b16 %v2039
    %v3380 = vunpack.c.l.b16 %v2040
    %v3381 = vunpack.c.h.b16 %v2040
    %v3382 = vunpack.c.l.b16 %v2041
    %v3383 = vunpack.c.h.b16 %v2041
    %v3384 = vunpack.c.l.b16 %v2042
    %v3385 = vunpack.c.h.b16 %v2042
    %v3386 = vunpack.c.l.b16 %v2043
    %v3387 = vunpack.c.h.b16 %v2043
    %v3388 = vunpack.c.l.b16 %v2044
    %v3389 = vunpack.c.h.b16 %v2044
    %v3390 = vunpack.c.l.b16 %v2045
    %v3391 = vunpack.c.h.b16 %v2045
    %v3392 = vunpack.c.l.b16 %v2046
    %v3393 = vunpack.c.h.b16 %v2046
    %v3394 = vunpack.c.l.b16 %v2047
    %v3395 = vunpack.c.h.b16 %v2047
    %v3396 = vunpack.c.l.b16 %v2048
    %v3397 = vunpack.c.h.b16 %v2048
    %v3398 = vunpack.c.l.b16 %v2049
    %v3399 = vunpack.c.h.b16 %v2049
    %v3400 = vunpack.c.l.b16 %v2050
    %v3401 = vunpack.c.h.b16 %v2050
    %v3402 = vunpack.c.l.b16 %v2051
    %v3403 = vunpack.c.h.b16 %v2051
    %v3404 = vunpack.c.l.b16 %v2052
    %v3405 = vunpack.c.h.b16 %v2052
    %v3406 = vunpack.c.l.b16 %v2053
    %v3407 = vunpack.c.h.b16 %v2053
    %v3408 = vunpack.c.l.b16 %v2054
    %v3409 = vunpack.c.h.b16 %v2054
    %v3410 = vunpack.c.l.b16 %v2055
    %v3411 = vunpack.c.h.b16 %v2055
    %v3412 = vunpack.c.l.b16 %v2056
    %v3413 = vunpack.c.h.b16 %v2056
    %v3414 = vunpack.c.l.b16 %v2057
    %v3415 = vunpack.c.h.b16 %v2057
    %v3416 = vunpack.c.l.b16 %v2058
    %v3417 = vunpack.c.h.b16 %v2058
    %v3418 = vunpack.c.l.b16 %v2059
    %v3419 = vunpack.c.h.b16 %v2059
    %v3420 = vunpack.c.l.b16 %v2060
    %v3421 = vunpack.c.h.b16 %v2060
    %v3422 = vunpack.c.l.b16 %v2061
    %v3423 = vunpack.c.h.b16 %v2061
    %v3424 = vunpack.c.l.b16 %v2062
    %v3425 = vunpack.c.h.b16 %v2062
    %v3426 = vunpack.c.l.b16 %v2063
    %v3427 = vunpack.c.h.b16 %v2063
    %v3428 = vunpack.c.l.b16 %v2064
    %v3429 = vunpack.c.h.b16 %v2064
    %v3430 = vunpack.c.l.b16 %v2065
    %v3431 = vunpack.c.h.b16 %v2065
    %v3432 = vunpack.c.l.b16 %v2066
    %v3433 = vunpack.c.h.b16 %v2066
    %v3434 = vunpack.c.l.b16 %v2067
    %v3435 = vunpack.c.h.b16 %v2067
    %v3436 = vunpack.c.l.b16 %v2068
    %v3437 = vunpack.c.h.b16 %v2068
    %v3438 = vunpack.c.l.b16 %v2069
    %v3439 = vunpack.c.h.b16 %v2069
    %v3440 = vunpack.c.l.b16 %v2070
    %v3441 = vunpack.c.h.b16 %v2070
    %v3442 = vunpack.c.l.b16 %v2071
    %v3443 = vunpack.c.h.b16 %v2071
    %v3444 = vunpack.c.l.b16 %v2072
    %v3445 = vunpack.c.h.b16 %v2072
    %v3446 = vunpack.c.l.b16 %v2073
    %v3447 = vunpack.c.h.b16 %v2073
    %v3448 = vunpack.c.l.b16 %v2074
    %v3449 = vunpack.c.h.b16 %v2074
    %v3450 = vunpack.c.l.b16 %v2075
    %v3451 = vunpack.c.h.b16 %v2075
    %v3452 = vunpack.c.l.b16 %v2076
    %v3453 = vunpack.c.h.b16 %v2076
    %v3454 = vunpack.c.l.b16 %v2077
    %v3455 = vunpack.c.h.b16 %v2077
    %v3456 = vunpack.c.l.b16 %v2078
    %v3457 = vunpack.c.h.b16 %v2078
    %v3458 = vunpack.c.l.b16 %v2079
    %v3459 = vunpack.c.h.b16 %v2079
    %v3460 = vunpack.c.l.b16 %v2080
    %v3461 = vunpack.c.h.b16 %v2080
    %v3462 = vunpack.c.l.b16 %v2081
    %v3463 = vunpack.c.h.b16 %v2081
    %v3464 = vunpack.c.l.b16 %v2082
    %v3465 = vunpack.c.h.b16 %v2082
    %v3466 = vunpack.c.l.b16 %v2083
    %v3467 = vunpack.c.h.b16 %v2083
    %v3468 = vunpack.c.l.b16 %v2084
    %v3469 = vunpack.c.h.b16 %v2084
    %v3470 = vunpack.c.l.b16 %v2085
    %v3471 = vunpack.c.h.b16 %v2085
    %v3472 = vunpack.c.l.b16 %v2086
    %v3473 = vunpack.c.h.b16 %v2086
    %v3474 = vunpack.c.l.b16 %v2087
    %v3475 = vunpack.c.h.b16 %v2087
    %v3476 = vunpack.c.l.b16 %v2088
    %v3477 = vunpack.c.h.b16 %v2088
    %v3478 = vunpack.c.l.b16 %v2089
    %v3479 = vunpack.c.h.b16 %v2089
    %v3480 = vunpack.c.l.b16 %v2090
    %v3481 = vunpack.c.h.b16 %v2090
    %v3482 = vunpack.c.l.b16 %v2091
    %v3483 = vunpack.c.h.b16 %v2091
    %v3484 = vunpack.c.l.b16 %v2092
    %v3485 = vunpack.c.h.b16 %v2092
    %v3486 = vunpack.c.l.b16 %v2093
    %v3487 = vunpack.c.h.b16 %v2093
    %v3488 = vunpack.c.l.b16 %v2094
    %v3489 = vunpack.c.h.b16 %v2094
    %v3490 = vunpack.c.l.b16 %v2095
    %v3491 = vunpack.c.h.b16 %v2095
    %v3492 = vunpack.c.l.b16 %v2096
    %v3493 = vunpack.c.h.b16 %v2096
    %v3494 = vunpack.c.l.b16 %v2097
    %v3495 = vunpack.c.h.b16 %v2097
    %v3496 = vunpack.c.l.b16 %v2098
    %v3497 = vunpack.c.h.b16 %v2098
    %v3498 = vunpack.c.l.b16 %v2099
    %v3499 = vunpack.c.h.b16 %v2099
    %v3500 = vunpack.c.l.b16 %v2100
    %v3501 = vunpack.c.h.b16 %v2100
    %v3502 = vunpack.c.l.b16 %v2101
    %v3503 = vunpack.c.h.b16 %v2101
    %v3504 = vunpack.c.l.b16 %v2102
    %v3505 = vunpack.c.h.b16 %v2102
    %v3506 = vunpack.c.l.b16 %v2103
    %v3507 = vunpack.c.h.b16 %v2103
    %v3508 = vunpack.c.l.b16 %v2104
    %v3509 = vunpack.c.h.b16 %v2104
    %v3510 = vunpack.c.l.b16 %v2105
    %v3511 = vunpack.c.h.b16 %v2105
    %v3512 = vunpack.c.l.b16 %v2106
    %v3513 = vunpack.c.h.b16 %v2106
    %v3514 = vunpack.c.l.b16 %v2107
    %v3515 = vunpack.c.h.b16 %v2107
    %v3516 = vunpack.c.l.b16 %v2108
    %v3517 = vunpack.c.h.b16 %v2108
    %v3518 = vunpack.c.l.b16 %v2109
    %v3519 = vunpack.c.h.b16 %v2109
    %v3520 = vunpack.c.l.b16 %v2110
    %v3521 = vunpack.c.h.b16 %v2110
    %v3522 = vunpack.c.l.b16 %v2111
    %v3523 = vunpack.c.h.b16 %v2111
    %v3524 = vunpack.c.l.b16 %v2112
    %v3525 = vunpack.c.h.b16 %v2112
    %v3526 = vunpack.c.l.b16 %v2113
    %v3527 = vunpack.c.h.b16 %v2113
    %v3528 = vunpack.c.l.b16 %v2114
    %v3529 = vunpack.c.h.b16 %v2114
    %v3530 = vunpack.c.l.b16 %v2115
    %v3531 = vunpack.c.h.b16 %v2115
    %v3532 = vunpack.c.l.b16 %v2116
    %v3533 = vunpack.c.h.b16 %v2116
    %v3534 = vunpack.c.l.b16 %v2117
    %v3535 = vunpack.c.h.b16 %v2117
    %v3536 = vunpack.c.l.b16 %v2118
    %v3537 = vunpack.c.h.b16 %v2118
    %v3538 = vunpack.c.l.b16 %v2119
    %v3539 = vunpack.c.h.b16 %v2119
    %v3540 = vunpack.c.l.b16 %v2120
    %v3541 = vunpack.c.h.b16 %v2120
    %v3542 = vunpack.c.l.b16 %v2121
    %v3543 = vunpack.c.h.b16 %v2121
    %v3544 = vunpack.c.l.b16 %v2122
    %v3545 = vunpack.c.h.b16 %v2122
    %v3546 = vunpack.c.l.b16 %v2123
    %v3547 = vunpack.c.h.b16 %v2123
    %v3548 = vunpack.c.l.b16 %v2124
    %v3549 = vunpack.c.h.b16 %v2124
    %v3550 = vunpack.c.l.b16 %v2125
    %v3551 = vunpack.c.h.b16 %v2125
    %v3552 = vunpack.c.l.b16 %v2126
    %v3553 = vunpack.c.h.b16 %v2126
    %v3554 = vunpack.c.l.b16 %v2127
    %v3555 = vunpack.c.h.b16 %v2127
    %v3556 = vunpack.c.l.b16 %v2128
    %v3557 = vunpack.c.h.b16 %v2128
    %v3558 = vunpack.c.l.b16 %v2129
    %v3559 = vunpack.c.h.b16 %v2129
    %v3560 = vunpack.c.l.b16 %v2130
    %v3561 = vunpack.c.h.b16 %v2130
    %v3562 = vunpack.c.l.b16 %v2131
    %v3563 = vunpack.c.h.b16 %v2131
    %v3564 = vpack.c.b16 %v2640, %v2628
    %v3565 = vpack.c.b16 %v2641, %v2629
    %v3566 = vpack.c.b16 %v2642, %v2630
    %v3567 = vpack.c.b16 %v2643, %v2631
    %v3568 = vpack.c.b16 %v2644, %v2632
    %v3569 = vpack.c.b16 %v2645, %v2633
    %v3570 = vpack.c.b16 %v2646, %v2634
    %v3571 = vpack.c.b16 %v2647, %v2635
    %v3572 = vpack.c.b16 %v2648, %v2636
    %v3573 = vpack.c.b16 %v2649, %v2637
    %v3574 = vpack.c.b16 %v2650, %v2638
    %v3575 = vpack.c.b16 %v2651, %v2639
    %v3576 = vpack.c.b16 %v2664, %v2652
    %v3577 = vpack.c.b16 %v2665, %v2653
    %v3578 = vpack.c.b16 %v2666, %v2654
    %v3579 = vpack.c.b16 %v2667, %v2655
    %v3580 = vpack.c.b16 %v2668, %v2656
    %v3581 = vpack.c.b16 %v2669, %v2657
    %v3582 = vpack.c.b16 %v2670, %v2658
    %v3583 = vpack.c.b16 %v2671, %v2659
    %v3584 = vpack.c.b16 %v2672, %v2660
    %v3585 = vpack.c.b16 %v2673, %v2661
    %v3586 = vpack.c.b16 %v2674, %v2662
    %v3587 = vpack.c.b16 %v2675, %v2663
    %v3588 = vpack.c.b16 %v2688, %v2676
    %v3589 = vpack.c.b16 %v2689, %v2677
    %v3590 = vpack.c.b16 %v2690, %v2678
    %v3591 = vpack.c.b16 %v2691, %v2679
    %v3592 = vpack.c.b16 %v2692, %v2680
    %v3593 = vpack.c.b16 %v2693, %v2681
    %v3594 = vpack.c.b16 %v2694, %v2682
    %v3595 = vpack.c.b16 %v2695, %v2683
    %v3596 = vpack.c.b16 %v2696, %v2684
    %v3597 = vpack.c.b16 %v2697, %v2685
    %v3598 = vpack.c.b16 %v2698, %v2686
    %v3599 = vpack.c.b16 %v2699, %v2687
    %v3600 = vpack.c.b16 %v2712, %v2700
    %v3601 = vpack.c.b16 %v2713, %v2701
    %v3602 = vpack.c.b16 %v2714, %v2702
    %v3603 = vpack.c.b16 %v2715, %v2703
    %v3604 = vpack.c.b16 %v2716, %v2704
    %v3605 = vpack.c.b16 %v2717, %v2705
    %v3606 = vpack.c.b16 %v2718, %v2706
    %v3607 = vpack.c.b16 %v2719, %v2707
    %v3608 = vpack.c.b16 %v2720, %v2708
    %v3609 = vpack.c.b16 %v2721, %v2709
    %v3610 = vpack.c.b16 %v2722, %v2710
    %v3611 = vpack.c.b16 %v2723, %v2711
    %v3612 = vpack.c.b16 %v2736, %v2724
    %v3613 = vpack.c.b16 %v2737, %v2725
    %v3614 = vpack.c.b16 %v2738, %v2726
    %v3615 = vpack.c.b16 %v2739, %v2727
    %v3616 = vpack.c.b16 %v2740, %v2728
    %v3617 = vpack.c.b16 %v2741, %v2729
    %v3618 = vpack.c.b16 %v2742, %v2730
    %v3619 = vpack.c.b16 %v2743, %v2731
    %v3620 = vpack.c.b16 %v2744, %v2732
    %v3621 = vpack.c.b16 %v2745, %v2733
    %v3622 = vpack.c.b16 %v2746, %v2734
    %v3623 = vpack.c.b16 %v2747, %v2735
    %v3624 = vpack.c.b16 %v2760, %v2748
    %v3625 = vpack.c.b16 %v2761, %v2749
    %v3626 = vpack.c.b16 %v2762, %v2750
    %v3627 = vpack.c.b16 %v2763, %v2751
    %v3628 = vpack.c.b16 %v2764, %v2752
    %v3629 = vpack.c.b16 %v2765, %v2753
    %v3630 = vpack.c.b16 %v2766, %v2754
    %v3631 = vpack.c.b16 %v2767, %v2755
    %v3632 = vpack.c.b16 %v2768, %v2756
    %v3633 = vpack.c.b16 %v2769, %v2757
    %v3634 = vpack.c.b16 %v2770, %v2758
    %v3635 = vpack.c.b16 %v2771, %v2759
    %v3636 = vpack.c.b16 %v2784, %v2772
    %v3637 = vpack.c.b16 %v2785, %v2773
    %v3638 = vpack.c.b16 %v2786, %v2774
    %v3639 = vpack.c.b16 %v2787, %v2775
    %v3640 = vpack.c.b16 %v2788, %v2776
    %v3641 = vpack.c.b16 %v2789, %v2777
    %v3642 = vpack.c.b16 %v2790, %v2778
    %v3643 = vpack.c.b16 %v2791, %v2779
    %v3644 = vpack.c.b16 %v2792, %v2780
    %v3645 = vpack.c.b16 %v2793, %v2781
    %v3646 = vpack.c.b16 %v2794, %v2782
    %v3647 = vpack.c.b16 %v2795, %v2783
    %v3648 = vpack.c.b16 %v2808, %v2796
    %v3649 = vpack.c.b16 %v2809, %v2797
    %v3650 = vpack.c.b16 %v2810, %v2798
    %v3651 = vpack.c.b16 %v2811, %v2799
    %v3652 = vpack.c.b16 %v2812, %v2800
    %v3653 = vpack.c.b16 %v2813, %v2801
    %v3654 = vpack.c.b16 %v2814, %v2802
    %v3655 = vpack.c.b16 %v2815, %v2803
    %v3656 = vpack.c.b16 %v2816, %v2804
    %v3657 = vpack.c.b16 %v2817, %v2805
    %v3658 = vpack.c.b16 %v2818, %v2806
    %v3659 = vpack.c.b16 %v2819, %v2807
    %v3660 = vpack.c.b16 %v2832, %v2820
    %v3661 = vpack.c.b16 %v2833, %v2821
    %v3662 = vpack.c.b16 %v2834, %v2822
    %v3663 = vpack.c.b16 %v2835, %v2823
    %v3664 = vpack.c.b16 %v2836, %v2824
    %v3665 = vpack.c.b16 %v2837, %v2825
    %v3666 = vpack.c.b16 %v2838, %v2826
    %v3667 = vpack.c.b16 %v2839, %v2827
    %v3668 = vpack.c.b16 %v2840, %v2828
    %v3669 = vpack.c.b16 %v2841, %v2829
    %v3670 = vpack.c.b16 %v2842, %v2830
    %v3671 = vpack.c.b16 %v2843, %v2831
    %v3672 = vpack.c.b16 %v2856, %v2844
    %v3673 = vpack.c.b16 %v2857, %v2845
    %v3674 = vpack.c.b16 %v2858, %v2846
    %v3675 = vpack.c.b16 %v2859, %v2847
    %v3676 = vpack.c.b16 %v2860, %v2848
    %v3677 = vpack.c.b16 %v2861, %v2849
    %v3678 = vpack.c.b16 %v2862, %v2850
    %v3679 = vpack.c.b16 %v2863, %v2851
    %v3680 = vpack.c.b16 %v2864, %v2852
    %v3681 = vpack.c.b16 %v2865, %v2853
    %v3682 = vpack.c.b16 %v2866, %v2854
    %v3683 = vpack.c.b16 %v2867, %v2855
    %v3684 = vpack.c.b16 %v2880, %v2868
    %v3685 = vpack.c.b16 %v2881, %v2869
    %v3686 = vpack.c.b16 %v2882, %v2870
    %v3687 = vpack.c.b16 %v2883, %v2871
    %v3688 = vpack.c.b16 %v2884, %v2872
    %v3689 = vpack.c.b16 %v2885, %v2873
    %v3690 = vpack.c.b16 %v2886, %v2874
    %v3691 = vpack.c.b16 %v2887, %v2875
    %v3692 = vpack.c.b16 %v2888, %v2876
    %v3693 = vpack.c.b16 %v2889, %v2877
    %v3694 = vpack.c.b16 %v2890, %v2878
    %v3695 = vpack.c.b16 %v2891, %v2879
    %v3696 = vpack.c.b16 %v2904, %v2892
    %v3697 = vpack.c.b16 %v2905, %v2893
    %v3698 = vpack.c.b16 %v2906, %v2894
    %v3699 = vpack.c.b16 %v2907, %v2895
    %v3700 = vpack.c.b16 %v2908, %v2896
    %v3701 = vpack.c.b16 %v2909, %v2897
    %v3702 = vpack.c.b16 %v2910, %v2898
    %v3703 = vpack.c.b16 %v2911, %v2899
    %v3704 = vpack.c.b16 %v2912, %v2900
    %v3705 = vpack.c.b16 %v2913, %v2901
    %v3706 = vpack.c.b16 %v2914, %v2902
    %v3707 = vpack.c.b16 %v2915, %v2903
    %v3708 = vpack.c.b16 %v2928, %v2916
    %v3709 = vpack.c.b16 %v2929, %v2917
    %v3710 = vpack.c.b16 %v2930, %v2918
    %v3711 = vpack.c.b16 %v2931, %v2919
    %v3712 = vpack.c.b16 %v2932, %v2920
    %v3713 = vpack.c.b16 %v2933, %v2921
    %v3714 = vpack.c.b16 %v2934, %v2922
    %v3715 = vpack.c.b16 %v2935, %v2923
    %v3716 = vpack.c.b16 %v2936, %v2924
    %v3717 = vpack.c.b16 %v2937, %v2925
    %v3718 = vpack.c.b16 %v2938, %v2926
    %v3719 = vpack.c.b16 %v2939, %v2927
    %v3720 = vpack.c.b16 %v2952, %v2940
    %v3721 = vpack.c.b16 %v2953, %v2941
    %v3722 = vpack.c.b16 %v2954, %v2942
    %v3723 = vpack.c.b16 %v2955, %v2943
    %v3724 = vpack.c.b16 %v2956, %v2944
    %v3725 = vpack.c.b16 %v2957, %v2945
    %v3726 = vpack.c.b16 %v2958, %v2946
    %v3727 = vpack.c.b16 %v2959, %v2947
    %v3728 = vpack.c.b16 %v2960, %v2948
    %v3729 = vpack.c.b16 %v2961, %v2949
    %v3730 = vpack.c.b16 %v2962, %v2950
    %v3731 = vpack.c.b16 %v2963, %v2951
    %v3732 = vpack.c.b16 %v2976, %v2964
    %v3733 = vpack.c.b16 %v2977, %v2965
    %v3734 = vpack.c.b16 %v2978, %v2966
    %v3735 = vpack.c.b16 %v2979, %v2967
    %v3736 = vpack.c.b16 %v2980, %v2968
    %v3737 = vpack.c.b16 %v2981, %v2969
    %v3738 = vpack.c.b16 %v2982, %v2970
    %v3739 = vpack.c.b16 %v2983, %v2971
    %v3740 = vpack.c.b16 %v2984, %v2972
    %v3741 = vpack.c.b16 %v2985, %v2973
    %v3742 = vpack.c.b16 %v2986, %v2974
    %v3743 = vpack.c.b16 %v2987, %v2975
    %v3744 = vpack.c.b16 %v3000, %v2988
    %v3745 = vpack.c.b16 %v3001, %v2989
    %v3746 = vpack.c.b16 %v3002, %v2990
    %v3747 = vpack.c.b16 %v3003, %v2991
    %v3748 = vpack.c.b16 %v3004, %v2992
    %v3749 = vpack.c.b16 %v3005, %v2993
    %v3750 = vpack.c.b16 %v3006, %v2994
    %v3751 = vpack.c.b16 %v3007, %v2995
    %v3752 = vpack.c.b16 %v3008, %v2996
    %v3753 = vpack.c.b16 %v3009, %v2997
    %v3754 = vpack.c.b16 %v3010, %v2998
    %v3755 = vpack.c.b16 %v3011, %v2999
    %v3756 = vpack.c.b16 %v3024, %v3012
    %v3757 = vpack.c.b16 %v3025, %v3013
    %v3758 = vpack.c.b16 %v3026, %v3014
    %v3759 = vpack.c.b16 %v3027, %v3015
    %v3760 = vpack.c.b16 %v3028, %v3016
    %v3761 = vpack.c.b16 %v3029, %v3017
    %v3762 = vpack.c.b16 %v3030, %v3018
    %v3763 = vpack.c.b16 %v3031, %v3019
    %v3764 = vpack.c.b16 %v3032, %v3020
    %v3765 = vpack.c.b16 %v3033, %v3021
    %v3766 = vpack.c.b16 %v3034, %v3022
    %v3767 = vpack.c.b16 %v3035, %v3023
    %v3768 = vpack.c.b16 %v3048, %v3036
    %v3769 = vpack.c.b16 %v3049, %v3037
    %v3770 = vpack.c.b16 %v3050, %v3038
    %v3771 = vpack.c.b16 %v3051, %v3039
    %v3772 = vpack.c.b16 %v3052, %v3040
    %v3773 = vpack.c.b16 %v3053, %v3041
    %v3774 = vpack.c.b16 %v3054, %v3042
    %v3775 = vpack.c.b16 %v3055, %v3043
    %v3776 = vpack.c.b16 %v3056, %v3044
    %v3777 = vpack.c.b16 %v3057, %v3045
    %v3778 = vpack.c.b16 %v3058, %v3046
    %v3779 = vpack.c.b16 %v3059, %v3047
    %v3780 = vpack.c.b16 %v3072, %v3060
    %v3781 = vpack.c.b16 %v3073, %v3061
    %v3782 = vpack.c.b16 %v3074, %v3062
    %v3783 = vpack.c.b16 %v3075, %v3063
    %v3784 = vpack.c.b16 %v3076, %v3064
    %v3785 = vpack.c.b16 %v3077, %v3065
    %v3786 = vpack.c.b16 %v3078, %v3066
    %v3787 = vpack.c.b16 %v3079, %v3067
    %v3788 = vpack.c.b16 %v3080, %v3068
    %v3789 = vpack.c.b16 %v3081, %v3069
    %v3790 = vpack.c.b16 %v3082, %v3070
    %v3791 = vpack.c.b16 %v3083, %v3071
    %v3792 = vpack.c.b16 %v3096, %v3084
    %v3793 = vpack.c.b16 %v3097, %v3085
    %v3794 = vpack.c.b16 %v3098, %v3086
    %v3795 = vpack.c.b16 %v3099, %v3087
    %v3796 = vpack.c.b16 %v3100, %v3088
    %v3797 = vpack.c.b16 %v3101, %v3089
    %v3798 = vpack.c.b16 %v3102, %v3090
    %v3799 = vpack.c.b16 %v3103, %v3091
    %v3800 = vpack.c.b16 %v3104, %v3092
    %v3801 = vpack.c.b16 %v3105, %v3093
    %v3802 = vpack.c.b16 %v3106, %v3094
    %v3803 = vpack.c.b16 %v3107, %v3095
    %v3804 = vpack.c.b16 %v3120, %v3108
    %v3805 = vpack.c.b16 %v3121, %v3109
    %v3806 = vpack.c.b16 %v3122, %v3110
    %v3807 = vpack.c.b16 %v3123, %v3111
    %v3808 = vpack.c.b16 %v3124, %v3112
    %v3809 = vpack.c.b16 %v3125, %v3113
    %v3810 = vpack.c.b16 %v3126, %v3114
    %v3811 = vpack.c.b16 %v3127, %v3115
    %v3812 = vpack.c.b16 %v3128, %v3116
    %v3813 = vpack.c.b16 %v3129, %v3117
    %v3814 = vpack.c.b16 %v3130, %v3118
    %v3815 = vpack.c.b16 %v3131, %v3119
    %v3816 = vpack.c.b16 %v3144, %v3132
    %v3817 = vpack.c.b16 %v3145, %v3133
    %v3818 = vpack.c.b16 %v3146, %v3134
    %v3819 = vpack.c.b16 %v3147, %v3135
    %v3820 = vpack.c.b16 %v3148, %v3136
    %v3821 = vpack.c.b16 %v3149, %v3137
    %v3822 = vpack.c.b16 %v3150, %v3138
    %v3823 = vpack.c.b16 %v3151, %v3139
    %v3824 = vpack.c.b16 %v3152, %v3140
    %v3825 = vpack.c.b16 %v3153, %v3141
    %v3826 = vpack.c.b16 %v3154, %v3142
    %v3827 = vpack.c.b16 %v3155, %v3143
    %v3828 = vpack.c.b16 %v3168, %v3156
    %v3829 = vpack.c.b16 %v3169, %v3157
    %v3830 = vpack.c.b16 %v3170, %v3158
    %v3831 = vpack.c.b16 %v3171, %v3159
    %v3832 = vpack.c.b16 %v3172, %v3160
    %v3833 = vpack.c.b16 %v3173, %v3161
    %v3834 = vpack.c.b16 %v3174, %v3162
    %v3835 = vpack.c.b16 %v3175, %v3163
    %v3836 = vpack.c.b16 %v3176, %v3164
    %v3837 = vpack.c.b16 %v3177, %v3165
    %v3838 = vpack.c.b16 %v3178, %v3166
    %v3839 = vpack.c.b16 %v3179, %v3167
    %v3840 = vpack.c.b16 %v3192, %v3180
    %v3841 = vpack.c.b16 %v3193, %v3181
    %v3842 = vpack.c.b16 %v3194, %v3182
    %v3843 = vpack.c.b16 %v3195, %v3183
    %v3844 = vpack.c.b16 %v3196, %v3184
    %v3845 = vpack.c.b16 %v3197, %v3185
    %v3846 = vpack.c.b16 %v3198, %v3186
    %v3847 = vpack.c.b16 %v3199, %v3187
    %v3848 = vpack.c.b16 %v3200, %v3188
    %v3849 = vpack.c.b16 %v3201, %v3189
    %v3850 = vpack.c.b16 %v3202, %v3190
    %v3851 = vpack.c.b16 %v3203, %v3191
    %v3852 = vpack.c.b16 %v3216, %v3204
    %v3853 = vpack.c.b16 %v3217, %v3205
    %v3854 = vpack.c.b16 %v3218, %v3206
    %v3855 = vpack.c.b16 %v3219, %v3207
    %v3856 = vpack.c.b16 %v3220, %v3208
    %v3857 = vpack.c.b16 %v3221, %v3209
    %v3858 = vpack.c.b16 %v3222, %v3210
    %v3859 = vpack.c.b16 %v3223, %v3211
    %v3860 = vpack.c.b16 %v3224, %v3212
    %v3861 = vpack.c.b16 %v3225, %v3213
    %v3862 = vpack.c.b16 %v3226, %v3214
    %v3863 = vpack.c.b16 %v3227, %v3215
    %v3864 = vpack.c.b16 %v3240, %v3228
    %v3865 = vpack.c.b16 %v3241, %v3229
    %v3866 = vpack.c.b16 %v3242, %v3230
    %v3867 = vpack.c.b16 %v3243, %v3231
    %v3868 = vpack.c.b16 %v3244, %v3232
    %v3869 = vpack.c.b16 %v3245, %v3233
    %v3870 = vpack.c.b16 %v3246, %v3234
    %v3871 = vpack.c.b16 %v3247, %v3235
    %v3872 = vpack.c.b16 %v3248, %v3236
    %v3873 = vpack.c.b16 %v3249, %v3237
    %v3874 = vpack.c.b16 %v3250, %v3238
    %v3875 = vpack.c.b16 %v3251, %v3239
    %v3876 = vpack.c.b16 %v3264, %v3252
    %v3877 = vpack.c.b16 %v3265, %v3253
    %v3878 = vpack.c.b16 %v3266, %v3254
    %v3879 = vpack.c.b16 %v3267, %v3255
    %v3880 = vpack.c.b16 %v3268, %v3256
    %v3881 = vpack.c.b16 %v3269, %v3257
    %v3882 = vpack.c.b16 %v3270, %v3258
    %v3883 = vpack.c.b16 %v3271, %v3259
    %v3884 = vpack.c.b16 %v3272, %v3260
    %v3885 = vpack.c.b16 %v3273, %v3261
    %v3886 = vpack.c.b16 %v3274, %v3262
    %v3887 = vpack.c.b16 %v3275, %v3263
    %v3888 = vpack.c.b16 %v3288, %v3276
    %v3889 = vpack.c.b16 %v3289, %v3277
    %v3890 = vpack.c.b16 %v3290, %v3278
    %v3891 = vpack.c.b16 %v3291, %v3279
    %v3892 = vpack.c.b16 %v3292, %v3280
    %v3893 = vpack.c.b16 %v3293, %v3281
    %v3894 = vpack.c.b16 %v3294, %v3282
    %v3895 = vpack.c.b16 %v3295, %v3283
    %v3896 = vpack.c.b16 %v3296, %v3284
    %v3897 = vpack.c.b16 %v3297, %v3285
    %v3898 = vpack.c.b16 %v3298, %v3286
    %v3899 = vpack.c.b16 %v3299, %v3287
    %v3900 = vpack.c.b16 %v3312, %v3300
    %v3901 = vpack.c.b16 %v3313, %v3301
    %v3902 = vpack.c.b16 %v3314, %v3302
    %v3903 = vpack.c.b16 %v3315, %v3303
    %v3904 = vpack.c.b16 %v3316, %v3304
    %v3905 = vpack.c.b16 %v3317, %v3305
    %v3906 = vpack.c.b16 %v3318, %v3306
    %v3907 = vpack.c.b16 %v3319, %v3307
    %v3908 = vpack.c.b16 %v3320, %v3308
    %v3909 = vpack.c.b16 %v3321, %v3309
    %v3910 = vpack.c.b16 %v3322, %v3310
    %v3911 = vpack.c.b16 %v3323, %v3311
    %v3912 = vpack.c.b16 %v3336, %v3324
    %v3913 = vpack.c.b16 %v3337, %v3325
    %v3914 = vpack.c.b16 %v3338, %v3326
    %v3915 = vpack.c.b16 %v3339, %v3327
    %v3916 = vpack.c.b16 %v3340, %v3328
    %v3917 = vpack.c.b16 %v3341, %v3329
    %v3918 = vpack.c.b16 %v3342, %v3330
    %v3919 = vpack.c.b16 %v3343, %v3331
    %v3920 = vpack.c.b16 %v3344, %v3332
    %v3921 = vpack.c.b16 %v3345, %v3333
    %v3922 = vpack.c.b16 %v3346, %v3334
    %v3923 = vpack.c.b16 %v3347, %v3335
    %v3924 = vpack.c.b16 %v3360, %v3348
    %v3925 = vpack.c.b16 %v3361, %v3349
    %v3926 = vpack.c.b16 %v3362, %v3350
    %v3927 = vpack.c.b16 %v3363, %v3351
    %v3928 = vpack.c.b16 %v3364, %v3352
    %v3929 = vpack.c.b16 %v3365, %v3353
    %v3930 = vpack.c.b16 %v3366, %v3354
    %v3931 = vpack.c.b16 %v3367, %v3355
    %v3932 = vpack.c.b16 %v3368, %v3356
    %v3933 = vpack.c.b16 %v3369, %v3357
    %v3934 = vpack.c.b16 %v3370, %v3358
    %v3935 = vpack.c.b16 %v3371, %v3359
    %v3936 = vpack.c.b16 %v3384, %v3372
    %v3937 = vpack.c.b16 %v3385, %v3373
    %v3938 = vpack.c.b16 %v3386, %v3374
    %v3939 = vpack.c.b16 %v3387, %v3375
    %v3940 = vpack.c.b16 %v3388, %v3376
    %v3941 = vpack.c.b16 %v3389, %v3377
    %v3942 = vpack.c.b16 %v3390, %v3378
    %v3943 = vpack.c.b16 %v3391, %v3379
    %v3944 = vpack.c.b16 %v3392, %v3380
    %v3945 = vpack.c.b16 %v3393, %v3381
    %v3946 = vpack.c.b16 %v3394, %v3382
    %v3947 = vpack.c.b16 %v3395, %v3383
    %v3948 = vpack.c.b16 %v3408, %v3396
    %v3949 = vpack.c.b16 %v3409, %v3397
    %v3950 = vpack.c.b16 %v3410, %v3398
    %v3951 = vpack.c.b16 %v3411, %v3399
    %v3952 = vpack.c.b16 %v3412, %v3400
    %v3953 = vpack.c.b16 %v3413, %v3401
    %v3954 = vpack.c.b16 %v3414, %v3402
    %v3955 = vpack.c.b16 %v3415, %v3403
    %v3956 = vpack.c.b16 %v3416, %v3404
    %v3957 = vpack.c.b16 %v3417, %v3405
    %v3958 = vpack.c.b16 %v3418, %v3406
    %v3959 = vpack.c.b16 %v3419, %v3407
    %v3960 = vpack.c.b16 %v3432, %v3420
    %v3961 = vpack.c.b16 %v3433, %v3421
    %v3962 = vpack.c.b16 %v3434, %v3422
    %v3963 = vpack.c.b16 %v3435, %v3423
    %v3964 = vpack.c.b16 %v3436, %v3424
    %v3965 = vpack.c.b16 %v3437, %v3425
    %v3966 = vpack.c.b16 %v3438, %v3426
    %v3967 = vpack.c.b16 %v3439, %v3427
    %v3968 = vpack.c.b16 %v3440, %v3428
    %v3969 = vpack.c.b16 %v3441, %v3429
    %v3970 = vpack.c.b16 %v3442, %v3430
    %v3971 = vpack.c.b16 %v3443, %v3431
    %v3972 = vpack.c.b16 %v3456, %v3444
    %v3973 = vpack.c.b16 %v3457, %v3445
    %v3974 = vpack.c.b16 %v3458, %v3446
    %v3975 = vpack.c.b16 %v3459, %v3447
    %v3976 = vpack.c.b16 %v3460, %v3448
    %v3977 = vpack.c.b16 %v3461, %v3449
    %v3978 = vpack.c.b16 %v3462, %v3450
    %v3979 = vpack.c.b16 %v3463, %v3451
    %v3980 = vpack.c.b16 %v3464, %v3452
    %v3981 = vpack.c.b16 %v3465, %v3453
    %v3982 = vpack.c.b16 %v3466, %v3454
    %v3983 = vpack.c.b16 %v3467, %v3455
    %v3984 = vpack.c.b16 %v3480, %v3468
    %v3985 = vpack.c.b16 %v3481, %v3469
    %v3986 = vpack.c.b16 %v3482, %v3470
    %v3987 = vpack.c.b16 %v3483, %v3471
    %v3988 = vpack.c.b16 %v3484, %v3472
    %v3989 = vpack.c.b16 %v3485, %v3473
    %v3990 = vpack.c.b16 %v3486, %v3474
    %v3991 = vpack.c.b16 %v3487, %v3475
    %v3992 = vpack.c.b16 %v3488, %v3476
    %v3993 = vpack.c.b16 %v3489, %v3477
    %v3994 = vpack.c.b16 %v3490, %v3478
    %v3995 = vpack.c.b16 %v3491, %v3479
    %v3996 = vpack.c.b16 %v3504, %v3492
    %v3997 = vpack.c.b16 %v3505, %v3493
    %v3998 = vpack.c.b16 %v3506, %v3494
    %v3999 = vpack.c.b16 %v3507, %v3495
    %v4000 = vpack.c.b16 %v3508, %v3496
    %v4001 = vpack.c.b16 %v3509, %v3497
    %v4002 = vpack.c.b16 %v3510, %v3498
    %v4003 = vpack.c.b16 %v3511, %v3499
    %v4004 = vpack.c.b16 %v3512, %v3500
    %v4005 = vpack.c.b16 %v3513, %v3501
    %v4006 = vpack.c.b16 %v3514, %v3502
    %v4007 = vpack.c.b16 %v3515, %v3503
    %v4008 = vpack.c.b16 %v3528, %v3516
    %v4009 = vpack.c.b16 %v3529, %v3517
    %v4010 = vpack.c.b16 %v3530, %v3518
    %v4011 = vpack.c.b16 %v3531, %v3519
    %v4012 = vpack.c.b16 %v3532, %v3520
    %v4013 = vpack.c.b16 %v3533, %v3521
    %v4014 = vpack.c.b16 %v3534, %v3522
    %v4015 = vpack.c.b16 %v3535, %v3523
    %v4016 = vpack.c.b16 %v3536, %v3524
    %v4017 = vpack.c.b16 %v3537, %v3525
    %v4018 = vpack.c.b16 %v3538, %v3526
    %v4019 = vpack.c.b16 %v3539, %v3527
    %v4020 = vpack.c.b16 %v3552, %v3540
    %v4021 = vpack.c.b16 %v3553, %v3541
    %v4022 = vpack.c.b16 %v3554, %v3542
    %v4023 = vpack.c.b16 %v3555, %v3543
    %v4024 = vpack.c.b16 %v3556, %v3544
    %v4025 = vpack.c.b16 %v3557, %v3545
    %v4026 = vpack.c.b16 %v3558, %v3546
    %v4027 = vpack.c.b16 %v3559, %v3547
    %v4028 = vpack.c.b16 %v3560, %v3548
    %v4029 = vpack.c.b16 %v3561, %v3549
    %v4030 = vpack.c.b16 %v3562, %v3550
    %v4031 = vpack.c.b16 %v3563, %v3551
    %vm4500 = vcmask 916480
    %v4502 = vsel %vm4500, %v1663, 0
    %4504 = vmatpush.bf16.msra.mxu0 %v3648
    %4505 = vmatpush.bf16.msra.mxu0 %v3636
    %4506 = vmatpush.bf16.msra.mxu0 %v3624
    %4507 = vmatpush.bf16.msra.mxu0 %v3612
    %4508 = vmatpush.bf16.msra.mxu0 %v3600
    %4509 = vmatpush.bf16.msra.mxu0 %v3588
    %4510 = vmatpush.bf16.msra.mxu0 %v3576
    %4511 = vmatpush.bf16.msra.mxu0 %v3564
    %4512 = vmatmul.bf16.gmra.mxu0 %v1659
    %v4513 = vpop.f32.mrf.mxu0
    %v4514 = vadd.f32 %v2136, %v4513
    %v4515 = vpop.f32.mrf.mxu0
    %4516 = vdwg.mxu0
    %4517 = vmatpush.bf16.msra.mxu0 %v3744
    %4518 = vmatpush.bf16.msra.mxu0 %v3732
    %4519 = vmatpush.bf16.msra.mxu0 %v3720
    %4520 = vmatpush.bf16.msra.mxu0 %v3708
    %4521 = vmatpush.bf16.msra.mxu0 %v3696
    %4522 = vmatpush.bf16.msra.mxu0 %v3684
    %4523 = vmatpush.bf16.msra.mxu0 %v3672
    %4524 = vmatpush.bf16.msra.mxu0 %v3660
    %4525 = vmatmul.bf16.gmra.mxu0 %v1660
    %v4526 = vpop.f32.mrf.mxu0
    %v4527 = vadd.f32 %v4514, %v4526
    %v4528 = vpop.f32.mrf.mxu0
    %4529 = vdwg.mxu0
    %4530 = vmatpush.bf16.msra.mxu0 %v3840
    %4531 = vmatpush.bf16.msra.mxu0 %v3828
    %4532 = vmatpush.bf16.msra.mxu0 %v3816
    %4533 = vmatpush.bf16.msra.mxu0 %v3804
    %4534 = vmatpush.bf16.msra.mxu0 %v3792
    %4535 = vmatpush.bf16.msra.mxu0 %v3780
    %4536 = vmatpush.bf16.msra.mxu0 %v3768
    %4537 = vmatpush.bf16.msra.mxu0 %v3756
    %4538 = vmatmul.bf16.gmra.mxu0 %v1661
    %v4539 = vpop.f32.mrf.mxu0
    %v4540 = vadd.f32 %v4527, %v4539
    %v4541 = vpop.f32.mrf.mxu0
    %4542 = vdwg.mxu0
    %4543 = vmatpush.bf16.msra.mxu0 %v3936
    %4544 = vmatpush.bf16.msra.mxu0 %v3924
    %4545 = vmatpush.bf16.msra.mxu0 %v3912
    %4546 = vmatpush.bf16.msra.mxu0 %v3900
    %4547 = vmatpush.bf16.msra.mxu0 %v3888
    %4548 = vmatpush.bf16.msra.mxu0 %v3876
    %4549 = vmatpush.bf16.msra.mxu0 %v3864
    %4550 = vmatpush.bf16.msra.mxu0 %v3852
    %4551 = vmatmul.bf16.gmra.mxu0 %v1662
    %v4552 = vpop.f32.mrf.mxu0
    %v4553 = vadd.f32 %v4540, %v4552
    %v4554 = vpop.f32.mrf.mxu0
    %4555 = vdwg.mxu0
    %4556 = vmatpush.bf16.msra.mxu0 0
    %4557 = vmatpush.bf16.msra.mxu0 %v4020
    %4558 = vmatpush.bf16.msra.mxu0 %v4008
    %4559 = vmatpush.bf16.msra.mxu0 %v3996
    %4560 = vmatpush.bf16.msra.mxu0 %v3984
    %4561 = vmatpush.bf16.msra.mxu0 %v3972
    %4562 = vmatpush.bf16.msra.mxu0 %v3960
    %4563 = vmatpush.bf16.msra.mxu0 %v3948
    %4564 = vmatmul.bf16.gmra.mxu0 %v4502
    %v4565 = vpop.f32.mrf.mxu0
    %v4566 = vadd.f32 %v4553, %v4565
    %v4567 = vpop.f32.mrf.mxu0
    %4568 = vdwg.mxu0
    %4569 = vmatpush.bf16.msra.mxu0 %v3649
    %4570 = vmatpush.bf16.msra.mxu0 %v3637
    %4571 = vmatpush.bf16.msra.mxu0 %v3625
    %4572 = vmatpush.bf16.msra.mxu0 %v3613
    %4573 = vmatpush.bf16.msra.mxu0 %v3601
    %4574 = vmatpush.bf16.msra.mxu0 %v3589
    %4575 = vmatpush.bf16.msra.mxu0 %v3577
    %4576 = vmatpush.bf16.msra.mxu0 %v3565
    %4577 = vmatmul.bf16.gmra.mxu0 %v1659
    %v4578 = vpop.f32.mrf.mxu0
    %v4579 = vadd.f32 %v2137, %v4578
    %v4580 = vpop.f32.mrf.mxu0
    %4581 = vdwg.mxu0
    %4582 = vmatpush.bf16.msra.mxu0 %v3745
    %4583 = vmatpush.bf16.msra.mxu0 %v3733
    %4584 = vmatpush.bf16.msra.mxu0 %v3721
    %4585 = vmatpush.bf16.msra.mxu0 %v3709
    %4586 = vmatpush.bf16.msra.mxu0 %v3697
    %4587 = vmatpush.bf16.msra.mxu0 %v3685
    %4588 = vmatpush.bf16.msra.mxu0 %v3673
    %4589 = vmatpush.bf16.msra.mxu0 %v3661
    %4590 = vmatmul.bf16.gmra.mxu0 %v1660
    %v4591 = vpop.f32.mrf.mxu0
    %v4592 = vadd.f32 %v4579, %v4591
    %v4593 = vpop.f32.mrf.mxu0
    %4594 = vdwg.mxu0
    %4595 = vmatpush.bf16.msra.mxu0 %v3841
    %4596 = vmatpush.bf16.msra.mxu0 %v3829
    %4597 = vmatpush.bf16.msra.mxu0 %v3817
    %4598 = vmatpush.bf16.msra.mxu0 %v3805
    %4599 = vmatpush.bf16.msra.mxu0 %v3793
    %4600 = vmatpush.bf16.msra.mxu0 %v3781
    %4601 = vmatpush.bf16.msra.mxu0 %v3769
    %4602 = vmatpush.bf16.msra.mxu0 %v3757
    %4603 = vmatmul.bf16.gmra.mxu0 %v1661
    %v4604 = vpop.f32.mrf.mxu0
    %v4605 = vadd.f32 %v4592, %v4604
    %v4606 = vpop.f32.mrf.mxu0
    %4607 = vdwg.mxu0
    %4608 = vmatpush.bf16.msra.mxu0 %v3937
    %4609 = vmatpush.bf16.msra.mxu0 %v3925
    %4610 = vmatpush.bf16.msra.mxu0 %v3913
    %4611 = vmatpush.bf16.msra.mxu0 %v3901
    %4612 = vmatpush.bf16.msra.mxu0 %v3889
    %4613 = vmatpush.bf16.msra.mxu0 %v3877
    %4614 = vmatpush.bf16.msra.mxu0 %v3865
    %4615 = vmatpush.bf16.msra.mxu0 %v3853
    %4616 = vmatmul.bf16.gmra.mxu0 %v1662
    %v4617 = vpop.f32.mrf.mxu0
    %v4618 = vadd.f32 %v4605, %v4617
    %v4619 = vpop.f32.mrf.mxu0
    %4620 = vdwg.mxu0
    %4621 = vmatpush.bf16.msra.mxu0 0
    %4622 = vmatpush.bf16.msra.mxu0 %v4021
    %4623 = vmatpush.bf16.msra.mxu0 %v4009
    %4624 = vmatpush.bf16.msra.mxu0 %v3997
    %4625 = vmatpush.bf16.msra.mxu0 %v3985
    %4626 = vmatpush.bf16.msra.mxu0 %v3973
    %4627 = vmatpush.bf16.msra.mxu0 %v3961
    %4628 = vmatpush.bf16.msra.mxu0 %v3949
    %4629 = vmatmul.bf16.gmra.mxu0 %v4502
    %v4630 = vpop.f32.mrf.mxu0
    %v4631 = vadd.f32 %v4618, %v4630
    %v4632 = vpop.f32.mrf.mxu0
    %4633 = vdwg.mxu0
    %4634 = vmatpush.bf16.msra.mxu0 %v3650
    %4635 = vmatpush.bf16.msra.mxu0 %v3638
    %4636 = vmatpush.bf16.msra.mxu0 %v3626
    %4637 = vmatpush.bf16.msra.mxu0 %v3614
    %4638 = vmatpush.bf16.msra.mxu0 %v3602
    %4639 = vmatpush.bf16.msra.mxu0 %v3590
    %4640 = vmatpush.bf16.msra.mxu0 %v3578
    %4641 = vmatpush.bf16.msra.mxu0 %v3566
    %4642 = vmatmul.bf16.gmra.mxu0 %v1659
    %v4643 = vpop.f32.mrf.mxu0
    %v4644 = vadd.f32 %v2138, %v4643
    %v4645 = vpop.f32.mrf.mxu0
    %4646 = vdwg.mxu0
    %4647 = vmatpush.bf16.msra.mxu0 %v3746
    %4648 = vmatpush.bf16.msra.mxu0 %v3734
    %4649 = vmatpush.bf16.msra.mxu0 %v3722
    %4650 = vmatpush.bf16.msra.mxu0 %v3710
    %4651 = vmatpush.bf16.msra.mxu0 %v3698
    %4652 = vmatpush.bf16.msra.mxu0 %v3686
    %4653 = vmatpush.bf16.msra.mxu0 %v3674
    %4654 = vmatpush.bf16.msra.mxu0 %v3662
    %4655 = vmatmul.bf16.gmra.mxu0 %v1660
    %v4656 = vpop.f32.mrf.mxu0
    %v4657 = vadd.f32 %v4644, %v4656
    %v4658 = vpop.f32.mrf.mxu0
    %4659 = vdwg.mxu0
    %4660 = vmatpush.bf16.msra.mxu0 %v3842
    %4661 = vmatpush.bf16.msra.mxu0 %v3830
    %4662 = vmatpush.bf16.msra.mxu0 %v3818
    %4663 = vmatpush.bf16.msra.mxu0 %v3806
    %4664 = vmatpush.bf16.msra.mxu0 %v3794
    %4665 = vmatpush.bf16.msra.mxu0 %v3782
    %4666 = vmatpush.bf16.msra.mxu0 %v3770
    %4667 = vmatpush.bf16.msra.mxu0 %v3758
    %4668 = vmatmul.bf16.gmra.mxu0 %v1661
    %v4669 = vpop.f32.mrf.mxu0
    %v4670 = vadd.f32 %v4657, %v4669
    %v4671 = vpop.f32.mrf.mxu0
    %4672 = vdwg.mxu0
    %4673 = vmatpush.bf16.msra.mxu0 %v3938
    %4674 = vmatpush.bf16.msra.mxu0 %v3926
    %4675 = vmatpush.bf16.msra.mxu0 %v3914
    %4676 = vmatpush.bf16.msra.mxu0 %v3902
    %4677 = vmatpush.bf16.msra.mxu0 %v3890
    %4678 = vmatpush.bf16.msra.mxu0 %v3878
    %4679 = vmatpush.bf16.msra.mxu0 %v3866
    %4680 = vmatpush.bf16.msra.mxu0 %v3854
    %4681 = vmatmul.bf16.gmra.mxu0 %v1662
    %v4682 = vpop.f32.mrf.mxu0
    %v4683 = vadd.f32 %v4670, %v4682
    %v4684 = vpop.f32.mrf.mxu0
    %4685 = vdwg.mxu0
    %4686 = vmatpush.bf16.msra.mxu0 0
    %4687 = vmatpush.bf16.msra.mxu0 %v4022
    %4688 = vmatpush.bf16.msra.mxu0 %v4010
    %4689 = vmatpush.bf16.msra.mxu0 %v3998
    %4690 = vmatpush.bf16.msra.mxu0 %v3986
    %4691 = vmatpush.bf16.msra.mxu0 %v3974
    %4692 = vmatpush.bf16.msra.mxu0 %v3962
    %4693 = vmatpush.bf16.msra.mxu0 %v3950
    %4694 = vmatmul.bf16.gmra.mxu0 %v4502
    %v4695 = vpop.f32.mrf.mxu0
    %v4696 = vadd.f32 %v4683, %v4695
    %v4697 = vpop.f32.mrf.mxu0
    %4698 = vdwg.mxu0
    %4699 = vmatpush.bf16.msra.mxu0 %v3651
    %4700 = vmatpush.bf16.msra.mxu0 %v3639
    %4701 = vmatpush.bf16.msra.mxu0 %v3627
    %4702 = vmatpush.bf16.msra.mxu0 %v3615
    %4703 = vmatpush.bf16.msra.mxu0 %v3603
    %4704 = vmatpush.bf16.msra.mxu0 %v3591
    %4705 = vmatpush.bf16.msra.mxu0 %v3579
    %4706 = vmatpush.bf16.msra.mxu0 %v3567
    %4707 = vmatmul.bf16.gmra.mxu0 %v1659
    %v4708 = vpop.f32.mrf.mxu0
    %v4709 = vadd.f32 %v2139, %v4708
    %v4710 = vpop.f32.mrf.mxu0
    %4711 = vdwg.mxu0
    %4712 = vmatpush.bf16.msra.mxu0 %v3747
    %4713 = vmatpush.bf16.msra.mxu0 %v3735
    %4714 = vmatpush.bf16.msra.mxu0 %v3723
    %4715 = vmatpush.bf16.msra.mxu0 %v3711
    %4716 = vmatpush.bf16.msra.mxu0 %v3699
    %4717 = vmatpush.bf16.msra.mxu0 %v3687
    %4718 = vmatpush.bf16.msra.mxu0 %v3675
    %4719 = vmatpush.bf16.msra.mxu0 %v3663
    %4720 = vmatmul.bf16.gmra.mxu0 %v1660
    %v4721 = vpop.f32.mrf.mxu0
    %v4722 = vadd.f32 %v4709, %v4721
    %v4723 = vpop.f32.mrf.mxu0
    %4724 = vdwg.mxu0
    %4725 = vmatpush.bf16.msra.mxu0 %v3843
    %4726 = vmatpush.bf16.msra.mxu0 %v3831
    %4727 = vmatpush.bf16.msra.mxu0 %v3819
    %4728 = vmatpush.bf16.msra.mxu0 %v3807
    %4729 = vmatpush.bf16.msra.mxu0 %v3795
    %4730 = vmatpush.bf16.msra.mxu0 %v3783
    %4731 = vmatpush.bf16.msra.mxu0 %v3771
    %4732 = vmatpush.bf16.msra.mxu0 %v3759
    %4733 = vmatmul.bf16.gmra.mxu0 %v1661
    %v4734 = vpop.f32.mrf.mxu0
    %v4735 = vadd.f32 %v4722, %v4734
    %v4736 = vpop.f32.mrf.mxu0
    %4737 = vdwg.mxu0
    %4738 = vmatpush.bf16.msra.mxu0 %v3939
    %4739 = vmatpush.bf16.msra.mxu0 %v3927
    %4740 = vmatpush.bf16.msra.mxu0 %v3915
    %4741 = vmatpush.bf16.msra.mxu0 %v3903
    %4742 = vmatpush.bf16.msra.mxu0 %v3891
    %4743 = vmatpush.bf16.msra.mxu0 %v3879
    %4744 = vmatpush.bf16.msra.mxu0 %v3867
    %4745 = vmatpush.bf16.msra.mxu0 %v3855
    %4746 = vmatmul.bf16.gmra.mxu0 %v1662
    %v4747 = vpop.f32.mrf.mxu0
    %v4748 = vadd.f32 %v4735, %v4747
    %v4749 = vpop.f32.mrf.mxu0
    %4750 = vdwg.mxu0
    %4751 = vmatpush.bf16.msra.mxu0 0
    %4752 = vmatpush.bf16.msra.mxu0 %v4023
    %4753 = vmatpush.bf16.msra.mxu0 %v4011
    %4754 = vmatpush.bf16.msra.mxu0 %v3999
    %4755 = vmatpush.bf16.msra.mxu0 %v3987
    %4756 = vmatpush.bf16.msra.mxu0 %v3975
    %4757 = vmatpush.bf16.msra.mxu0 %v3963
    %4758 = vmatpush.bf16.msra.mxu0 %v3951
    %4759 = vmatmul.bf16.gmra.mxu0 %v4502
    %v4760 = vpop.f32.mrf.mxu0
    %v4761 = vadd.f32 %v4748, %v4760
    %v4762 = vpop.f32.mrf.mxu0
    %4763 = vdwg.mxu0
    %4764 = vmatpush.bf16.msra.mxu0 %v3652
    %4765 = vmatpush.bf16.msra.mxu0 %v3640
    %4766 = vmatpush.bf16.msra.mxu0 %v3628
    %4767 = vmatpush.bf16.msra.mxu0 %v3616
    %4768 = vmatpush.bf16.msra.mxu0 %v3604
    %4769 = vmatpush.bf16.msra.mxu0 %v3592
    %4770 = vmatpush.bf16.msra.mxu0 %v3580
    %4771 = vmatpush.bf16.msra.mxu0 %v3568
    %4772 = vmatmul.bf16.gmra.mxu0 %v1659
    %v4773 = vpop.f32.mrf.mxu0
    %v4774 = vadd.f32 %v2140, %v4773
    %v4775 = vpop.f32.mrf.mxu0
    %4776 = vdwg.mxu0
    %4777 = vmatpush.bf16.msra.mxu0 %v3748
    %4778 = vmatpush.bf16.msra.mxu0 %v3736
    %4779 = vmatpush.bf16.msra.mxu0 %v3724
    %4780 = vmatpush.bf16.msra.mxu0 %v3712
    %4781 = vmatpush.bf16.msra.mxu0 %v3700
    %4782 = vmatpush.bf16.msra.mxu0 %v3688
    %4783 = vmatpush.bf16.msra.mxu0 %v3676
    %4784 = vmatpush.bf16.msra.mxu0 %v3664
    %4785 = vmatmul.bf16.gmra.mxu0 %v1660
    %v4786 = vpop.f32.mrf.mxu0
    %v4787 = vadd.f32 %v4774, %v4786
    %v4788 = vpop.f32.mrf.mxu0
    %4789 = vdwg.mxu0
    %4790 = vmatpush.bf16.msra.mxu0 %v3844
    %4791 = vmatpush.bf16.msra.mxu0 %v3832
    %4792 = vmatpush.bf16.msra.mxu0 %v3820
    %4793 = vmatpush.bf16.msra.mxu0 %v3808
    %4794 = vmatpush.bf16.msra.mxu0 %v3796
    %4795 = vmatpush.bf16.msra.mxu0 %v3784
    %4796 = vmatpush.bf16.msra.mxu0 %v3772
    %4797 = vmatpush.bf16.msra.mxu0 %v3760
    %4798 = vmatmul.bf16.gmra.mxu0 %v1661
    %v4799 = vpop.f32.mrf.mxu0
    %v4800 = vadd.f32 %v4787, %v4799
    %v4801 = vpop.f32.mrf.mxu0
    %4802 = vdwg.mxu0
    %4803 = vmatpush.bf16.msra.mxu0 %v3940
    %4804 = vmatpush.bf16.msra.mxu0 %v3928
    %4805 = vmatpush.bf16.msra.mxu0 %v3916
    %4806 = vmatpush.bf16.msra.mxu0 %v3904
    %4807 = vmatpush.bf16.msra.mxu0 %v3892
    %4808 = vmatpush.bf16.msra.mxu0 %v3880
    %4809 = vmatpush.bf16.msra.mxu0 %v3868
    %4810 = vmatpush.bf16.msra.mxu0 %v3856
    %4811 = vmatmul.bf16.gmra.mxu0 %v1662
    %v4812 = vpop.f32.mrf.mxu0
    %v4813 = vadd.f32 %v4800, %v4812
    %v4814 = vpop.f32.mrf.mxu0
    %4815 = vdwg.mxu0
    %4816 = vmatpush.bf16.msra.mxu0 0
    %4817 = vmatpush.bf16.msra.mxu0 %v4024
    %4818 = vmatpush.bf16.msra.mxu0 %v4012
    %4819 = vmatpush.bf16.msra.mxu0 %v4000
    %4820 = vmatpush.bf16.msra.mxu0 %v3988
    %4821 = vmatpush.bf16.msra.mxu0 %v3976
    %4822 = vmatpush.bf16.msra.mxu0 %v3964
    %4823 = vmatpush.bf16.msra.mxu0 %v3952
    %4824 = vmatmul.bf16.gmra.mxu0 %v4502
    %v4825 = vpop.f32.mrf.mxu0
    %v4826 = vadd.f32 %v4813, %v4825
    %v4827 = vpop.f32.mrf.mxu0
    %4828 = vdwg.mxu0
    %4829 = vmatpush.bf16.msra.mxu0 %v3653
    %4830 = vmatpush.bf16.msra.mxu0 %v3641
    %4831 = vmatpush.bf16.msra.mxu0 %v3629
    %4832 = vmatpush.bf16.msra.mxu0 %v3617
    %4833 = vmatpush.bf16.msra.mxu0 %v3605
    %4834 = vmatpush.bf16.msra.mxu0 %v3593
    %4835 = vmatpush.bf16.msra.mxu0 %v3581
    %4836 = vmatpush.bf16.msra.mxu0 %v3569
    %4837 = vmatmul.bf16.gmra.mxu0 %v1659
    %v4838 = vpop.f32.mrf.mxu0
    %v4839 = vadd.f32 %v2141, %v4838
    %v4840 = vpop.f32.mrf.mxu0
    %4841 = vdwg.mxu0
    %4842 = vmatpush.bf16.msra.mxu0 %v3749
    %4843 = vmatpush.bf16.msra.mxu0 %v3737
    %4844 = vmatpush.bf16.msra.mxu0 %v3725
    %4845 = vmatpush.bf16.msra.mxu0 %v3713
    %4846 = vmatpush.bf16.msra.mxu0 %v3701
    %4847 = vmatpush.bf16.msra.mxu0 %v3689
    %4848 = vmatpush.bf16.msra.mxu0 %v3677
    %4849 = vmatpush.bf16.msra.mxu0 %v3665
    %4850 = vmatmul.bf16.gmra.mxu0 %v1660
    %v4851 = vpop.f32.mrf.mxu0
    %v4852 = vadd.f32 %v4839, %v4851
    %v4853 = vpop.f32.mrf.mxu0
    %4854 = vdwg.mxu0
    %4855 = vmatpush.bf16.msra.mxu0 %v3845
    %4856 = vmatpush.bf16.msra.mxu0 %v3833
    %4857 = vmatpush.bf16.msra.mxu0 %v3821
    %4858 = vmatpush.bf16.msra.mxu0 %v3809
    %4859 = vmatpush.bf16.msra.mxu0 %v3797
    %4860 = vmatpush.bf16.msra.mxu0 %v3785
    %4861 = vmatpush.bf16.msra.mxu0 %v3773
    %4862 = vmatpush.bf16.msra.mxu0 %v3761
    %4863 = vmatmul.bf16.gmra.mxu0 %v1661
    %v4864 = vpop.f32.mrf.mxu0
    %v4865 = vadd.f32 %v4852, %v4864
    %v4866 = vpop.f32.mrf.mxu0
    %4867 = vdwg.mxu0
    %4868 = vmatpush.bf16.msra.mxu0 %v3941
    %4869 = vmatpush.bf16.msra.mxu0 %v3929
    %4870 = vmatpush.bf16.msra.mxu0 %v3917
    %4871 = vmatpush.bf16.msra.mxu0 %v3905
    %4872 = vmatpush.bf16.msra.mxu0 %v3893
    %4873 = vmatpush.bf16.msra.mxu0 %v3881
    %4874 = vmatpush.bf16.msra.mxu0 %v3869
    %4875 = vmatpush.bf16.msra.mxu0 %v3857
    %4876 = vmatmul.bf16.gmra.mxu0 %v1662
    %v4877 = vpop.f32.mrf.mxu0
    %v4878 = vadd.f32 %v4865, %v4877
    %v4879 = vpop.f32.mrf.mxu0
    %4880 = vdwg.mxu0
    %4881 = vmatpush.bf16.msra.mxu0 0
    %4882 = vmatpush.bf16.msra.mxu0 %v4025
    %4883 = vmatpush.bf16.msra.mxu0 %v4013
    %4884 = vmatpush.bf16.msra.mxu0 %v4001
    %4885 = vmatpush.bf16.msra.mxu0 %v3989
    %4886 = vmatpush.bf16.msra.mxu0 %v3977
    %4887 = vmatpush.bf16.msra.mxu0 %v3965
    %4888 = vmatpush.bf16.msra.mxu0 %v3953
    %4889 = vmatmul.bf16.gmra.mxu0 %v4502
    %v4890 = vpop.f32.mrf.mxu0
    %v4891 = vadd.f32 %v4878, %v4890
    %v4892 = vpop.f32.mrf.mxu0
    %4893 = vdwg.mxu0
    %4894 = vmatpush.bf16.msra.mxu0 %v3654
    %4895 = vmatpush.bf16.msra.mxu0 %v3642
    %4896 = vmatpush.bf16.msra.mxu0 %v3630
    %4897 = vmatpush.bf16.msra.mxu0 %v3618
    %4898 = vmatpush.bf16.msra.mxu0 %v3606
    %4899 = vmatpush.bf16.msra.mxu0 %v3594
    %4900 = vmatpush.bf16.msra.mxu0 %v3582
    %4901 = vmatpush.bf16.msra.mxu0 %v3570
    %4902 = vmatmul.bf16.gmra.mxu0 %v1659
    %v4903 = vpop.f32.mrf.mxu0
    %v4904 = vadd.f32 %v2142, %v4903
    %v4905 = vpop.f32.mrf.mxu0
    %4906 = vdwg.mxu0
    %4907 = vmatpush.bf16.msra.mxu0 %v3750
    %4908 = vmatpush.bf16.msra.mxu0 %v3738
    %4909 = vmatpush.bf16.msra.mxu0 %v3726
    %4910 = vmatpush.bf16.msra.mxu0 %v3714
    %4911 = vmatpush.bf16.msra.mxu0 %v3702
    %4912 = vmatpush.bf16.msra.mxu0 %v3690
    %4913 = vmatpush.bf16.msra.mxu0 %v3678
    %4914 = vmatpush.bf16.msra.mxu0 %v3666
    %4915 = vmatmul.bf16.gmra.mxu0 %v1660
    %v4916 = vpop.f32.mrf.mxu0
    %v4917 = vadd.f32 %v4904, %v4916
    %v4918 = vpop.f32.mrf.mxu0
    %4919 = vdwg.mxu0
    %4920 = vmatpush.bf16.msra.mxu0 %v3846
    %4921 = vmatpush.bf16.msra.mxu0 %v3834
    %4922 = vmatpush.bf16.msra.mxu0 %v3822
    %4923 = vmatpush.bf16.msra.mxu0 %v3810
    %4924 = vmatpush.bf16.msra.mxu0 %v3798
    %4925 = vmatpush.bf16.msra.mxu0 %v3786
    %4926 = vmatpush.bf16.msra.mxu0 %v3774
    %4927 = vmatpush.bf16.msra.mxu0 %v3762
    %4928 = vmatmul.bf16.gmra.mxu0 %v1661
    %v4929 = vpop.f32.mrf.mxu0
    %v4930 = vadd.f32 %v4917, %v4929
    %v4931 = vpop.f32.mrf.mxu0
    %4932 = vdwg.mxu0
    %4933 = vmatpush.bf16.msra.mxu0 %v3942
    %4934 = vmatpush.bf16.msra.mxu0 %v3930
    %4935 = vmatpush.bf16.msra.mxu0 %v3918
    %4936 = vmatpush.bf16.msra.mxu0 %v3906
    %4937 = vmatpush.bf16.msra.mxu0 %v3894
    %4938 = vmatpush.bf16.msra.mxu0 %v3882
    %4939 = vmatpush.bf16.msra.mxu0 %v3870
    %4940 = vmatpush.bf16.msra.mxu0 %v3858
    %4941 = vmatmul.bf16.gmra.mxu0 %v1662
    %v4942 = vpop.f32.mrf.mxu0
    %v4943 = vadd.f32 %v4930, %v4942
    %v4944 = vpop.f32.mrf.mxu0
    %4945 = vdwg.mxu0
    %4946 = vmatpush.bf16.msra.mxu0 0
    %4947 = vmatpush.bf16.msra.mxu0 %v4026
    %4948 = vmatpush.bf16.msra.mxu0 %v4014
    %4949 = vmatpush.bf16.msra.mxu0 %v4002
    %4950 = vmatpush.bf16.msra.mxu0 %v3990
    %4951 = vmatpush.bf16.msra.mxu0 %v3978
    %4952 = vmatpush.bf16.msra.mxu0 %v3966
    %4953 = vmatpush.bf16.msra.mxu0 %v3954
    %4954 = vmatmul.bf16.gmra.mxu0 %v4502
    %v4955 = vpop.f32.mrf.mxu0
    %v4956 = vadd.f32 %v4943, %v4955
    %v4957 = vpop.f32.mrf.mxu0
    %4958 = vdwg.mxu0
    %4959 = vmatpush.bf16.msra.mxu0 %v3655
    %4960 = vmatpush.bf16.msra.mxu0 %v3643
    %4961 = vmatpush.bf16.msra.mxu0 %v3631
    %4962 = vmatpush.bf16.msra.mxu0 %v3619
    %4963 = vmatpush.bf16.msra.mxu0 %v3607
    %4964 = vmatpush.bf16.msra.mxu0 %v3595
    %4965 = vmatpush.bf16.msra.mxu0 %v3583
    %4966 = vmatpush.bf16.msra.mxu0 %v3571
    %4967 = vmatmul.bf16.gmra.mxu0 %v1659
    %v4968 = vpop.f32.mrf.mxu0
    %v4969 = vadd.f32 %v2143, %v4968
    %v4970 = vpop.f32.mrf.mxu0
    %4971 = vdwg.mxu0
    %4972 = vmatpush.bf16.msra.mxu0 %v3751
    %4973 = vmatpush.bf16.msra.mxu0 %v3739
    %4974 = vmatpush.bf16.msra.mxu0 %v3727
    %4975 = vmatpush.bf16.msra.mxu0 %v3715
    %4976 = vmatpush.bf16.msra.mxu0 %v3703
    %4977 = vmatpush.bf16.msra.mxu0 %v3691
    %4978 = vmatpush.bf16.msra.mxu0 %v3679
    %4979 = vmatpush.bf16.msra.mxu0 %v3667
    %4980 = vmatmul.bf16.gmra.mxu0 %v1660
    %v4981 = vpop.f32.mrf.mxu0
    %v4982 = vadd.f32 %v4969, %v4981
    %v4983 = vpop.f32.mrf.mxu0
    %4984 = vdwg.mxu0
    %4985 = vmatpush.bf16.msra.mxu0 %v3847
    %4986 = vmatpush.bf16.msra.mxu0 %v3835
    %4987 = vmatpush.bf16.msra.mxu0 %v3823
    %4988 = vmatpush.bf16.msra.mxu0 %v3811
    %4989 = vmatpush.bf16.msra.mxu0 %v3799
    %4990 = vmatpush.bf16.msra.mxu0 %v3787
    %4991 = vmatpush.bf16.msra.mxu0 %v3775
    %4992 = vmatpush.bf16.msra.mxu0 %v3763
    %4993 = vmatmul.bf16.gmra.mxu0 %v1661
    %v4994 = vpop.f32.mrf.mxu0
    %v4995 = vadd.f32 %v4982, %v4994
    %v4996 = vpop.f32.mrf.mxu0
    %4997 = vdwg.mxu0
    %4998 = vmatpush.bf16.msra.mxu0 %v3943
    %4999 = vmatpush.bf16.msra.mxu0 %v3931
    %5000 = vmatpush.bf16.msra.mxu0 %v3919
    %5001 = vmatpush.bf16.msra.mxu0 %v3907
    %5002 = vmatpush.bf16.msra.mxu0 %v3895
    %5003 = vmatpush.bf16.msra.mxu0 %v3883
    %5004 = vmatpush.bf16.msra.mxu0 %v3871
    %5005 = vmatpush.bf16.msra.mxu0 %v3859
    %5006 = vmatmul.bf16.gmra.mxu0 %v1662
    %v5007 = vpop.f32.mrf.mxu0
    %v5008 = vadd.f32 %v4995, %v5007
    %v5009 = vpop.f32.mrf.mxu0
    %5010 = vdwg.mxu0
    %5011 = vmatpush.bf16.msra.mxu0 0
    %5012 = vmatpush.bf16.msra.mxu0 %v4027
    %5013 = vmatpush.bf16.msra.mxu0 %v4015
    %5014 = vmatpush.bf16.msra.mxu0 %v4003
    %5015 = vmatpush.bf16.msra.mxu0 %v3991
    %5016 = vmatpush.bf16.msra.mxu0 %v3979
    %5017 = vmatpush.bf16.msra.mxu0 %v3967
    %5018 = vmatpush.bf16.msra.mxu0 %v3955
    %5019 = vmatmul.bf16.gmra.mxu0 %v4502
    %v5020 = vpop.f32.mrf.mxu0
    %v5021 = vadd.f32 %v5008, %v5020
    %v5022 = vpop.f32.mrf.mxu0
    %5023 = vdwg.mxu0
    %5024 = vmatpush.bf16.msra.mxu0 %v3656
    %5025 = vmatpush.bf16.msra.mxu0 %v3644
    %5026 = vmatpush.bf16.msra.mxu0 %v3632
    %5027 = vmatpush.bf16.msra.mxu0 %v3620
    %5028 = vmatpush.bf16.msra.mxu0 %v3608
    %5029 = vmatpush.bf16.msra.mxu0 %v3596
    %5030 = vmatpush.bf16.msra.mxu0 %v3584
    %5031 = vmatpush.bf16.msra.mxu0 %v3572
    %5032 = vmatmul.bf16.gmra.mxu0 %v1659
    %v5033 = vpop.f32.mrf.mxu0
    %v5034 = vadd.f32 %v2144, %v5033
    %v5035 = vpop.f32.mrf.mxu0
    %5036 = vdwg.mxu0
    %5037 = vmatpush.bf16.msra.mxu0 %v3752
    %5038 = vmatpush.bf16.msra.mxu0 %v3740
    %5039 = vmatpush.bf16.msra.mxu0 %v3728
    %5040 = vmatpush.bf16.msra.mxu0 %v3716
    %5041 = vmatpush.bf16.msra.mxu0 %v3704
    %5042 = vmatpush.bf16.msra.mxu0 %v3692
    %5043 = vmatpush.bf16.msra.mxu0 %v3680
    %5044 = vmatpush.bf16.msra.mxu0 %v3668
    %5045 = vmatmul.bf16.gmra.mxu0 %v1660
    %v5046 = vpop.f32.mrf.mxu0
    %v5047 = vadd.f32 %v5034, %v5046
    %v5048 = vpop.f32.mrf.mxu0
    %5049 = vdwg.mxu0
    %5050 = vmatpush.bf16.msra.mxu0 %v3848
    %5051 = vmatpush.bf16.msra.mxu0 %v3836
    %5052 = vmatpush.bf16.msra.mxu0 %v3824
    %5053 = vmatpush.bf16.msra.mxu0 %v3812
    %5054 = vmatpush.bf16.msra.mxu0 %v3800
    %5055 = vmatpush.bf16.msra.mxu0 %v3788
    %5056 = vmatpush.bf16.msra.mxu0 %v3776
    %5057 = vmatpush.bf16.msra.mxu0 %v3764
    %5058 = vmatmul.bf16.gmra.mxu0 %v1661
    %v5059 = vpop.f32.mrf.mxu0
    %v5060 = vadd.f32 %v5047, %v5059
    %v5061 = vpop.f32.mrf.mxu0
    %5062 = vdwg.mxu0
    %5063 = vmatpush.bf16.msra.mxu0 %v3944
    %5064 = vmatpush.bf16.msra.mxu0 %v3932
    %5065 = vmatpush.bf16.msra.mxu0 %v3920
    %5066 = vmatpush.bf16.msra.mxu0 %v3908
    %5067 = vmatpush.bf16.msra.mxu0 %v3896
    %5068 = vmatpush.bf16.msra.mxu0 %v3884
    %5069 = vmatpush.bf16.msra.mxu0 %v3872
    %5070 = vmatpush.bf16.msra.mxu0 %v3860
    %5071 = vmatmul.bf16.gmra.mxu0 %v1662
    %v5072 = vpop.f32.mrf.mxu0
    %v5073 = vadd.f32 %v5060, %v5072
    %v5074 = vpop.f32.mrf.mxu0
    %5075 = vdwg.mxu0
    %5076 = vmatpush.bf16.msra.mxu0 0
    %5077 = vmatpush.bf16.msra.mxu0 %v4028
    %5078 = vmatpush.bf16.msra.mxu0 %v4016
    %5079 = vmatpush.bf16.msra.mxu0 %v4004
    %5080 = vmatpush.bf16.msra.mxu0 %v3992
    %5081 = vmatpush.bf16.msra.mxu0 %v3980
    %5082 = vmatpush.bf16.msra.mxu0 %v3968
    %5083 = vmatpush.bf16.msra.mxu0 %v3956
    %5084 = vmatmul.bf16.gmra.mxu0 %v4502
    %v5085 = vpop.f32.mrf.mxu0
    %v5086 = vadd.f32 %v5073, %v5085
    %v5087 = vpop.f32.mrf.mxu0
    %5088 = vdwg.mxu0
    %5089 = vmatpush.bf16.msra.mxu0 %v3657
    %5090 = vmatpush.bf16.msra.mxu0 %v3645
    %5091 = vmatpush.bf16.msra.mxu0 %v3633
    %5092 = vmatpush.bf16.msra.mxu0 %v3621
    %5093 = vmatpush.bf16.msra.mxu0 %v3609
    %5094 = vmatpush.bf16.msra.mxu0 %v3597
    %5095 = vmatpush.bf16.msra.mxu0 %v3585
    %5096 = vmatpush.bf16.msra.mxu0 %v3573
    %5097 = vmatmul.bf16.gmra.mxu0 %v1659
    %v5098 = vpop.f32.mrf.mxu0
    %v5099 = vadd.f32 %v2145, %v5098
    %v5100 = vpop.f32.mrf.mxu0
    %5101 = vdwg.mxu0
    %5102 = vmatpush.bf16.msra.mxu0 %v3753
    %5103 = vmatpush.bf16.msra.mxu0 %v3741
    %5104 = vmatpush.bf16.msra.mxu0 %v3729
    %5105 = vmatpush.bf16.msra.mxu0 %v3717
    %5106 = vmatpush.bf16.msra.mxu0 %v3705
    %5107 = vmatpush.bf16.msra.mxu0 %v3693
    %5108 = vmatpush.bf16.msra.mxu0 %v3681
    %5109 = vmatpush.bf16.msra.mxu0 %v3669
    %5110 = vmatmul.bf16.gmra.mxu0 %v1660
    %v5111 = vpop.f32.mrf.mxu0
    %v5112 = vadd.f32 %v5099, %v5111
    %v5113 = vpop.f32.mrf.mxu0
    %5114 = vdwg.mxu0
    %5115 = vmatpush.bf16.msra.mxu0 %v3849
    %5116 = vmatpush.bf16.msra.mxu0 %v3837
    %5117 = vmatpush.bf16.msra.mxu0 %v3825
    %5118 = vmatpush.bf16.msra.mxu0 %v3813
    %5119 = vmatpush.bf16.msra.mxu0 %v3801
    %5120 = vmatpush.bf16.msra.mxu0 %v3789
    %5121 = vmatpush.bf16.msra.mxu0 %v3777
    %5122 = vmatpush.bf16.msra.mxu0 %v3765
    %5123 = vmatmul.bf16.gmra.mxu0 %v1661
    %v5124 = vpop.f32.mrf.mxu0
    %v5125 = vadd.f32 %v5112, %v5124
    %v5126 = vpop.f32.mrf.mxu0
    %5127 = vdwg.mxu0
    %5128 = vmatpush.bf16.msra.mxu0 %v3945
    %5129 = vmatpush.bf16.msra.mxu0 %v3933
    %5130 = vmatpush.bf16.msra.mxu0 %v3921
    %5131 = vmatpush.bf16.msra.mxu0 %v3909
    %5132 = vmatpush.bf16.msra.mxu0 %v3897
    %5133 = vmatpush.bf16.msra.mxu0 %v3885
    %5134 = vmatpush.bf16.msra.mxu0 %v3873
    %5135 = vmatpush.bf16.msra.mxu0 %v3861
    %5136 = vmatmul.bf16.gmra.mxu0 %v1662
    %v5137 = vpop.f32.mrf.mxu0
    %v5138 = vadd.f32 %v5125, %v5137
    %v5139 = vpop.f32.mrf.mxu0
    %5140 = vdwg.mxu0
    %5141 = vmatpush.bf16.msra.mxu0 0
    %5142 = vmatpush.bf16.msra.mxu0 %v4029
    %5143 = vmatpush.bf16.msra.mxu0 %v4017
    %5144 = vmatpush.bf16.msra.mxu0 %v4005
    %5145 = vmatpush.bf16.msra.mxu0 %v3993
    %5146 = vmatpush.bf16.msra.mxu0 %v3981
    %5147 = vmatpush.bf16.msra.mxu0 %v3969
    %5148 = vmatpush.bf16.msra.mxu0 %v3957
    %5149 = vmatmul.bf16.gmra.mxu0 %v4502
    %v5150 = vpop.f32.mrf.mxu0
    %v5151 = vadd.f32 %v5138, %v5150
    %v5152 = vpop.f32.mrf.mxu0
    %5153 = vdwg.mxu0
    %5154 = vmatpush.bf16.msra.mxu0 %v3658
    %5155 = vmatpush.bf16.msra.mxu0 %v3646
    %5156 = vmatpush.bf16.msra.mxu0 %v3634
    %5157 = vmatpush.bf16.msra.mxu0 %v3622
    %5158 = vmatpush.bf16.msra.mxu0 %v3610
    %5159 = vmatpush.bf16.msra.mxu0 %v3598
    %5160 = vmatpush.bf16.msra.mxu0 %v3586
    %5161 = vmatpush.bf16.msra.mxu0 %v3574
    %5162 = vmatmul.bf16.gmra.mxu0 %v1659
    %v5163 = vpop.f32.mrf.mxu0
    %v5164 = vadd.f32 %v2146, %v5163
    %v5165 = vpop.f32.mrf.mxu0
    %5166 = vdwg.mxu0
    %5167 = vmatpush.bf16.msra.mxu0 %v3754
    %5168 = vmatpush.bf16.msra.mxu0 %v3742
    %5169 = vmatpush.bf16.msra.mxu0 %v3730
    %5170 = vmatpush.bf16.msra.mxu0 %v3718
    %5171 = vmatpush.bf16.msra.mxu0 %v3706
    %5172 = vmatpush.bf16.msra.mxu0 %v3694
    %5173 = vmatpush.bf16.msra.mxu0 %v3682
    %5174 = vmatpush.bf16.msra.mxu0 %v3670
    %5175 = vmatmul.bf16.gmra.mxu0 %v1660
    %v5176 = vpop.f32.mrf.mxu0
    %v5177 = vadd.f32 %v5164, %v5176
    %v5178 = vpop.f32.mrf.mxu0
    %5179 = vdwg.mxu0
    %5180 = vmatpush.bf16.msra.mxu0 %v3850
    %5181 = vmatpush.bf16.msra.mxu0 %v3838
    %5182 = vmatpush.bf16.msra.mxu0 %v3826
    %5183 = vmatpush.bf16.msra.mxu0 %v3814
    %5184 = vmatpush.bf16.msra.mxu0 %v3802
    %5185 = vmatpush.bf16.msra.mxu0 %v3790
    %5186 = vmatpush.bf16.msra.mxu0 %v3778
    %5187 = vmatpush.bf16.msra.mxu0 %v3766
    %5188 = vmatmul.bf16.gmra.mxu0 %v1661
    %v5189 = vpop.f32.mrf.mxu0
    %v5190 = vadd.f32 %v5177, %v5189
    %v5191 = vpop.f32.mrf.mxu0
    %5192 = vdwg.mxu0
    %5193 = vmatpush.bf16.msra.mxu0 %v3946
    %5194 = vmatpush.bf16.msra.mxu0 %v3934
    %5195 = vmatpush.bf16.msra.mxu0 %v3922
    %5196 = vmatpush.bf16.msra.mxu0 %v3910
    %5197 = vmatpush.bf16.msra.mxu0 %v3898
    %5198 = vmatpush.bf16.msra.mxu0 %v3886
    %5199 = vmatpush.bf16.msra.mxu0 %v3874
    %5200 = vmatpush.bf16.msra.mxu0 %v3862
    %5201 = vmatmul.bf16.gmra.mxu0 %v1662
    %v5202 = vpop.f32.mrf.mxu0
    %v5203 = vadd.f32 %v5190, %v5202
    %v5204 = vpop.f32.mrf.mxu0
    %5205 = vdwg.mxu0
    %5206 = vmatpush.bf16.msra.mxu0 0
    %5207 = vmatpush.bf16.msra.mxu0 %v4030
    %5208 = vmatpush.bf16.msra.mxu0 %v4018
    %5209 = vmatpush.bf16.msra.mxu0 %v4006
    %5210 = vmatpush.bf16.msra.mxu0 %v3994
    %5211 = vmatpush.bf16.msra.mxu0 %v3982
    %5212 = vmatpush.bf16.msra.mxu0 %v3970
    %5213 = vmatpush.bf16.msra.mxu0 %v3958
    %5214 = vmatmul.bf16.gmra.mxu0 %v4502
    %v5215 = vpop.f32.mrf.mxu0
    %v5216 = vadd.f32 %v5203, %v5215
    %v5217 = vpop.f32.mrf.mxu0
    %5218 = vdwg.mxu0
    %5219 = vmatpush.bf16.msra.mxu0 %v3659
    %5220 = vmatpush.bf16.msra.mxu0 %v3647
    %5221 = vmatpush.bf16.msra.mxu0 %v3635
    %5222 = vmatpush.bf16.msra.mxu0 %v3623
    %5223 = vmatpush.bf16.msra.mxu0 %v3611
    %5224 = vmatpush.bf16.msra.mxu0 %v3599
    %5225 = vmatpush.bf16.msra.mxu0 %v3587
    %5226 = vmatpush.bf16.msra.mxu0 %v3575
    %5227 = vmatmul.bf16.gmra.mxu0 %v1659
    %v5228 = vpop.f32.mrf.mxu0
    %v5229 = vadd.f32 %v2147, %v5228
    %v5230 = vpop.f32.mrf.mxu0
    %5231 = vdwg.mxu0
    %5232 = vmatpush.bf16.msra.mxu0 %v3755
    %5233 = vmatpush.bf16.msra.mxu0 %v3743
    %5234 = vmatpush.bf16.msra.mxu0 %v3731
    %5235 = vmatpush.bf16.msra.mxu0 %v3719
    %5236 = vmatpush.bf16.msra.mxu0 %v3707
    %5237 = vmatpush.bf16.msra.mxu0 %v3695
    %5238 = vmatpush.bf16.msra.mxu0 %v3683
    %5239 = vmatpush.bf16.msra.mxu0 %v3671
    %5240 = vmatmul.bf16.gmra.mxu0 %v1660
    %v5241 = vpop.f32.mrf.mxu0
    %v5242 = vadd.f32 %v5229, %v5241
    %v5243 = vpop.f32.mrf.mxu0
    %5244 = vdwg.mxu0
    %5245 = vmatpush.bf16.msra.mxu0 %v3851
    %5246 = vmatpush.bf16.msra.mxu0 %v3839
    %5247 = vmatpush.bf16.msra.mxu0 %v3827
    %5248 = vmatpush.bf16.msra.mxu0 %v3815
    %5249 = vmatpush.bf16.msra.mxu0 %v3803
    %5250 = vmatpush.bf16.msra.mxu0 %v3791
    %5251 = vmatpush.bf16.msra.mxu0 %v3779
    %5252 = vmatpush.bf16.msra.mxu0 %v3767
    %5253 = vmatmul.bf16.gmra.mxu0 %v1661
    %v5254 = vpop.f32.mrf.mxu0
    %v5255 = vadd.f32 %v5242, %v5254
    %v5256 = vpop.f32.mrf.mxu0
    %5257 = vdwg.mxu0
    %5258 = vmatpush.bf16.msra.mxu0 %v3947
    %5259 = vmatpush.bf16.msra.mxu0 %v3935
    %5260 = vmatpush.bf16.msra.mxu0 %v3923
    %5261 = vmatpush.bf16.msra.mxu0 %v3911
    %5262 = vmatpush.bf16.msra.mxu0 %v3899
    %5263 = vmatpush.bf16.msra.mxu0 %v3887
    %5264 = vmatpush.bf16.msra.mxu0 %v3875
    %5265 = vmatpush.bf16.msra.mxu0 %v3863
    %5266 = vmatmul.bf16.gmra.mxu0 %v1662
    %v5267 = vpop.f32.mrf.mxu0
    %v5268 = vadd.f32 %v5255, %v5267
    %v5269 = vpop.f32.mrf.mxu0
    %5270 = vdwg.mxu0
    %5271 = vmatpush.bf16.msra.mxu0 0
    %5272 = vmatpush.bf16.msra.mxu0 %v4031
    %5273 = vmatpush.bf16.msra.mxu0 %v4019
    %5274 = vmatpush.bf16.msra.mxu0 %v4007
    %5275 = vmatpush.bf16.msra.mxu0 %v3995
    %5276 = vmatpush.bf16.msra.mxu0 %v3983
    %5277 = vmatpush.bf16.msra.mxu0 %v3971
    %5278 = vmatpush.bf16.msra.mxu0 %v3959
    %5279 = vmatmul.bf16.gmra.mxu0 %v4502
    %v5280 = vpop.f32.mrf.mxu0
    %v5281 = vadd.f32 %v5268, %v5280
    %v5282 = vpop.f32.mrf.mxu0
    %5283 = vdwg.mxu0
    %v5284 = vxor.u32 %v4566, 2147483648
    %v5285 = vxor.u32 %v4631, 2147483648
    %v5286 = vxor.u32 %v4696, 2147483648
    %v5287 = vxor.u32 %v4761, 2147483648
    %v5288 = vmul.f32 %v5284, 1.442695
    %v5289 = vpow.pop %v5288
    %v5290 = vmul.f32 %v5285, 1.442695
    %v5291 = vpow.pop %v5290
    %v5292 = vmul.f32 %v5286, 1.442695
    %v5293 = vpow.pop %v5292
    %v5294 = vmul.f32 %v5287, 1.442695
    %v5295 = vpow.pop %v5294
    %v5296 = vadd.f32 %v5289, 1.0
    %v5297 = vadd.f32 %v5291, 1.0
    %v5298 = vadd.f32 %v5293, 1.0
    %v5299 = vadd.f32 %v5295, 1.0
    %v5300 = vrcp.pop %v5296
    %v5301 = vmul.f32 %v5296, %v5300
    %v5302 = vsub.f32 1.0, %v5301
    %v5303 = vmul.f32 %v5300, %v5302
    %v5304 = vadd.f32 %v5300, %v5303
    %vm5305 = vweird.f32 %v5296
    %vm5306 = vweird.f32 %v5300
    %vm5307 = vmor %vm5305, %vm5306
    %v5308 = vsel %vm5307, %v5300, %v5304
    %v5309 = vand.u32 2147483647, %v5296
    %vm5310 = vcmp.eq.f32.partialorder %v5309, 8.507059e+37
    %v5311 = vand.u32 %v5296, 2147483648
    %v5312 = vor.u32 1.1754944e-38, %v5311
    %v5313 = vsel %vm5310, %v5312, %v5308
    %v5314 = vmul.f32 1.0, %v5313
    %v5315 = vrcp.pop %v5297
    %v5316 = vmul.f32 %v5297, %v5315
    %v5317 = vsub.f32 1.0, %v5316
    %v5318 = vmul.f32 %v5315, %v5317
    %v5319 = vadd.f32 %v5315, %v5318
    %vm5320 = vweird.f32 %v5297
    %vm5321 = vweird.f32 %v5315
    %vm5322 = vmor %vm5320, %vm5321
    %v5323 = vsel %vm5322, %v5315, %v5319
    %v5324 = vand.u32 2147483647, %v5297
    %vm5325 = vcmp.eq.f32.partialorder %v5324, 8.507059e+37
    %v5326 = vand.u32 %v5297, 2147483648
    %v5327 = vor.u32 1.1754944e-38, %v5326
    %v5328 = vsel %vm5325, %v5327, %v5323
    %v5329 = vmul.f32 1.0, %v5328
    %v5330 = vrcp.pop %v5298
    %v5331 = vmul.f32 %v5298, %v5330
    %v5332 = vsub.f32 1.0, %v5331
    %v5333 = vmul.f32 %v5330, %v5332
    %v5334 = vadd.f32 %v5330, %v5333
    %vm5335 = vweird.f32 %v5298
    %vm5336 = vweird.f32 %v5330
    %vm5337 = vmor %vm5335, %vm5336
    %v5338 = vsel %vm5337, %v5330, %v5334
    %v5339 = vand.u32 2147483647, %v5298
    %vm5340 = vcmp.eq.f32.partialorder %v5339, 8.507059e+37
    %v5341 = vand.u32 %v5298, 2147483648
    %v5342 = vor.u32 1.1754944e-38, %v5341
    %v5343 = vsel %vm5340, %v5342, %v5338
    %v5344 = vmul.f32 1.0, %v5343
    %v5345 = vrcp.pop %v5299
    %v5346 = vmul.f32 %v5299, %v5345
    %v5347 = vsub.f32 1.0, %v5346
    %v5348 = vmul.f32 %v5345, %v5347
    %v5349 = vadd.f32 %v5345, %v5348
    %vm5350 = vweird.f32 %v5299
    %vm5351 = vweird.f32 %v5345
    %vm5352 = vmor %vm5350, %vm5351
    %v5353 = vsel %vm5352, %v5345, %v5349
    %v5354 = vand.u32 2147483647, %v5299
    %vm5355 = vcmp.eq.f32.partialorder %v5354, 8.507059e+37
    %v5356 = vand.u32 %v5299, 2147483648
    %v5357 = vor.u32 1.1754944e-38, %v5356
    %v5358 = vsel %vm5355, %v5357, %v5353
    %v5359 = vmul.f32 1.0, %v5358
    %v5360 = vtanh.pop %v4826
    %v5361 = vtanh.pop %v4891
    %v5362 = vtanh.pop %v4956
    %v5363 = vtanh.pop %v5021
    %v5364 = vxor.u32 %v5086, 2147483648
    %v5365 = vxor.u32 %v5151, 2147483648
    %v5366 = vxor.u32 %v5216, 2147483648
    %v5367 = vxor.u32 %v5281, 2147483648
    %v5368 = vmul.f32 %v5364, 1.442695
    %v5369 = vpow.pop %v5368
    %v5370 = vmul.f32 %v5365, 1.442695
    %v5371 = vpow.pop %v5370
    %v5372 = vmul.f32 %v5366, 1.442695
    %v5373 = vpow.pop %v5372
    %v5374 = vmul.f32 %v5367, 1.442695
    %v5375 = vpow.pop %v5374
    %v5376 = vadd.f32 %v5369, 1.0
    %v5377 = vadd.f32 %v5371, 1.0
    %v5378 = vadd.f32 %v5373, 1.0
    %v5379 = vadd.f32 %v5375, 1.0
    %v5380 = vrcp.pop %v5376
    %v5381 = vmul.f32 %v5376, %v5380
    %v5382 = vsub.f32 1.0, %v5381
    %v5383 = vmul.f32 %v5380, %v5382
    %v5384 = vadd.f32 %v5380, %v5383
    %vm5385 = vweird.f32 %v5376
    %vm5386 = vweird.f32 %v5380
    %vm5387 = vmor %vm5385, %vm5386
    %v5388 = vsel %vm5387, %v5380, %v5384
    %v5389 = vand.u32 2147483647, %v5376
    %vm5390 = vcmp.eq.f32.partialorder %v5389, 8.507059e+37
    %v5391 = vand.u32 %v5376, 2147483648
    %v5392 = vor.u32 1.1754944e-38, %v5391
    %v5393 = vsel %vm5390, %v5392, %v5388
    %v5394 = vmul.f32 1.0, %v5393
    %v5395 = vrcp.pop %v5377
    %v5396 = vmul.f32 %v5377, %v5395
    %v5397 = vsub.f32 1.0, %v5396
    %v5398 = vmul.f32 %v5395, %v5397
    %v5399 = vadd.f32 %v5395, %v5398
    %vm5400 = vweird.f32 %v5377
    %vm5401 = vweird.f32 %v5395
    %vm5402 = vmor %vm5400, %vm5401
    %v5403 = vsel %vm5402, %v5395, %v5399
    %v5404 = vand.u32 2147483647, %v5377
    %vm5405 = vcmp.eq.f32.partialorder %v5404, 8.507059e+37
    %v5406 = vand.u32 %v5377, 2147483648
    %v5407 = vor.u32 1.1754944e-38, %v5406
    %v5408 = vsel %vm5405, %v5407, %v5403
    %v5409 = vmul.f32 1.0, %v5408
    %v5410 = vrcp.pop %v5378
    %v5411 = vmul.f32 %v5378, %v5410
    %v5412 = vsub.f32 1.0, %v5411
    %v5413 = vmul.f32 %v5410, %v5412
    %v5414 = vadd.f32 %v5410, %v5413
    %vm5415 = vweird.f32 %v5378
    %vm5416 = vweird.f32 %v5410
    %vm5417 = vmor %vm5415, %vm5416
    %v5418 = vsel %vm5417, %v5410, %v5414
    %v5419 = vand.u32 2147483647, %v5378
    %vm5420 = vcmp.eq.f32.partialorder %v5419, 8.507059e+37
    %v5421 = vand.u32 %v5378, 2147483648
    %v5422 = vor.u32 1.1754944e-38, %v5421
    %v5423 = vsel %vm5420, %v5422, %v5418
    %v5424 = vmul.f32 1.0, %v5423
    %v5425 = vrcp.pop %v5379
    %v5426 = vmul.f32 %v5379, %v5425
    %v5427 = vsub.f32 1.0, %v5426
    %v5428 = vmul.f32 %v5425, %v5427
    %v5429 = vadd.f32 %v5425, %v5428
    %vm5430 = vweird.f32 %v5379
    %vm5431 = vweird.f32 %v5425
    %vm5432 = vmor %vm5430, %vm5431
    %v5433 = vsel %vm5432, %v5425, %v5429
    %v5434 = vand.u32 2147483647, %v5379
    %vm5435 = vcmp.eq.f32.partialorder %v5434, 8.507059e+37
    %v5436 = vand.u32 %v5379, 2147483648
    %v5437 = vor.u32 1.1754944e-38, %v5436
    %v5438 = vsel %vm5435, %v5437, %v5433
    %v5439 = vmul.f32 1.0, %v5438
    %v5440 = vmul.f32 %v5314, %v5360
    %v5441 = vmul.f32 %v5329, %v5361
    %v5442 = vmul.f32 %v5344, %v5362
    %v5443 = vmul.f32 %v5359, %v5363
    %v5444 = vtanh.pop %v5440
    %v5445 = vtanh.pop %v5441
    %v5446 = vtanh.pop %v5442
    %v5447 = vtanh.pop %v5443
    %v5448 = vmul.f32 %v5394, %v5444
    %v5449 = vmul.f32 %v5409, %v5445
    %v5450 = vmul.f32 %v5424, %v5446
    %v5451 = vmul.f32 %v5439, %v5447
    %v5452 = vmax.f32 %v5448, 0.0
    %v5453 = vmax.f32 %v5449, 0.0
    %v5454 = vmax.f32 %v5450, 0.0
    %v5455 = vmax.f32 %v5451, 0.0
    %v5456 = vpack.c.bf16 %v5452, %v5452
    %v5457 = vpack.c.bf16 %v5453, %v5453
    %v5458 = vpack.c.bf16 %v5454, %v5454
    %v5459 = vpack.c.bf16 %v5455, %v5455
    %v5460 = vld [vmem:[#allocation2 + $0x34] sm:$0xf]
    %v5461 = vld [vmem:[#allocation2 + $0x6c] sm:$0xf]
    %v5462 = vld [vmem:[#allocation2 + $0xa4] sm:$0xf]
    %v5463 = vld [vmem:[#allocation2 + $0xdc] sm:$0xf]
    %v5464 = vld [vmem:[#allocation2 + $0x114] sm:$0xf]
    %v5465 = vld [vmem:[#allocation2 + $0x14c] sm:$0xf]
    %v5466 = vld [vmem:[#allocation2 + $0x184] sm:$0xf]
    %v5467 = vld [vmem:[#allocation2 + $0x1bc] sm:$0xf]
    %v5468 = vld [vmem:[#allocation2 + $0x1f4] sm:$0xf]
    %v5469 = vld [vmem:[#allocation2 + $0x22c] sm:$0xf]
    %v5470 = vld [vmem:[#allocation2 + $0x264] sm:$0xf]
    %v5471 = vld [vmem:[#allocation2 + $0x29c] sm:$0xf]
    %v5472 = vld [vmem:[#allocation2 + $0x2d4] sm:$0xf]
    %v5473 = vld [vmem:[#allocation2 + $0x30c] sm:$0xf]
    %v5474 = vld [vmem:[#allocation2 + $0x344] sm:$0xf]
    %v5475 = vld [vmem:[#allocation2 + $0x37c] sm:$0xf]
    %v5476 = vld [vmem:[#allocation2 + $0x3b4] sm:$0xf]
    %v5477 = vld [vmem:[#allocation2 + $0x3ec] sm:$0xf]
    %v5478 = vld [vmem:[#allocation2 + $0x424] sm:$0xf]
    %v5479 = vld [vmem:[#allocation2 + $0x45c] sm:$0xf]
    %v5480 = vld [vmem:[#allocation2 + $0x494] sm:$0xf]
    %v5481 = vld [vmem:[#allocation2 + $0x4cc] sm:$0xf]
    %v5482 = vld [vmem:[#allocation2 + $0x504] sm:$0xf]
    %v5483 = vld [vmem:[#allocation2 + $0x53c] sm:$0xf]
    %v5484 = vld [vmem:[#allocation2 + $0x574] sm:$0xf]
    %v5485 = vld [vmem:[#allocation2 + $0x5ac] sm:$0xf]
    %v5486 = vld [vmem:[#allocation2 + $0x5e4] sm:$0xf]
    %v5487 = vld [vmem:[#allocation2 + $0x61c] sm:$0xf]
    %v5488 = vld [vmem:[#allocation2 + $0x654] sm:$0xf]
    %v5489 = vld [vmem:[#allocation2 + $0x68c] sm:$0xf]
    %v5490 = vld [vmem:[#allocation2 + $0x6c4] sm:$0xf]
    %v5491 = vld [vmem:[#allocation2 + $0x6fc] sm:$0xf]
    %v5492 = vld [vmem:[#allocation2 + $0x734] sm:$0xf]
    %v5493 = vld [vmem:[#allocation2 + $0x76c] sm:$0xf]
    %v5494 = vld [vmem:[#allocation2 + $0x7a4] sm:$0xf]
    %v5495 = vld [vmem:[#allocation2 + $0x7dc] sm:$0xf]
    %v5496 = vld [vmem:[#allocation2 + $0x814] sm:$0xf]
    %v5497 = vld [vmem:[#allocation2 + $0x84c] sm:$0xf]
    %v5498 = vld [vmem:[#allocation2 + $0x884] sm:$0xf]
    %v5499 = vld [vmem:[#allocation2 + $0x8bc] sm:$0xf]
    %v5500 = vld [vmem:[#allocation2 + $0x8f4] sm:$0xf]
    %v5501 = vld [vmem:[#allocation2 + $0x92c] sm:$0xf]
    %v5502 = vld [vmem:[#allocation2 + $0x964] sm:$0xf]
    %v5503 = vld [vmem:[#allocation2 + $0x99c] sm:$0xf]
    %v5504 = vld [vmem:[#allocation2 + $0x9d4] sm:$0xf]
    %v5505 = vld [vmem:[#allocation2 + $0xa0c] sm:$0xf]
    %v5506 = vld [vmem:[#allocation2 + $0xa44] sm:$0xf]
    %v5507 = vld [vmem:[#allocation2 + $0xa7c] sm:$0xf]
    %v5508 = vld [vmem:[#allocation2 + $0xab4] sm:$0xf]
    %v5509 = vld [vmem:[#allocation2 + $0xaec] sm:$0xf]
    %v5510 = vld [vmem:[#allocation2 + $0xb24] sm:$0xf]
    %v5511 = vld [vmem:[#allocation2 + $0xb5c] sm:$0xf]
    %v5512 = vld [vmem:[#allocation2 + $0xb94] sm:$0xf]
    %v5513 = vld [vmem:[#allocation2 + $0xbcc] sm:$0xf]
    %v5514 = vld [vmem:[#allocation2 + $0xc04] sm:$0xf]
    %v5515 = vld [vmem:[#allocation2 + $0xc3c] sm:$0xf]
    %v5516 = vld [vmem:[#allocation2 + $0xc74] sm:$0xf]
    %v5517 = vld [vmem:[#allocation2 + $0xcac] sm:$0xf]
    %v5518 = vld [vmem:[#allocation2 + $0xce4] sm:$0xf]
    %v5519 = vld [vmem:[#allocation2 + $0xd1c] sm:$0xf]
    %v5520 = vld [vmem:[#allocation2 + $0xd54] sm:$0xf]
    %v5521 = vld [vmem:[#allocation2 + $0xd8c] sm:$0xf]
    %v5522 = vld [vmem:[#allocation2 + $0xdc4] sm:$0xf]
    %v5523 = vld [vmem:[#allocation2 + $0xdfc] sm:$0xf]
    %v5524 = vld [vmem:[#allocation9 + $0x9] sm:$0x1]
    %v5525 = vperm.slane %v5524, 0
    %v5590 = vunpack.c.l.b16 %v5460
    %v5591 = vunpack.c.l.b16 %v5461
    %v5592 = vunpack.c.l.b16 %v5462
    %v5593 = vunpack.c.l.b16 %v5463
    %v5594 = vunpack.c.l.b16 %v5464
    %v5595 = vunpack.c.l.b16 %v5465
    %v5596 = vunpack.c.l.b16 %v5466
    %v5597 = vunpack.c.l.b16 %v5467
    %v5598 = vunpack.c.l.b16 %v5468
    %v5599 = vunpack.c.l.b16 %v5469
    %v5600 = vunpack.c.l.b16 %v5470
    %v5601 = vunpack.c.l.b16 %v5471
    %v5602 = vunpack.c.l.b16 %v5472
    %v5603 = vunpack.c.l.b16 %v5473
    %v5604 = vunpack.c.l.b16 %v5474
    %v5605 = vunpack.c.l.b16 %v5475
    %v5606 = vunpack.c.l.b16 %v5476
    %v5607 = vunpack.c.l.b16 %v5477
    %v5608 = vunpack.c.l.b16 %v5478
    %v5609 = vunpack.c.l.b16 %v5479
    %v5610 = vunpack.c.l.b16 %v5480
    %v5611 = vunpack.c.l.b16 %v5481
    %v5612 = vunpack.c.l.b16 %v5482
    %v5613 = vunpack.c.l.b16 %v5483
    %v5614 = vunpack.c.l.b16 %v5484
    %v5615 = vunpack.c.l.b16 %v5485
    %v5616 = vunpack.c.l.b16 %v5486
    %v5617 = vunpack.c.l.b16 %v5487
    %v5618 = vunpack.c.l.b16 %v5488
    %v5619 = vunpack.c.l.b16 %v5489
    %v5620 = vunpack.c.l.b16 %v5490
    %v5621 = vunpack.c.l.b16 %v5491
    %v5622 = vunpack.c.l.b16 %v5492
    %v5623 = vunpack.c.l.b16 %v5493
    %v5624 = vunpack.c.l.b16 %v5494
    %v5625 = vunpack.c.l.b16 %v5495
    %v5626 = vunpack.c.l.b16 %v5496
    %v5627 = vunpack.c.l.b16 %v5497
    %v5628 = vunpack.c.l.b16 %v5498
    %v5629 = vunpack.c.l.b16 %v5499
    %v5630 = vunpack.c.l.b16 %v5500
    %v5631 = vunpack.c.l.b16 %v5501
    %v5632 = vunpack.c.l.b16 %v5502
    %v5633 = vunpack.c.l.b16 %v5503
    %v5634 = vunpack.c.l.b16 %v5504
    %v5635 = vunpack.c.l.b16 %v5505
    %v5636 = vunpack.c.l.b16 %v5506
    %v5637 = vunpack.c.l.b16 %v5507
    %v5638 = vunpack.c.l.b16 %v5508
    %v5639 = vunpack.c.l.b16 %v5509
    %v5640 = vunpack.c.l.b16 %v5510
    %v5641 = vunpack.c.l.b16 %v5511
    %v5642 = vunpack.c.l.b16 %v5512
    %v5643 = vunpack.c.l.b16 %v5513
    %v5644 = vunpack.c.l.b16 %v5514
    %v5645 = vunpack.c.l.b16 %v5515
    %v5646 = vunpack.c.l.b16 %v5516
    %v5647 = vunpack.c.l.b16 %v5517
    %v5648 = vunpack.c.l.b16 %v5518
    %v5649 = vunpack.c.l.b16 %v5519
    %v5650 = vunpack.c.l.b16 %v5520
    %v5651 = vunpack.c.l.b16 %v5521
    %v5652 = vunpack.c.l.b16 %v5522
    %v5653 = vunpack.c.l.b16 %v5523
    %v5654 = vpack.c.b16 %v5591, %v5590
    %v5655 = vpack.c.b16 %v5593, %v5592
    %v5656 = vpack.c.b16 %v5595, %v5594
    %v5657 = vpack.c.b16 %v5597, %v5596
    %v5658 = vpack.c.b16 %v5599, %v5598
    %v5659 = vpack.c.b16 %v5601, %v5600
    %v5660 = vpack.c.b16 %v5603, %v5602
    %v5661 = vpack.c.b16 %v5605, %v5604
    %v5662 = vpack.c.b16 %v5607, %v5606
    %v5663 = vpack.c.b16 %v5609, %v5608
    %v5664 = vpack.c.b16 %v5611, %v5610
    %v5665 = vpack.c.b16 %v5613, %v5612
    %v5666 = vpack.c.b16 %v5615, %v5614
    %v5667 = vpack.c.b16 %v5617, %v5616
    %v5668 = vpack.c.b16 %v5619, %v5618
    %v5669 = vpack.c.b16 %v5621, %v5620
    %v5670 = vpack.c.b16 %v5623, %v5622
    %v5671 = vpack.c.b16 %v5625, %v5624
    %v5672 = vpack.c.b16 %v5627, %v5626
    %v5673 = vpack.c.b16 %v5629, %v5628
    %v5674 = vpack.c.b16 %v5631, %v5630
    %v5675 = vpack.c.b16 %v5633, %v5632
    %v5676 = vpack.c.b16 %v5635, %v5634
    %v5677 = vpack.c.b16 %v5637, %v5636
    %v5678 = vpack.c.b16 %v5639, %v5638
    %v5679 = vpack.c.b16 %v5641, %v5640
    %v5680 = vpack.c.b16 %v5643, %v5642
    %v5681 = vpack.c.b16 %v5645, %v5644
    %v5682 = vpack.c.b16 %v5647, %v5646
    %v5683 = vpack.c.b16 %v5649, %v5648
    %v5684 = vpack.c.b16 %v5651, %v5650
    %v5685 = vpack.c.b16 %v5653, %v5652
    %5718 = vmatpush.bf16.msra.mxu0 %v5661
    %5719 = vmatpush.bf16.msra.mxu0 %v5660
    %5720 = vmatpush.bf16.msra.mxu0 %v5659
    %5721 = vmatpush.bf16.msra.mxu0 %v5658
    %5722 = vmatpush.bf16.msra.mxu0 %v5657
    %5723 = vmatpush.bf16.msra.mxu0 %v5656
    %5724 = vmatpush.bf16.msra.mxu0 %v5655
    %5725 = vmatpush.bf16.msra.mxu0 %v5654
    %5726 = vmatmul.bf16.gmra.mxu0 %v5456
    %v5727 = vpop.f32.mrf.mxu0
    %v5728 = vadd.f32 %v5525, %v5727
    %v5729 = vpop.f32.mrf.mxu0
    %5730 = vdwg.mxu0
    %5731 = vmatpush.bf16.msra.mxu0 %v5669
    %5732 = vmatpush.bf16.msra.mxu0 %v5668
    %5733 = vmatpush.bf16.msra.mxu0 %v5667
    %5734 = vmatpush.bf16.msra.mxu0 %v5666
    %5735 = vmatpush.bf16.msra.mxu0 %v5665
    %5736 = vmatpush.bf16.msra.mxu0 %v5664
    %5737 = vmatpush.bf16.msra.mxu0 %v5663
    %5738 = vmatpush.bf16.msra.mxu0 %v5662
    %5739 = vmatmul.bf16.gmra.mxu0 %v5457
    %v5740 = vpop.f32.mrf.mxu0
    %v5741 = vadd.f32 %v5728, %v5740
    %v5742 = vpop.f32.mrf.mxu0
    %5743 = vdwg.mxu0
    %5744 = vmatpush.bf16.msra.mxu0 %v5677
    %5745 = vmatpush.bf16.msra.mxu0 %v5676
    %5746 = vmatpush.bf16.msra.mxu0 %v5675
    %5747 = vmatpush.bf16.msra.mxu0 %v5674
    %5748 = vmatpush.bf16.msra.mxu0 %v5673
    %5749 = vmatpush.bf16.msra.mxu0 %v5672
    %5750 = vmatpush.bf16.msra.mxu0 %v5671
    %5751 = vmatpush.bf16.msra.mxu0 %v5670
    %5752 = vmatmul.bf16.gmra.mxu0 %v5458
    %v5753 = vpop.f32.mrf.mxu0
    %v5754 = vadd.f32 %v5741, %v5753
    %v5755 = vpop.f32.mrf.mxu0
    %5756 = vdwg.mxu0
    %5757 = vmatpush.bf16.msra.mxu0 %v5685
    %5758 = vmatpush.bf16.msra.mxu0 %v5684
    %5759 = vmatpush.bf16.msra.mxu0 %v5683
    %5760 = vmatpush.bf16.msra.mxu0 %v5682
    %5761 = vmatpush.bf16.msra.mxu0 %v5681
    %5762 = vmatpush.bf16.msra.mxu0 %v5680
    %5763 = vmatpush.bf16.msra.mxu0 %v5679
    %5764 = vmatpush.bf16.msra.mxu0 %v5678
    %5765 = vmatmul.bf16.gmra.mxu0 %v5459
    %v5766 = vpop.f32.mrf.mxu0
    %v5767 = vadd.f32 %v5754, %v5766
    %v5768 = vpop.f32.mrf.mxu0
    %5769 = vdwg.mxu0
    %v5770 = vld [vmem:[#allocation2 + $0x30] sm:$0xf]
    %v5771 = vld [vmem:[#allocation2 + $0x68] sm:$0xf]
    %v5772 = vld [vmem:[#allocation2 + $0xa0] sm:$0xf]
    %v5773 = vld [vmem:[#allocation2 + $0xd8] sm:$0xf]
    %v5774 = vld [vmem:[#allocation2 + $0x110] sm:$0xf]
    %v5775 = vld [vmem:[#allocation2 + $0x148] sm:$0xf]
    %v5776 = vld [vmem:[#allocation2 + $0x180] sm:$0xf]
    %v5777 = vld [vmem:[#allocation2 + $0x1b8] sm:$0xf]
    %v5778 = vld [vmem:[#allocation2 + $0x1f0] sm:$0xf]
    %v5779 = vld [vmem:[#allocation2 + $0x228] sm:$0xf]
    %v5780 = vld [vmem:[#allocation2 + $0x260] sm:$0xf]
    %v5781 = vld [vmem:[#allocation2 + $0x298] sm:$0xf]
    %v5782 = vld [vmem:[#allocation2 + $0x2d0] sm:$0xf]
    %v5783 = vld [vmem:[#allocation2 + $0x308] sm:$0xf]
    %v5784 = vld [vmem:[#allocation2 + $0x340] sm:$0xf]
    %v5785 = vld [vmem:[#allocation2 + $0x378] sm:$0xf]
    %v5786 = vld [vmem:[#allocation2 + $0x3b0] sm:$0xf]
    %v5787 = vld [vmem:[#allocation2 + $0x3e8] sm:$0xf]
    %v5788 = vld [vmem:[#allocation2 + $0x420] sm:$0xf]
    %v5789 = vld [vmem:[#allocation2 + $0x458] sm:$0xf]
    %v5790 = vld [vmem:[#allocation2 + $0x490] sm:$0xf]
    %v5791 = vld [vmem:[#allocation2 + $0x4c8] sm:$0xf]
    %v5792 = vld [vmem:[#allocation2 + $0x500] sm:$0xf]
    %v5793 = vld [vmem:[#allocation2 + $0x538] sm:$0xf]
    %v5794 = vld [vmem:[#allocation2 + $0x570] sm:$0xf]
    %v5795 = vld [vmem:[#allocation2 + $0x5a8] sm:$0xf]
    %v5796 = vld [vmem:[#allocation2 + $0x5e0] sm:$0xf]
    %v5797 = vld [vmem:[#allocation2 + $0x618] sm:$0xf]
    %v5798 = vld [vmem:[#allocation2 + $0x650] sm:$0xf]
    %v5799 = vld [vmem:[#allocation2 + $0x688] sm:$0xf]
    %v5800 = vld [vmem:[#allocation2 + $0x6c0] sm:$0xf]
    %v5801 = vld [vmem:[#allocation2 + $0x6f8] sm:$0xf]
    %v5802 = vld [vmem:[#allocation2 + $0x730] sm:$0xf]
    %v5803 = vld [vmem:[#allocation2 + $0x768] sm:$0xf]
    %v5804 = vld [vmem:[#allocation2 + $0x7a0] sm:$0xf]
    %v5805 = vld [vmem:[#allocation2 + $0x7d8] sm:$0xf]
    %v5806 = vld [vmem:[#allocation2 + $0x810] sm:$0xf]
    %v5807 = vld [vmem:[#allocation2 + $0x848] sm:$0xf]
    %v5808 = vld [vmem:[#allocation2 + $0x880] sm:$0xf]
    %v5809 = vld [vmem:[#allocation2 + $0x8b8] sm:$0xf]
    %v5810 = vld [vmem:[#allocation2 + $0x8f0] sm:$0xf]
    %v5811 = vld [vmem:[#allocation2 + $0x928] sm:$0xf]
    %v5812 = vld [vmem:[#allocation2 + $0x960] sm:$0xf]
    %v5813 = vld [vmem:[#allocation2 + $0x998] sm:$0xf]
    %v5814 = vld [vmem:[#allocation2 + $0x9d0] sm:$0xf]
    %v5815 = vld [vmem:[#allocation2 + $0xa08] sm:$0xf]
    %v5816 = vld [vmem:[#allocation2 + $0xa40] sm:$0xf]
    %v5817 = vld [vmem:[#allocation2 + $0xa78] sm:$0xf]
    %v5818 = vld [vmem:[#allocation2 + $0xab0] sm:$0xf]
    %v5819 = vld [vmem:[#allocation2 + $0xae8] sm:$0xf]
    %v5820 = vld [vmem:[#allocation2 + $0xb20] sm:$0xf]
    %v5821 = vld [vmem:[#allocation2 + $0xb58] sm:$0xf]
    %v5822 = vld [vmem:[#allocation2 + $0xb90] sm:$0xf]
    %v5823 = vld [vmem:[#allocation2 + $0xbc8] sm:$0xf]
    %v5824 = vld [vmem:[#allocation2 + $0xc00] sm:$0xf]
    %v5825 = vld [vmem:[#allocation2 + $0xc38] sm:$0xf]
    %v5826 = vld [vmem:[#allocation2 + $0xc70] sm:$0xf]
    %v5827 = vld [vmem:[#allocation2 + $0xca8] sm:$0xf]
    %v5828 = vld [vmem:[#allocation2 + $0xce0] sm:$0xf]
    %v5829 = vld [vmem:[#allocation2 + $0xd18] sm:$0xf]
    %v5830 = vld [vmem:[#allocation2 + $0xd50] sm:$0xf]
    %v5831 = vld [vmem:[#allocation2 + $0xd88] sm:$0xf]
    %v5832 = vld [vmem:[#allocation2 + $0xdc0] sm:$0xf]
    %v5833 = vld [vmem:[#allocation2 + $0xdf8] sm:$0xf]
    %v5834 = vld [vmem:[#allocation9 + $0x3] sm:$0x1]
    %v5835 = vperm.slane %v5834, 0
    %v5900 = vunpack.c.l.b16 %v5770
    %v5901 = vunpack.c.l.b16 %v5771
    %v5902 = vunpack.c.l.b16 %v5772
    %v5903 = vunpack.c.l.b16 %v5773
    %v5904 = vunpack.c.l.b16 %v5774
    %v5905 = vunpack.c.l.b16 %v5775
    %v5906 = vunpack.c.l.b16 %v5776
    %v5907 = vunpack.c.l.b16 %v5777
    %v5908 = vunpack.c.l.b16 %v5778
    %v5909 = vunpack.c.l.b16 %v5779
    %v5910 = vunpack.c.l.b16 %v5780
    %v5911 = vunpack.c.l.b16 %v5781
    %v5912 = vunpack.c.l.b16 %v5782
    %v5913 = vunpack.c.l.b16 %v5783
    %v5914 = vunpack.c.l.b16 %v5784
    %v5915 = vunpack.c.l.b16 %v5785
    %v5916 = vunpack.c.l.b16 %v5786
    %v5917 = vunpack.c.l.b16 %v5787
    %v5918 = vunpack.c.l.b16 %v5788
    %v5919 = vunpack.c.l.b16 %v5789
    %v5920 = vunpack.c.l.b16 %v5790
    %v5921 = vunpack.c.l.b16 %v5791
    %v5922 = vunpack.c.l.b16 %v5792
    %v5923 = vunpack.c.l.b16 %v5793
    %v5924 = vunpack.c.l.b16 %v5794
    %v5925 = vunpack.c.l.b16 %v5795
    %v5926 = vunpack.c.l.b16 %v5796
    %v5927 = vunpack.c.l.b16 %v5797
    %v5928 = vunpack.c.l.b16 %v5798
    %v5929 = vunpack.c.l.b16 %v5799
    %v5930 = vunpack.c.l.b16 %v5800
    %v5931 = vunpack.c.l.b16 %v5801
    %v5932 = vunpack.c.l.b16 %v5802
    %v5933 = vunpack.c.l.b16 %v5803
    %v5934 = vunpack.c.l.b16 %v5804
    %v5935 = vunpack.c.l.b16 %v5805
    %v5936 = vunpack.c.l.b16 %v5806
    %v5937 = vunpack.c.l.b16 %v5807
    %v5938 = vunpack.c.l.b16 %v5808
    %v5939 = vunpack.c.l.b16 %v5809
    %v5940 = vunpack.c.l.b16 %v5810
    %v5941 = vunpack.c.l.b16 %v5811
    %v5942 = vunpack.c.l.b16 %v5812
    %v5943 = vunpack.c.l.b16 %v5813
    %v5944 = vunpack.c.l.b16 %v5814
    %v5945 = vunpack.c.l.b16 %v5815
    %v5946 = vunpack.c.l.b16 %v5816
    %v5947 = vunpack.c.l.b16 %v5817
    %v5948 = vunpack.c.l.b16 %v5818
    %v5949 = vunpack.c.l.b16 %v5819
    %v5950 = vunpack.c.l.b16 %v5820
    %v5951 = vunpack.c.l.b16 %v5821
    %v5952 = vunpack.c.l.b16 %v5822
    %v5953 = vunpack.c.l.b16 %v5823
    %v5954 = vunpack.c.l.b16 %v5824
    %v5955 = vunpack.c.l.b16 %v5825
    %v5956 = vunpack.c.l.b16 %v5826
    %v5957 = vunpack.c.l.b16 %v5827
    %v5958 = vunpack.c.l.b16 %v5828
    %v5959 = vunpack.c.l.b16 %v5829
    %v5960 = vunpack.c.l.b16 %v5830
    %v5961 = vunpack.c.l.b16 %v5831
    %v5962 = vunpack.c.l.b16 %v5832
    %v5963 = vunpack.c.l.b16 %v5833
    %v5964 = vpack.c.b16 %v5901, %v5900
    %v5965 = vpack.c.b16 %v5903, %v5902
    %v5966 = vpack.c.b16 %v5905, %v5904
    %v5967 = vpack.c.b16 %v5907, %v5906
    %v5968 = vpack.c.b16 %v5909, %v5908
    %v5969 = vpack.c.b16 %v5911, %v5910
    %v5970 = vpack.c.b16 %v5913, %v5912
    %v5971 = vpack.c.b16 %v5915, %v5914
    %v5972 = vpack.c.b16 %v5917, %v5916
    %v5973 = vpack.c.b16 %v5919, %v5918
    %v5974 = vpack.c.b16 %v5921, %v5920
    %v5975 = vpack.c.b16 %v5923, %v5922
    %v5976 = vpack.c.b16 %v5925, %v5924
    %v5977 = vpack.c.b16 %v5927, %v5926
    %v5978 = vpack.c.b16 %v5929, %v5928
    %v5979 = vpack.c.b16 %v5931, %v5930
    %v5980 = vpack.c.b16 %v5933, %v5932
    %v5981 = vpack.c.b16 %v5935, %v5934
    %v5982 = vpack.c.b16 %v5937, %v5936
    %v5983 = vpack.c.b16 %v5939, %v5938
    %v5984 = vpack.c.b16 %v5941, %v5940
    %v5985 = vpack.c.b16 %v5943, %v5942
    %v5986 = vpack.c.b16 %v5945, %v5944
    %v5987 = vpack.c.b16 %v5947, %v5946
    %v5988 = vpack.c.b16 %v5949, %v5948
    %v5989 = vpack.c.b16 %v5951, %v5950
    %v5990 = vpack.c.b16 %v5953, %v5952
    %v5991 = vpack.c.b16 %v5955, %v5954
    %v5992 = vpack.c.b16 %v5957, %v5956
    %v5993 = vpack.c.b16 %v5959, %v5958
    %v5994 = vpack.c.b16 %v5961, %v5960
    %v5995 = vpack.c.b16 %v5963, %v5962
    %6028 = vmatpush.bf16.msra.mxu0 %v5971
    %6029 = vmatpush.bf16.msra.mxu0 %v5970
    %6030 = vmatpush.bf16.msra.mxu0 %v5969
    %6031 = vmatpush.bf16.msra.mxu0 %v5968
    %6032 = vmatpush.bf16.msra.mxu0 %v5967
    %6033 = vmatpush.bf16.msra.mxu0 %v5966
    %6034 = vmatpush.bf16.msra.mxu0 %v5965
    %6035 = vmatpush.bf16.msra.mxu0 %v5964
    %6036 = vmatmul.bf16.gmra.mxu0 %v5456
    %v6037 = vpop.f32.mrf.mxu0
    %v6038 = vadd.f32 %v5835, %v6037
    %v6039 = vpop.f32.mrf.mxu0
    %6040 = vdwg.mxu0
    %6041 = vmatpush.bf16.msra.mxu0 %v5979
    %6042 = vmatpush.bf16.msra.mxu0 %v5978
    %6043 = vmatpush.bf16.msra.mxu0 %v5977
    %6044 = vmatpush.bf16.msra.mxu0 %v5976
    %6045 = vmatpush.bf16.msra.mxu0 %v5975
    %6046 = vmatpush.bf16.msra.mxu0 %v5974
    %6047 = vmatpush.bf16.msra.mxu0 %v5973
    %6048 = vmatpush.bf16.msra.mxu0 %v5972
    %6049 = vmatmul.bf16.gmra.mxu0 %v5457
    %v6050 = vpop.f32.mrf.mxu0
    %v6051 = vadd.f32 %v6038, %v6050
    %v6052 = vpop.f32.mrf.mxu0
    %6053 = vdwg.mxu0
    %6054 = vmatpush.bf16.msra.mxu0 %v5987
    %6055 = vmatpush.bf16.msra.mxu0 %v5986
    %6056 = vmatpush.bf16.msra.mxu0 %v5985
    %6057 = vmatpush.bf16.msra.mxu0 %v5984
    %6058 = vmatpush.bf16.msra.mxu0 %v5983
    %6059 = vmatpush.bf16.msra.mxu0 %v5982
    %6060 = vmatpush.bf16.msra.mxu0 %v5981
    %6061 = vmatpush.bf16.msra.mxu0 %v5980
    %6062 = vmatmul.bf16.gmra.mxu0 %v5458
    %v6063 = vpop.f32.mrf.mxu0
    %v6064 = vadd.f32 %v6051, %v6063
    %v6065 = vpop.f32.mrf.mxu0
    %6066 = vdwg.mxu0
    %6067 = vmatpush.bf16.msra.mxu0 %v5995
    %6068 = vmatpush.bf16.msra.mxu0 %v5994
    %6069 = vmatpush.bf16.msra.mxu0 %v5993
    %6070 = vmatpush.bf16.msra.mxu0 %v5992
    %6071 = vmatpush.bf16.msra.mxu0 %v5991
    %6072 = vmatpush.bf16.msra.mxu0 %v5990
    %6073 = vmatpush.bf16.msra.mxu0 %v5989
    %6074 = vmatpush.bf16.msra.mxu0 %v5988
    %6075 = vmatmul.bf16.gmra.mxu0 %v5459
    %v6076 = vpop.f32.mrf.mxu0
    %v6077 = vadd.f32 %v6064, %v6076
    %v6078 = vpop.f32.mrf.mxu0
    %6079 = vdwg.mxu0
    %v6080 = vmax.f32 %v6077, 0.0
    %v6081 = vld [vmem:[#allocation9 + $0x78] sm:$0xff]
    %v6082 = vld [vmem:[#allocation9 + $0x80] sm:$0xff]
    %v6083 = vld [vmem:[#allocation9 + $0x88] sm:$0xff]
    %v6084 = vld [vmem:[#allocation9 + $0x90] sm:$0xff]
    %v6085 = vld [vmem:[#allocation9 + $0x98] sm:$0xff]
    %v6086 = vld [vmem:[#allocation9 + $0xa0] sm:$0xff]
    %v6087 = vld [vmem:[#allocation9 + $0xa8] sm:$0xff]
    %v6088 = vld [vmem:[#allocation9 + $0xb0] sm:$0xff]
    %v6089 = vld [vmem:[#allocation9 + $0xb8] sm:$0xff]
    %v6090 = vld [vmem:[#allocation9 + $0xc0] sm:$0xff]
    %v6091 = vld [vmem:[#allocation9 + $0xc8] sm:$0xff]
    %v6092 = vld [vmem:[#allocation9 + $0xd0] sm:$0xff]
    %v6093 = vld [vmem:[#allocation9 + $0xd8] sm:$0xff]
    %v6094 = vld [vmem:[#allocation9 + $0xe0] sm:$0xff]
    %v6095 = vld [vmem:[#allocation9 + $0xe8] sm:$0xff]
    %v6096 = vld [vmem:[#allocation9 + $0xf0] sm:$0xff]
    %v6097 = vld [vmem:[#allocation9 + $0x8] sm:$0x1]
    %v6098 = vperm.slane %v6097, 0
    %6099 = vmatpush.msra.mxu0 %v6096
    %6100 = vmatpush.msra.mxu0 %v6095
    %6101 = vmatpush.msra.mxu0 %v6094
    %6102 = vmatpush.msra.mxu0 %v6093
    %6103 = vmatpush.msra.mxu0 %v6092
    %6104 = vmatpush.msra.mxu0 %v6091
    %6105 = vmatpush.msra.mxu0 %v6090
    %6106 = vmatpush.msra.mxu0 %v6089
    %6107 = vmatpush.msra.mxu0 %v6088
    %6108 = vmatpush.msra.mxu0 %v6087
    %6109 = vmatpush.msra.mxu0 %v6086
    %6110 = vmatpush.msra.mxu0 %v6085
    %6111 = vmatpush.msra.mxu0 %v6084
    %6112 = vmatpush.msra.mxu0 %v6083
    %6113 = vmatpush.msra.mxu0 %v6082
    %6114 = vmatpush.msra.mxu0 %v6081
    %6115 = vmatmul.f32.gmra.mxu0 %v6080
    %v6116 = vpop.f32.mrf.mxu0
    %v6117 = vadd.f32 %v6098, %v6116
    %6118 = vdwg.mxu0
    %6119 = vst [vmem:[%s7] sm:$0x3] 0.0
    %vm6120 = vcmask 58368
    %6121 = vst.msk [vmem:[%s7] sm:$0x3] %vm6120, %v6117
    %6123 = vrot.lane.b32.xlu0 %v5767, 8
    %v6124 = vpop.permute.xlu0 %6123
    %6126 = vst.msk [vmem:[%s7] sm:$0x3] %vm1629, %v6124
    // Predicated region
    $region46: #{action_values_forward.1} parent=1 // pred_check
      _
    $region47: #{action_values_forward.1} parent=1 // pred_check_branch
      %6128 = sbr.rel (0) target = $region49
    $region48: #{action_values_forward.1} parent=1 // pred_region
      _
    $region49: #{action_values_forward.1} parent=1 // pred_fallthru
      _
    // Predicated region
    $region50: #{action_values_forward.1} parent=1 // pred_check
      _
    $region51: #{action_values_forward.1} parent=1 // pred_check_branch
      %6130 = sbr.rel (0) target = $region53
    $region52: #{action_values_forward.1} parent=1 // pred_region
      _
    $region53: #{action_values_forward.1} parent=1 // pred_fallthru
      _
    %6131 = vsyncpa [#allocation6], 1
    %6132 = vsyncpa [#allocation8], 1
    %6133 = vsyncpa [#allocation11], 1
  %6134 = vsyncmov [#allocation4]
  %s6135 = vpop.sfrf %6134
  %p6136 = scmp.eq.s32.totalorder %s6135, 0
  %p6137 = pneg %p6136
  %6139 = shalt.err (%p6137)

</llo_original>
